<compile_context>
chip_gen: v7x
topology: tpu7x:2x2x1
jax: 0.10.0
libtpu: 0.0.40
codegen_flags: <defaults>
</compile_context>

<pallas_src>
import functools

import jax
import jax.numpy as jnp
from jax.experimental import pallas as pl
from jax.experimental.pallas import tpu as pltpu

EPS = 1e-5
LANE = 128        # channel padding quantum (lane width)
TM_EW = 512       # row tile for the elementwise kernels


def _round_up(v, m):
    return ((v + m - 1) // m) * m


# ---------------------------------------------------------------------------
# Kernel 1: fused conv (kk x kk, as kk*kk shifted matmuls) + BN statistics.
# One grid step = one image x one output-channel block.
# ---------------------------------------------------------------------------
def _conv_bn_stats_kernel(x_ref, w_ref, y_ref, ps_ref, pq_ref, *, kk, stride, Ho, Wo):
    """x_ref : (1, S*S, Hh, Wh, Cin) bf16  spatially padded, parity-split input
       w_ref : (kk*kk, Cin, CB)      bf16  weight taps for this channel block
       y_ref : (1, Ho*Wo, CB)        f32   conv output
       ps_ref: (1, 1, CB)            f32   per-(image, block) sum        (BN stats)
       pq_ref: (1, 1, CB)            f32   per-(image, block) sum of sq. (BN stats)
    """
    cin = x_ref.shape[-1]
    # Upcast each parity plane once: slicing f32 at the static tap offsets is
    # cheap/safe on the sublane axis, and bf16->f32->bf16 is exact, so the MXU
    # still consumes the original bf16 values.
    planes = [x_ref[0, p].astype(jnp.float32) for p in range(stride * stride)]
    acc = None
    for ky in range(kk):
        for kx in range(kk):
            pq = (ky % stride) * stride + (kx % stride)
            oy, ox = ky // stride, kx // stride
            xs = planes[pq][oy:oy + Ho, ox:ox + Wo, :]
            xs = xs.reshape(Ho * Wo, cin).astype(jnp.bfloat16)
            t = jnp.dot(xs, w_ref[ky * kk + kx], preferred_element_type=jnp.float32)
            acc = t if acc is None else acc + t
    y_ref[...] = acc[None]
    ps_ref[...] = jnp.sum(acc, axis=0, keepdims=True)[None]
    pq_ref[...] = jnp.sum(acc * acc, axis=0, keepdims=True)[None]


def conv_bn_stats(xin, w, Ho, Wo, *, kk, stride):
    """xin: (N, S*S, Hh, Wh, Cin) bf16, w: (kk*kk, Cin, Cout) bf16.
       Returns conv output (N, Ho*Wo, Cout) f32 and per-channel sum / sumsq."""
    N, SS, Hh, Wh, Cin = xin.shape
    KK, _, Cout = w.shape
    assert SS == stride * stride and KK == kk * kk
    CB = 256 if Cout % 256 == 0 else 128
    nco = Cout // CB

    kern = functools.partial(_conv_bn_stats_kernel, kk=kk, stride=stride, Ho=Ho, Wo=Wo)
    y, ps, pq = pl.pallas_call(
        kern,
        out_shape=(
            jax.ShapeDtypeStruct((N, Ho * Wo, Cout), jnp.float32),
            jax.ShapeDtypeStruct((N, 1, Cout), jnp.float32),
            jax.ShapeDtypeStruct((N, 1, Cout), jnp.float32),
        ),
        grid=(N, nco),
        in_specs=[
            pl.BlockSpec((1, SS, Hh, Wh, Cin), lambda n, co: (n, 0, 0, 0, 0)),
            pl.BlockSpec((KK, Cin, CB), lambda n, co: (0, 0, co)),
        ],
        out_specs=(
            pl.BlockSpec((1, Ho * Wo, CB), lambda n, co: (n, 0, co)),
            pl.BlockSpec((1, 1, CB), lambda n, co: (n, 0, co)),
            pl.BlockSpec((1, 1, CB), lambda n, co: (n, 0, co)),
        ),
        compiler_params=pltpu.CompilerParams(
            dimension_semantics=("parallel", "parallel"),
            vmem_limit_bytes=32 * 1024 * 1024,
        ),
    )(xin, w)
    # Tiny per-channel reduction of the partial statistics (XLA side).
    return y, jnp.sum(ps, axis=(0, 1)), jnp.sum(pq, axis=(0, 1))


# ---------------------------------------------------------------------------
# Kernel 2: fused BN affine + ReLU           y = relu(x*scale + shift)
# (bf16 output so it can feed the next conv's MXU directly)
# ---------------------------------------------------------------------------
def _bn_relu_kernel(x_ref, s_ref, b_ref, o_ref):
    y = jnp.maximum(x_ref[...] * s_ref[...] + b_ref[...], 0.0)
    o_ref[...] = y.astype(o_ref.dtype)


def bn_relu(x, scale, shift, out_dtype=jnp.bfloat16):
    M, C = x.shape
    tm = M if M <= TM_EW else TM_EW
    return pl.pallas_call(
        _bn_relu_kernel,
        out_shape=jax.ShapeDtypeStruct((M, C), out_dtype),
        grid=(pl.cdiv(M, tm),),
        in_specs=[
            pl.BlockSpec((tm, C), lambda i: (i, 0)),
            pl.BlockSpec((1, C), lambda i: (0, 0)),
            pl.BlockSpec((1, C), lambda i: (0, 0)),
        ],
        out_specs=pl.BlockSpec((tm, C), lambda i: (i, 0)),
        compiler_params=pltpu.CompilerParams(dimension_semantics=("parallel",)),
    )(x, scale.reshape(1, C), shift.reshape(1, C))


# ---------------------------------------------------------------------------
# Kernel 3a: fused merge (conv shortcut)   y = relu(a*sa + ba + b*sb + bb)
# Kernel 3b: fused merge (identity)        y = relu(a*sa + ba + b)
# ---------------------------------------------------------------------------
def _bn_add_bn_relu_kernel(a_ref, sa_ref, ba_ref, b_ref, sb_ref, bb_ref, o_ref):
    y = (a_ref[...] * sa_ref[...] + ba_ref[...]
         + b_ref[...] * sb_ref[...] + bb_ref[...])
    o_ref[...] = jnp.maximum(y, 0.0)


def _bn_add_id_relu_kernel(a_ref, sa_ref, ba_ref, b_ref, o_ref):
    y = a_ref[...] * sa_ref[...] + ba_ref[...] + b_ref[...]
    o_ref[...] = jnp.maximum(y, 0.0)


def bn_add_bn_relu(a, sa, ba, b, sb, bb):
    M, C = a.shape
    tm = M if M <= TM_EW else TM_EW
    return pl.pallas_call(
        _bn_add_bn_relu_kernel,
        out_shape=jax.ShapeDtypeStruct((M, C), jnp.float32),
        grid=(pl.cdiv(M, tm),),
        in_specs=[
            pl.BlockSpec((tm, C), lambda i: (i, 0)),
            pl.BlockSpec((1, C), lambda i: (0, 0)),
            pl.BlockSpec((1, C), lambda i: (0, 0)),
            pl.BlockSpec((tm, C), lambda i: (i, 0)),
            pl.BlockSpec((1, C), lambda i: (0, 0)),
            pl.BlockSpec((1, C), lambda i: (0, 0)),
        ],
        out_specs=pl.BlockSpec((tm, C), lambda i: (i, 0)),
        compiler_params=pltpu.CompilerParams(dimension_semantics=("parallel",)),
    )(a, sa.reshape(1, C), ba.reshape(1, C), b, sb.reshape(1, C), bb.reshape(1, C))


def bn_add_id_relu(a, sa, ba, b):
    M, C = a.shape
    tm = M if M <= TM_EW else TM_EW
    return pl.pallas_call(
        _bn_add_id_relu_kernel,
        out_shape=jax.ShapeDtypeStruct((M, C), jnp.float32),
        grid=(pl.cdiv(M, tm),),
        in_specs=[
            pl.BlockSpec((tm, C), lambda i: (i, 0)),
            pl.BlockSpec((1, C), lambda i: (0, 0)),
            pl.BlockSpec((1, C), lambda i: (0, 0)),
            pl.BlockSpec((tm, C), lambda i: (i, 0)),
        ],
        out_specs=pl.BlockSpec((tm, C), lambda i: (i, 0)),
        compiler_params=pltpu.CompilerParams(dimension_semantics=("parallel",)),
    )(a, sa.reshape(1, C), ba.reshape(1, C), b)


# ---------------------------------------------------------------------------
# Plain-JAX glue: layout prep (cheap, fuses in XLA), BN scale/shift, init.
# ---------------------------------------------------------------------------
def _make_conv_input(x, kk, stride, pad):
    """x: (N, H, W, C). Returns (N, S*S, Hh, Wh, C), Ho, Wo.

    stride==2 uses a parity (space-to-batch) split so every kernel tap becomes
    a contiguous static window inside the Pallas kernel (no strided VMEM reads).
    """
    N, H, W, C = x.shape
    Ho = (H + 2 * pad - kk) // stride + 1
    Wo = (W + 2 * pad - kk) // stride + 1
    if stride == 1:
        xp = jnp.pad(x, ((0, 0), (pad, pad), (pad, pad), (0, 0)))
        xin = xp[:, None]
    else:
        assert stride == 2
        Hp, Wp = H + 2 * pad, W + 2 * pad
        Hp2, Wp2 = _round_up(Hp, 2), _round_up(Wp, 2)
        xp = jnp.pad(x, ((0, 0), (pad, pad + Hp2 - Hp), (pad, pad + Wp2 - Wp), (0, 0)))
        Hh, Wh = Hp2 // 2, Wp2 // 2
        xin = (xp.reshape(N, Hh, 2, Wh, 2, C)
                 .transpose(0, 2, 4, 1, 3, 5)
                 .reshape(N, 4, Hh, Wh, C))
    off = (kk - 1) // stride
    assert xin.shape[2] >= Ho + off and xin.shape[3] >= Wo + off
    return xin, Ho, Wo


def _prep_weight(w, cin_p, cout_p):
    kh, kw, cin, cout = w.shape
    w = jnp.pad(w, ((0, 0), (0, 0), (0, cin_p - cin), (0, cout_p - cout)))
    return w.reshape(kh * kw, cin_p, cout_p).astype(jnp.bfloat16)


def _pad1d(v, n):
    return jnp.pad(v.astype(jnp.float32), (0, n - v.shape[0]))


def bn_affine(s, ss, count, gamma, beta):
    """Fold training-mode BN (batch statistics) into per-channel scale/shift."""
    mean = s / count
    var = jnp.maximum(ss / count - mean * mean, 0.0)   # biased var, cancellation guard
    inv = jax.lax.rsqrt(var + EPS)
    scale = gamma * inv
    shift = beta - mean * scale
    return scale, shift


def init_params(key, in_c, out_c, stride):
    ks = jax.random.split(key, 9)
    p = {
        "w1": jax.random.normal(ks[0], (3, 3, in_c, out_c), jnp.float32) * (9 * in_c) ** -0.5,
        "g1": 1.0 + 0.1 * jax.random.normal(ks[1], (out_c,), jnp.float32),
        "b1": 0.1 * jax.random.normal(ks[2], (out_c,), jnp.float32),
        "w2": jax.random.normal(ks[3], (3, 3, out_c, out_c), jnp.float32) * (9 * out_c) ** -0.5,
        "g2": 1.0 + 0.1 * jax.random.normal(ks[4], (out_c,), jnp.float32),
        "b2": 0.1 * jax.random.normal(ks[5], (out_c,), jnp.float32),
    }
    if stride != 1 or in_c != out_c:
        p["wsc"] = jax.random.normal(ks[6], (1, 1, in_c, out_c), jnp.float32) * in_c ** -0.5
        p["gsc"] = 1.0 + 0.1 * jax.random.normal(ks[7], (out_c,), jnp.float32)
        p["bsc"] = 0.1 * jax.random.normal(ks[8], (out_c,), jnp.float32)
    return p


def basic_block_forward(x_nchw, params, stride):
    """Pallas implementation of BasicBlock.forward.  Input/output are NCHW."""
    x = jnp.transpose(x_nchw, (0, 2, 3, 1)).astype(jnp.float32)   # -> NHWC
    N, H, W, Cin = x.shape
    Cout = params["w1"].shape[-1]
    Cin_p = _round_up(max(Cin, LANE), LANE)
    Cout_p = _round_up(max(Cout, LANE), LANE)

    # Channel-pad once; padded channels stay exactly zero through the block
    # (gamma/beta padded with 0 -> BN output 0 -> relu 0).
    xch = jnp.pad(x, ((0, 0), (0, 0), (0, 0), (0, Cin_p - Cin)))

    # --- conv1 (3x3, stride, pad=1) fused with BN1 batch statistics ---------
    w1 = _prep_weight(params["w1"], Cin_p, Cout_p)
    xin1, Ho, Wo = _make_conv_input(xch.astype(jnp.bfloat16), 3, stride, 1)
    c1, s1, ss1 = conv_bn_stats(xin1, w1, Ho, Wo, kk=3, stride=stride)
    scale1, shift1 = bn_affine(s1, ss1, N * Ho * Wo,
                               _pad1d(params["g1"], Cout_p), _pad1d(params["b1"], Cout_p))

    # --- BN1 + ReLU (bf16 output feeds conv2's MXU directly) ----------------
    # TODO(synk): fold this elementwise pass into conv2's input path to save
    # one activation write+read (needs in-kernel handling of the zero border).
    y1 = bn_relu(c1.reshape(N * Ho * Wo, Cout_p), scale1, shift1, jnp.bfloat16)
    y1 = y1.reshape(N, Ho, Wo, Cout_p)

    # --- conv2 (3x3, stride 1, pad=1) fused with BN2 statistics -------------
    w2 = _prep_weight(params["w2"], Cout_p, Cout_p)
    xin2, Ho2, Wo2 = _make_conv_input(y1, 3, 1, 1)
    c2, s2, ss2 = conv_bn_stats(xin2, w2, Ho2, Wo2, kk=3, stride=1)
    scale2, shift2 = bn_affine(s2, ss2, N * Ho2 * Wo2,
                               _pad1d(params["g2"], Cout_p), _pad1d(params["b2"], Cout_p))
    c2f = c2.reshape(N * Ho2 * Wo2, Cout_p)

    # --- shortcut + fused merge (BN2 [+ BN_sc] + add + ReLU) -----------------
    if "wsc" in params:
        wsc = _prep_weight(params["wsc"], Cin_p, Cout_p)
        xsub = xch[:, ::stride, ::stride, :].astype(jnp.bfloat16)   # 1x1-conv sampling
        assert xsub.shape[1] == Ho and xsub.shape[2] == Wo
        csc, s3, ss3 = conv_bn_stats(xsub[:, None], wsc, Ho, Wo, kk=1, stride=1)
        scale3, shift3 = bn_affine(s3, ss3, N * Ho * Wo,
                                   _pad1d(params["gsc"], Cout_p), _pad1d(params["bsc"], Cout_p))
        out = bn_add_bn_relu(c2f, scale2, shift2,
                             csc.reshape(N * Ho * Wo, Cout_p), scale3, shift3)
    else:
        out = bn_add_id_relu(c2f, scale2, shift2, xch.reshape(N * H * W, Cin_p))

    out = out.reshape(N, Ho2, Wo2, Cout_p)[..., :Cout]
    return jnp.transpose(out, (0, 3, 1, 2))                         # -> NCHW


# ---------------------------------------------------------------------------
# Pure-JAX reference (bf16 conv operands, f32 accumulation) for correctness.
# ---------------------------------------------------------------------------
def ref_block(x_nchw, params, stride):
    x = jnp.transpose(x_nchw, (0, 2, 3, 1)).astype(jnp.float32)

    def conv(v, w, s, pad):
        return jax.lax.conv_general_dilated(
            v.astype(jnp.bfloat16), w.astype(jnp.bfloat16), (s, s),
            [(pad, pad), (pad, pad)],
            dimension_numbers=("NHWC", "HWIO", "NHWC"),
            preferred_element_type=jnp.float32)

    def bn(v, g, b):
        m = jnp.mean(v, axis=(0, 1, 2), keepdims=True)
        var = jnp.mean((v - m) ** 2, axis=(0, 1, 2), keepdims=True)
        return (v - m) * jax.lax.rsqrt(var + EPS) * g + b

    r = jax.nn.relu(bn(conv(x, params["w1"], stride, 1), params["g1"], params["b1"]))
    r = bn(conv(r, params["w2"], 1, 1), params["g2"], params["b2"])
    if "wsc" in params:
        sc = bn(conv(x, params["wsc"], stride, 0), params["gsc"], params["bsc"])
    else:
        sc = x
    return jnp.transpose(jax.nn.relu(r + sc), (0, 3, 1, 2))


if __name__ == "__main__":
    key = jax.random.PRNGKey(0)
    kx1, kx2, kp1, kp2 = jax.random.split(key, 4)

    fwd = jax.jit(basic_block_forward, static_argnames=("stride",))

    # Case 1: stride=2, channel change -> conv1x1 shortcut path.
    x1 = jax.random.normal(kx1, (2, 4, 16, 16), jnp.float32)       # NCHW
    params1 = init_params(kp1, in_c=4, out_c=8, stride=2)
    out1 = fwd(x1, params1, stride=2)
    ref1 = ref_block(x1, params1, stride=2)

    # Case 2: stride=1, same channels -> identity shortcut path.
    x2 = jax.random.normal(kx2, (2, 8, 16, 16), jnp.float32)       # NCHW
    params2 = init_params(kp2, in_c=8, out_c=8, stride=1)
    out2 = fwd(x2, params2, stride=1)
    ref2 = ref_block(x2, params2, stride=1)

    jax.block_until_ready((out1, out2))
    assert out1.shape == (2, 8, 8, 8), out1.shape
    assert out2.shape == (2, 8, 16, 16), out2.shape
    assert jnp.allclose(out1, ref1, atol=1e-2, rtol=1e-2)
    assert jnp.allclose(out2, ref2, atol=1e-2, rtol=1e-2)
    print("KERNEL_OK")
</pallas_src>

<mosaic_0001>
module attributes {stable_mosaic.version = 11 : i64} {
  func.func @_conv_bn_stats_kernel(%arg0: i32, %arg1: i32, %arg2: memref<1x4x9x9x128xbf16, #tpu.memory_space<vmem>>, %arg3: memref<9x128x128xbf16, #tpu.memory_space<vmem>>, %arg4: memref<1x64x128xf32, #tpu.memory_space<vmem>>, %arg5: memref<1x1x128xf32, #tpu.memory_space<vmem>>, %arg6: memref<1x1x128xf32, #tpu.memory_space<vmem>>) attributes {dimension_semantics = [#tpu.dimension_semantics<parallel>, #tpu.dimension_semantics<parallel>], iteration_bounds = array<i64: 2, 1>, scalar_prefetch = 0 : i64, scratch_operands = 0 : i64, tpu.core_type = #tpu.core_type<tc>, window_params = [{transform_indices = @transform_0, window_bounds = array<i64: 1, 4, 9, 9, 128>}, {transform_indices = @transform_1, window_bounds = array<i64: 9, 128, 128>}, {transform_indices = @transform_2, window_bounds = array<i64: 1, 64, 128>}, {transform_indices = @transform_3, window_bounds = array<i64: 1, 1, 128>}, {transform_indices = @transform_4, window_bounds = array<i64: 1, 1, 128>}]} {
    %c0 = arith.constant 0 : index
    %c0_0 = arith.constant 0 : index
    %c0_1 = arith.constant 0 : index
    %c0_2 = arith.constant 0 : index
    %c0_3 = arith.constant 0 : index
    %0 = vector.load %arg2[%c0, %c0_0, %c0_1, %c0_2, %c0_3] : memref<1x4x9x9x128xbf16, #tpu.memory_space<vmem>>, vector<1x1x9x9x128xbf16>
    %1 = vector.shape_cast %0 : vector<1x1x9x9x128xbf16> to vector<9x9x128xbf16>
    %2 = arith.extf %1 : vector<9x9x128xbf16> to vector<9x9x128xf32>
    %c0_4 = arith.constant 0 : index
    %c1 = arith.constant 1 : index
    %c0_5 = arith.constant 0 : index
    %c0_6 = arith.constant 0 : index
    %c0_7 = arith.constant 0 : index
    %3 = vector.load %arg2[%c0_4, %c1, %c0_5, %c0_6, %c0_7] : memref<1x4x9x9x128xbf16, #tpu.memory_space<vmem>>, vector<1x1x9x9x128xbf16>
    %4 = vector.shape_cast %3 : vector<1x1x9x9x128xbf16> to vector<9x9x128xbf16>
    %5 = arith.extf %4 : vector<9x9x128xbf16> to vector<9x9x128xf32>
    %c0_8 = arith.constant 0 : index
    %c2 = arith.constant 2 : index
    %c0_9 = arith.constant 0 : index
    %c0_10 = arith.constant 0 : index
    %c0_11 = arith.constant 0 : index
    %6 = vector.load %arg2[%c0_8, %c2, %c0_9, %c0_10, %c0_11] : memref<1x4x9x9x128xbf16, #tpu.memory_space<vmem>>, vector<1x1x9x9x128xbf16>
    %7 = vector.shape_cast %6 : vector<1x1x9x9x128xbf16> to vector<9x9x128xbf16>
    %8 = arith.extf %7 : vector<9x9x128xbf16> to vector<9x9x128xf32>
    %c0_12 = arith.constant 0 : index
    %c3 = arith.constant 3 : index
    %c0_13 = arith.constant 0 : index
    %c0_14 = arith.constant 0 : index
    %c0_15 = arith.constant 0 : index
    %9 = vector.load %arg2[%c0_12, %c3, %c0_13, %c0_14, %c0_15] : memref<1x4x9x9x128xbf16, #tpu.memory_space<vmem>>, vector<1x1x9x9x128xbf16>
    %10 = vector.shape_cast %9 : vector<1x1x9x9x128xbf16> to vector<9x9x128xbf16>
    %11 = arith.extf %10 : vector<9x9x128xbf16> to vector<9x9x128xf32>
    %12 = vector.extract_strided_slice %2 {offsets = [0, 0, 0], sizes = [8, 8, 128], strides = [1, 1, 1]} : vector<9x9x128xf32> to vector<8x8x128xf32>
    %13 = vector.shape_cast %12 : vector<8x8x128xf32> to vector<64x128xf32>
    %14 = arith.truncf %13 : vector<64x128xf32> to vector<64x128xbf16>
    %c0_16 = arith.constant 0 : index
    %c0_17 = arith.constant 0 : index
    %c0_18 = arith.constant 0 : index
    %15 = vector.load %arg3[%c0_16, %c0_17, %c0_18] : memref<9x128x128xbf16, #tpu.memory_space<vmem>>, vector<1x128x128xbf16>
    %16 = vector.shape_cast %15 : vector<1x128x128xbf16> to vector<128x128xbf16>
    %cst = arith.constant dense<0.000000e+00> : vector<64x128xf32>
    %17 = tpu.matmul %14, %16, %cst {dimension_numbers = #tpu.dot_dimension_numbers<[1], [0], [0], [1], [0, 0, 1, 1], [], []>} : vector<64x128xbf16>, vector<128x128xbf16>, vector<64x128xf32> -> vector<64x128xf32>
    %18 = vector.extract_strided_slice %5 {offsets = [0, 0, 0], sizes = [8, 8, 128], strides = [1, 1, 1]} : vector<9x9x128xf32> to vector<8x8x128xf32>
    %19 = vector.shape_cast %18 : vector<8x8x128xf32> to vector<64x128xf32>
    %20 = arith.truncf %19 : vector<64x128xf32> to vector<64x128xbf16>
    %c1_19 = arith.constant 1 : index
    %c0_20 = arith.constant 0 : index
    %c0_21 = arith.constant 0 : index
    %21 = vector.load %arg3[%c1_19, %c0_20, %c0_21] : memref<9x128x128xbf16, #tpu.memory_space<vmem>>, vector<1x128x128xbf16>
    %22 = vector.shape_cast %21 : vector<1x128x128xbf16> to vector<128x128xbf16>
    %cst_22 = arith.constant dense<0.000000e+00> : vector<64x128xf32>
    %23 = tpu.matmul %20, %22, %cst_22 {dimension_numbers = #tpu.dot_dimension_numbers<[1], [0], [0], [1], [0, 0, 1, 1], [], []>} : vector<64x128xbf16>, vector<128x128xbf16>, vector<64x128xf32> -> vector<64x128xf32>
    %24 = arith.addf %17, %23 : vector<64x128xf32>
    %25 = vector.extract_strided_slice %2 {offsets = [0, 1, 0], sizes = [8, 8, 128], strides = [1, 1, 1]} : vector<9x9x128xf32> to vector<8x8x128xf32>
    %26 = vector.shape_cast %25 : vector<8x8x128xf32> to vector<64x128xf32>
    %27 = arith.truncf %26 : vector<64x128xf32> to vector<64x128xbf16>
    %c2_23 = arith.constant 2 : index
    %c0_24 = arith.constant 0 : index
    %c0_25 = arith.constant 0 : index
    %28 = vector.load %arg3[%c2_23, %c0_24, %c0_25] : memref<9x128x128xbf16, #tpu.memory_space<vmem>>, vector<1x128x128xbf16>
    %29 = vector.shape_cast %28 : vector<1x128x128xbf16> to vector<128x128xbf16>
    %cst_26 = arith.constant dense<0.000000e+00> : vector<64x128xf32>
    %30 = tpu.matmul %27, %29, %cst_26 {dimension_numbers = #tpu.dot_dimension_numbers<[1], [0], [0], [1], [0, 0, 1, 1], [], []>} : vector<64x128xbf16>, vector<128x128xbf16>, vector<64x128xf32> -> vector<64x128xf32>
    %31 = arith.addf %24, %30 : vector<64x128xf32>
    %32 = vector.extract_strided_slice %8 {offsets = [0, 0, 0], sizes = [8, 8, 128], strides = [1, 1, 1]} : vector<9x9x128xf32> to vector<8x8x128xf32>
    %33 = vector.shape_cast %32 : vector<8x8x128xf32> to vector<64x128xf32>
    %34 = arith.truncf %33 : vector<64x128xf32> to vector<64x128xbf16>
    %c3_27 = arith.constant 3 : index
    %c0_28 = arith.constant 0 : index
    %c0_29 = arith.constant 0 : index
    %35 = vector.load %arg3[%c3_27, %c0_28, %c0_29] : memref<9x128x128xbf16, #tpu.memory_space<vmem>>, vector<1x128x128xbf16>
    %36 = vector.shape_cast %35 : vector<1x128x128xbf16> to vector<128x128xbf16>
    %cst_30 = arith.constant dense<0.000000e+00> : vector<64x128xf32>
    %37 = tpu.matmul %34, %36, %cst_30 {dimension_numbers = #tpu.dot_dimension_numbers<[1], [0], [0], [1], [0, 0, 1, 1], [], []>} : vector<64x128xbf16>, vector<128x128xbf16>, vector<64x128xf32> -> vector<64x128xf32>
    %38 = arith.addf %31, %37 : vector<64x128xf32>
    %39 = vector.extract_strided_slice %11 {offsets = [0, 0, 0], sizes = [8, 8, 128], strides = [1, 1, 1]} : vector<9x9x128xf32> to vector<8x8x128xf32>
    %40 = vector.shape_cast %39 : vector<8x8x128xf32> to vector<64x128xf32>
    %41 = arith.truncf %40 : vector<64x128xf32> to vector<64x128xbf16>
    %c4 = arith.constant 4 : index
    %c0_31 = arith.constant 0 : index
    %c0_32 = arith.constant 0 : index
    %42 = vector.load %arg3[%c4, %c0_31, %c0_32] : memref<9x128x128xbf16, #tpu.memory_space<vmem>>, vector<1x128x128xbf16>
    %43 = vector.shape_cast %42 : vector<1x128x128xbf16> to vector<128x128xbf16>
    %cst_33 = arith.constant dense<0.000000e+00> : vector<64x128xf32>
    %44 = tpu.matmul %41, %43, %cst_33 {dimension_numbers = #tpu.dot_dimension_numbers<[1], [0], [0], [1], [0, 0, 1, 1], [], []>} : vector<64x128xbf16>, vector<128x128xbf16>, vector<64x128xf32> -> vector<64x128xf32>
    %45 = arith.addf %38, %44 : vector<64x128xf32>
    %46 = vector.extract_strided_slice %8 {offsets = [0, 1, 0], sizes = [8, 8, 128], strides = [1, 1, 1]} : vector<9x9x128xf32> to vector<8x8x128xf32>
    %47 = vector.shape_cast %46 : vector<8x8x128xf32> to vector<64x128xf32>
    %48 = arith.truncf %47 : vector<64x128xf32> to vector<64x128xbf16>
    %c5 = arith.constant 5 : index
    %c0_34 = arith.constant 0 : index
    %c0_35 = arith.constant 0 : index
    %49 = vector.load %arg3[%c5, %c0_34, %c0_35] : memref<9x128x128xbf16, #tpu.memory_space<vmem>>, vector<1x128x128xbf16>
    %50 = vector.shape_cast %49 : vector<1x128x128xbf16> to vector<128x128xbf16>
    %cst_36 = arith.constant dense<0.000000e+00> : vector<64x128xf32>
    %51 = tpu.matmul %48, %50, %cst_36 {dimension_numbers = #tpu.dot_dimension_numbers<[1], [0], [0], [1], [0, 0, 1, 1], [], []>} : vector<64x128xbf16>, vector<128x128xbf16>, vector<64x128xf32> -> vector<64x128xf32>
    %52 = arith.addf %45, %51 : vector<64x128xf32>
    %53 = vector.extract_strided_slice %2 {offsets = [1, 0, 0], sizes = [8, 8, 128], strides = [1, 1, 1]} : vector<9x9x128xf32> to vector<8x8x128xf32>
    %54 = vector.shape_cast %53 : vector<8x8x128xf32> to vector<64x128xf32>
    %55 = arith.truncf %54 : vector<64x128xf32> to vector<64x128xbf16>
    %c6 = arith.constant 6 : index
    %c0_37 = arith.constant 0 : index
    %c0_38 = arith.constant 0 : index
    %56 = vector.load %arg3[%c6, %c0_37, %c0_38] : memref<9x128x128xbf16, #tpu.memory_space<vmem>>, vector<1x128x128xbf16>
    %57 = vector.shape_cast %56 : vector<1x128x128xbf16> to vector<128x128xbf16>
    %cst_39 = arith.constant dense<0.000000e+00> : vector<64x128xf32>
    %58 = tpu.matmul %55, %57, %cst_39 {dimension_numbers = #tpu.dot_dimension_numbers<[1], [0], [0], [1], [0, 0, 1, 1], [], []>} : vector<64x128xbf16>, vector<128x128xbf16>, vector<64x128xf32> -> vector<64x128xf32>
    %59 = arith.addf %52, %58 : vector<64x128xf32>
    %60 = vector.extract_strided_slice %5 {offsets = [1, 0, 0], sizes = [8, 8, 128], strides = [1, 1, 1]} : vector<9x9x128xf32> to vector<8x8x128xf32>
    %61 = vector.shape_cast %60 : vector<8x8x128xf32> to vector<64x128xf32>
    %62 = arith.truncf %61 : vector<64x128xf32> to vector<64x128xbf16>
    %c7 = arith.constant 7 : index
    %c0_40 = arith.constant 0 : index
    %c0_41 = arith.constant 0 : index
    %63 = vector.load %arg3[%c7, %c0_40, %c0_41] : memref<9x128x128xbf16, #tpu.memory_space<vmem>>, vector<1x128x128xbf16>
    %64 = vector.shape_cast %63 : vector<1x128x128xbf16> to vector<128x128xbf16>
    %cst_42 = arith.constant dense<0.000000e+00> : vector<64x128xf32>
    %65 = tpu.matmul %62, %64, %cst_42 {dimension_numbers = #tpu.dot_dimension_numbers<[1], [0], [0], [1], [0, 0, 1, 1], [], []>} : vector<64x128xbf16>, vector<128x128xbf16>, vector<64x128xf32> -> vector<64x128xf32>
    %66 = arith.addf %59, %65 : vector<64x128xf32>
    %67 = vector.extract_strided_slice %2 {offsets = [1, 1, 0], sizes = [8, 8, 128], strides = [1, 1, 1]} : vector<9x9x128xf32> to vector<8x8x128xf32>
    %68 = vector.shape_cast %67 : vector<8x8x128xf32> to vector<64x128xf32>
    %69 = arith.truncf %68 : vector<64x128xf32> to vector<64x128xbf16>
    %c8 = arith.constant 8 : index
    %c0_43 = arith.constant 0 : index
    %c0_44 = arith.constant 0 : index
    %70 = vector.load %arg3[%c8, %c0_43, %c0_44] : memref<9x128x128xbf16, #tpu.memory_space<vmem>>, vector<1x128x128xbf16>
    %71 = vector.shape_cast %70 : vector<1x128x128xbf16> to vector<128x128xbf16>
    %cst_45 = arith.constant dense<0.000000e+00> : vector<64x128xf32>
    %72 = tpu.matmul %69, %71, %cst_45 {dimension_numbers = #tpu.dot_dimension_numbers<[1], [0], [0], [1], [0, 0, 1, 1], [], []>} : vector<64x128xbf16>, vector<128x128xbf16>, vector<64x128xf32> -> vector<64x128xf32>
    %73 = arith.addf %66, %72 : vector<64x128xf32>
    %74 = vector.shape_cast %73 : vector<64x128xf32> to vector<1x64x128xf32>
    %c0_46 = arith.constant 0 : index
    %c0_47 = arith.constant 0 : index
    %c0_48 = arith.constant 0 : index
    %75 = vector.load %arg4[%c0_46, %c0_47, %c0_48] : memref<1x64x128xf32, #tpu.memory_space<vmem>>, vector<1x64x128xf32>
    tpu.vector_store %arg4[%c0_46, %c0_47, %c0_48], %74 {strides = array<i32>} : memref<1x64x128xf32, #tpu.memory_space<vmem>>, vector<1x64x128xf32>,
    %cst_49 = arith.constant dense<0.000000e+00> : vector<128xf32>
    %76 = vector.multi_reduction <add>, %73, %cst_49 [0] : vector<64x128xf32> to vector<128xf32>
    %77 = vector.shape_cast %76 : vector<128xf32> to vector<1x128xf32>
    %78 = vector.shape_cast %77 : vector<1x128xf32> to vector<1x1x128xf32>
    %c0_50 = arith.constant 0 : index
    %c0_51 = arith.constant 0 : index
    %c0_52 = arith.constant 0 : index
    %79 = vector.load %arg5[%c0_50, %c0_51, %c0_52] : memref<1x1x128xf32, #tpu.memory_space<vmem>>, vector<1x1x128xf32>
    tpu.vector_store %arg5[%c0_50, %c0_51, %c0_52], %78 {strides = array<i32>} : memref<1x1x128xf32, #tpu.memory_space<vmem>>, vector<1x1x128xf32>,
    %80 = arith.mulf %73, %73 : vector<64x128xf32>
    %cst_53 = arith.constant dense<0.000000e+00> : vector<128xf32>
    %81 = vector.multi_reduction <add>, %80, %cst_53 [0] : vector<64x128xf32> to vector<128xf32>
    %82 = vector.shape_cast %81 : vector<128xf32> to vector<1x128xf32>
    %83 = vector.shape_cast %82 : vector<1x128xf32> to vector<1x1x128xf32>
    %c0_54 = arith.constant 0 : index
    %c0_55 = arith.constant 0 : index
    %c0_56 = arith.constant 0 : index
    %84 = vector.load %arg6[%c0_54, %c0_55, %c0_56] : memref<1x1x128xf32, #tpu.memory_space<vmem>>, vector<1x1x128xf32>
    tpu.vector_store %arg6[%c0_54, %c0_55, %c0_56], %83 {strides = array<i32>} : memref<1x1x128xf32, #tpu.memory_space<vmem>>, vector<1x1x128xf32>,
    return
  }
  func.func @transform_0(%arg0: i32, %arg1: i32) -> (i32, i32, i32, i32, i32) {
    %c0_i32 = arith.constant 0 : i32
    %c0_i32_0 = arith.constant 0 : i32
    %c0_i32_1 = arith.constant 0 : i32
    %c0_i32_2 = arith.constant 0 : i32
    %c0_i32_3 = arith.constant 0 : i32
    return %arg0, %c0_i32, %c0_i32_0, %c0_i32_1, %c0_i32_2 : i32, i32, i32, i32, i32
  }
  func.func @transform_1(%arg0: i32, %arg1: i32) -> (i32, i32, i32) {
    %c0_i32 = arith.constant 0 : i32
    %c0_i32_0 = arith.constant 0 : i32
    %c0_i32_1 = arith.constant 0 : i32
    return %c0_i32, %c0_i32_0, %arg1 : i32, i32, i32
  }
  func.func @transform_2(%arg0: i32, %arg1: i32) -> (i32, i32, i32) {
    %c0_i32 = arith.constant 0 : i32
    %c0_i32_0 = arith.constant 0 : i32
    return %arg0, %c0_i32, %arg1 : i32, i32, i32
  }
  func.func @transform_3(%arg0: i32, %arg1: i32) -> (i32, i32, i32) {
    %c0_i32 = arith.constant 0 : i32
    %c0_i32_0 = arith.constant 0 : i32
    return %arg0, %c0_i32, %arg1 : i32, i32, i32
  }
  func.func @transform_4(%arg0: i32, %arg1: i32) -> (i32, i32, i32) {
    %c0_i32 = arith.constant 0 : i32
    %c0_i32_0 = arith.constant 0 : i32
    return %arg0, %c0_i32, %arg1 : i32, i32, i32
  }
}

module attributes {stable_mosaic.version = 11 : i64} {
  func.func @_bn_relu_kernel(%arg0: i32, %arg1: memref<128x128xf32, #tpu.memory_space<vmem>>, %arg2: memref<1x128xf32, #tpu.memory_space<vmem>>, %arg3: memref<1x128xf32, #tpu.memory_space<vmem>>, %arg4: memref<128x128xbf16, #tpu.memory_space<vmem>>) attributes {dimension_semantics = [#tpu.dimension_semantics<parallel>], iteration_bounds = array<i64: 1>, scalar_prefetch = 0 : i64, scratch_operands = 0 : i64, tpu.core_type = #tpu.core_type<tc>, window_params = [{transform_indices = @transform_0, window_bounds = array<i64: 128, 128>}, {pipeline_mode = #tpu.pipeline_mode<synchronous>, transform_indices = @transform_1, window_bounds = array<i64: 1, 128>}, {pipeline_mode = #tpu.pipeline_mode<synchronous>, transform_indices = @transform_2, window_bounds = array<i64: 1, 128>}, {transform_indices = @transform_3, window_bounds = array<i64: 128, 128>}]} {
    %c0 = arith.constant 0 : index
    %c0_0 = arith.constant 0 : index
    %0 = vector.load %arg1[%c0, %c0_0] : memref<128x128xf32, #tpu.memory_space<vmem>>, vector<128x128xf32>
    %c0_1 = arith.constant 0 : index
    %c0_2 = arith.constant 0 : index
    %1 = vector.load %arg2[%c0_1, %c0_2] : memref<1x128xf32, #tpu.memory_space<vmem>>, vector<1x128xf32>
    %2 = vector.broadcast %1 : vector<1x128xf32> to vector<128x128xf32>
    %3 = arith.mulf %0, %2 : vector<128x128xf32>
    %c0_3 = arith.constant 0 : index
    %c0_4 = arith.constant 0 : index
    %4 = vector.load %arg3[%c0_3, %c0_4] : memref<1x128xf32, #tpu.memory_space<vmem>>, vector<1x128xf32>
    %5 = vector.broadcast %4 : vector<1x128xf32> to vector<128x128xf32>
    %6 = arith.addf %3, %5 : vector<128x128xf32>
    %cst = arith.constant 0.000000e+00 : f32
    %7 = vector.broadcast %cst : f32 to vector<128x128xf32>
    %8 = arith.maximumf %6, %7 : vector<128x128xf32>
    %9 = arith.truncf %8 : vector<128x128xf32> to vector<128x128xbf16>
    %c0_5 = arith.constant 0 : index
    %c0_6 = arith.constant 0 : index
    %10 = vector.load %arg4[%c0_5, %c0_6] : memref<128x128xbf16, #tpu.memory_space<vmem>>, vector<128x128xbf16>
    tpu.vector_store %arg4[%c0_5, %c0_6], %9 {strides = array<i32>} : memref<128x128xbf16, #tpu.memory_space<vmem>>, vector<128x128xbf16>,
    return
  }
  func.func @transform_0(%arg0: i32) -> (i32, i32) {
    %c0_i32 = arith.constant 0 : i32
    %c0_i32_0 = arith.constant 0 : i32
    return %arg0, %c0_i32 : i32, i32
  }
  func.func @transform_1(%arg0: i32) -> (i32, i32) {
    %c0_i32 = arith.constant 0 : i32
    %c0_i32_0 = arith.constant 0 : i32
    %c0_i32_1 = arith.constant 0 : i32
    return %c0_i32, %c0_i32_0 : i32, i32
  }
  func.func @transform_2(%arg0: i32) -> (i32, i32) {
    %c0_i32 = arith.constant 0 : i32
    %c0_i32_0 = arith.constant 0 : i32
    %c0_i32_1 = arith.constant 0 : i32
    return %c0_i32, %c0_i32_0 : i32, i32
  }
  func.func @transform_3(%arg0: i32) -> (i32, i32) {
    %c0_i32 = arith.constant 0 : i32
    %c0_i32_0 = arith.constant 0 : i32
    return %arg0, %c0_i32 : i32, i32
  }
}

module attributes {stable_mosaic.version = 11 : i64} {
  func.func @_conv_bn_stats_kernel(%arg0: i32, %arg1: i32, %arg2: memref<1x1x10x10x128xbf16, #tpu.memory_space<vmem>>, %arg3: memref<9x128x128xbf16, #tpu.memory_space<vmem>>, %arg4: memref<1x64x128xf32, #tpu.memory_space<vmem>>, %arg5: memref<1x1x128xf32, #tpu.memory_space<vmem>>, %arg6: memref<1x1x128xf32, #tpu.memory_space<vmem>>) attributes {dimension_semantics = [#tpu.dimension_semantics<parallel>, #tpu.dimension_semantics<parallel>], iteration_bounds = array<i64: 2, 1>, scalar_prefetch = 0 : i64, scratch_operands = 0 : i64, tpu.core_type = #tpu.core_type<tc>, window_params = [{transform_indices = @transform_0, window_bounds = array<i64: 1, 1, 10, 10, 128>}, {transform_indices = @transform_1, window_bounds = array<i64: 9, 128, 128>}, {transform_indices = @transform_2, window_bounds = array<i64: 1, 64, 128>}, {transform_indices = @transform_3, window_bounds = array<i64: 1, 1, 128>}, {transform_indices = @transform_4, window_bounds = array<i64: 1, 1, 128>}]} {
    %c0 = arith.constant 0 : index
    %c0_0 = arith.constant 0 : index
    %c0_1 = arith.constant 0 : index
    %c0_2 = arith.constant 0 : index
    %c0_3 = arith.constant 0 : index
    %0 = vector.load %arg2[%c0, %c0_0, %c0_1, %c0_2, %c0_3] : memref<1x1x10x10x128xbf16, #tpu.memory_space<vmem>>, vector<1x1x10x10x128xbf16>
    %1 = vector.shape_cast %0 : vector<1x1x10x10x128xbf16> to vector<10x10x128xbf16>
    %2 = arith.extf %1 : vector<10x10x128xbf16> to vector<10x10x128xf32>
    %3 = vector.extract_strided_slice %2 {offsets = [0, 0, 0], sizes = [8, 8, 128], strides = [1, 1, 1]} : vector<10x10x128xf32> to vector<8x8x128xf32>
    %4 = vector.shape_cast %3 : vector<8x8x128xf32> to vector<64x128xf32>
    %5 = arith.truncf %4 : vector<64x128xf32> to vector<64x128xbf16>
    %c0_4 = arith.constant 0 : index
    %c0_5 = arith.constant 0 : index
    %c0_6 = arith.constant 0 : index
    %6 = vector.load %arg3[%c0_4, %c0_5, %c0_6] : memref<9x128x128xbf16, #tpu.memory_space<vmem>>, vector<1x128x128xbf16>
    %7 = vector.shape_cast %6 : vector<1x128x128xbf16> to vector<128x128xbf16>
    %cst = arith.constant dense<0.000000e+00> : vector<64x128xf32>
    %8 = tpu.matmul %5, %7, %cst {dimension_numbers = #tpu.dot_dimension_numbers<[1], [0], [0], [1], [0, 0, 1, 1], [], []>} : vector<64x128xbf16>, vector<128x128xbf16>, vector<64x128xf32> -> vector<64x128xf32>
    %9 = vector.extract_strided_slice %2 {offsets = [0, 1, 0], sizes = [8, 8, 128], strides = [1, 1, 1]} : vector<10x10x128xf32> to vector<8x8x128xf32>
    %10 = vector.shape_cast %9 : vector<8x8x128xf32> to vector<64x128xf32>
    %11 = arith.truncf %10 : vector<64x128xf32> to vector<64x128xbf16>
    %c1 = arith.constant 1 : index
    %c0_7 = arith.constant 0 : index
    %c0_8 = arith.constant 0 : index
    %12 = vector.load %arg3[%c1, %c0_7, %c0_8] : memref<9x128x128xbf16, #tpu.memory_space<vmem>>, vector<1x128x128xbf16>
    %13 = vector.shape_cast %12 : vector<1x128x128xbf16> to vector<128x128xbf16>
    %cst_9 = arith.constant dense<0.000000e+00> : vector<64x128xf32>
    %14 = tpu.matmul %11, %13, %cst_9 {dimension_numbers = #tpu.dot_dimension_numbers<[1], [0], [0], [1], [0, 0, 1, 1], [], []>} : vector<64x128xbf16>, vector<128x128xbf16>, vector<64x128xf32> -> vector<64x128xf32>
    %15 = arith.addf %8, %14 : vector<64x128xf32>
    %16 = vector.extract_strided_slice %2 {offsets = [0, 2, 0], sizes = [8, 8, 128], strides = [1, 1, 1]} : vector<10x10x128xf32> to vector<8x8x128xf32>
    %17 = vector.shape_cast %16 : vector<8x8x128xf32> to vector<64x128xf32>
    %18 = arith.truncf %17 : vector<64x128xf32> to vector<64x128xbf16>
    %c2 = arith.constant 2 : index
    %c0_10 = arith.constant 0 : index
    %c0_11 = arith.constant 0 : index
    %19 = vector.load %arg3[%c2, %c0_10, %c0_11] : memref<9x128x128xbf16, #tpu.memory_space<vmem>>, vector<1x128x128xbf16>
    %20 = vector.shape_cast %19 : vector<1x128x128xbf16> to vector<128x128xbf16>
    %cst_12 = arith.constant dense<0.000000e+00> : vector<64x128xf32>
    %21 = tpu.matmul %18, %20, %cst_12 {dimension_numbers = #tpu.dot_dimension_numbers<[1], [0], [0], [1], [0, 0, 1, 1], [], []>} : vector<64x128xbf16>, vector<128x128xbf16>, vector<64x128xf32> -> vector<64x128xf32>
    %22 = arith.addf %15, %21 : vector<64x128xf32>
    %23 = vector.extract_strided_slice %2 {offsets = [1, 0, 0], sizes = [8, 8, 128], strides = [1, 1, 1]} : vector<10x10x128xf32> to vector<8x8x128xf32>
    %24 = vector.shape_cast %23 : vector<8x8x128xf32> to vector<64x128xf32>
    %25 = arith.truncf %24 : vector<64x128xf32> to vector<64x128xbf16>
    %c3 = arith.constant 3 : index
    %c0_13 = arith.constant 0 : index
    %c0_14 = arith.constant 0 : index
    %26 = vector.load %arg3[%c3, %c0_13, %c0_14] : memref<9x128x128xbf16, #tpu.memory_space<vmem>>, vector<1x128x128xbf16>
    %27 = vector.shape_cast %26 : vector<1x128x128xbf16> to vector<128x128xbf16>
    %cst_15 = arith.constant dense<0.000000e+00> : vector<64x128xf32>
    %28 = tpu.matmul %25, %27, %cst_15 {dimension_numbers = #tpu.dot_dimension_numbers<[1], [0], [0], [1], [0, 0, 1, 1], [], []>} : vector<64x128xbf16>, vector<128x128xbf16>, vector<64x128xf32> -> vector<64x128xf32>
    %29 = arith.addf %22, %28 : vector<64x128xf32>
    %30 = vector.extract_strided_slice %2 {offsets = [1, 1, 0], sizes = [8, 8, 128], strides = [1, 1, 1]} : vector<10x10x128xf32> to vector<8x8x128xf32>
    %31 = vector.shape_cast %30 : vector<8x8x128xf32> to vector<64x128xf32>
    %32 = arith.truncf %31 : vector<64x128xf32> to vector<64x128xbf16>
    %c4 = arith.constant 4 : index
    %c0_16 = arith.constant 0 : index
    %c0_17 = arith.constant 0 : index
    %33 = vector.load %arg3[%c4, %c0_16, %c0_17] : memref<9x128x128xbf16, #tpu.memory_space<vmem>>, vector<1x128x128xbf16>
    %34 = vector.shape_cast %33 : vector<1x128x128xbf16> to vector<128x128xbf16>
    %cst_18 = arith.constant dense<0.000000e+00> : vector<64x128xf32>
    %35 = tpu.matmul %32, %34, %cst_18 {dimension_numbers = #tpu.dot_dimension_numbers<[1], [0], [0], [1], [0, 0, 1, 1], [], []>} : vector<64x128xbf16>, vector<128x128xbf16>, vector<64x128xf32> -> vector<64x128xf32>
    %36 = arith.addf %29, %35 : vector<64x128xf32>
    %37 = vector.extract_strided_slice %2 {offsets = [1, 2, 0], sizes = [8, 8, 128], strides = [1, 1, 1]} : vector<10x10x128xf32> to vector<8x8x128xf32>
    %38 = vector.shape_cast %37 : vector<8x8x128xf32> to vector<64x128xf32>
    %39 = arith.truncf %38 : vector<64x128xf32> to vector<64x128xbf16>
    %c5 = arith.constant 5 : index
    %c0_19 = arith.constant 0 : index
    %c0_20 = arith.constant 0 : index
    %40 = vector.load %arg3[%c5, %c0_19, %c0_20] : memref<9x128x128xbf16, #tpu.memory_space<vmem>>, vector<1x128x128xbf16>
    %41 = vector.shape_cast %40 : vector<1x128x128xbf16> to vector<128x128xbf16>
    %cst_21 = arith.constant dense<0.000000e+00> : vector<64x128xf32>
    %42 = tpu.matmul %39, %41, %cst_21 {dimension_numbers = #tpu.dot_dimension_numbers<[1], [0], [0], [1], [0, 0, 1, 1], [], []>} : vector<64x128xbf16>, vector<128x128xbf16>, vector<64x128xf32> -> vector<64x128xf32>
    %43 = arith.addf %36, %42 : vector<64x128xf32>
    %44 = vector.extract_strided_slice %2 {offsets = [2, 0, 0], sizes = [8, 8, 128], strides = [1, 1, 1]} : vector<10x10x128xf32> to vector<8x8x128xf32>
    %45 = vector.shape_cast %44 : vector<8x8x128xf32> to vector<64x128xf32>
    %46 = arith.truncf %45 : vector<64x128xf32> to vector<64x128xbf16>
    %c6 = arith.constant 6 : index
    %c0_22 = arith.constant 0 : index
    %c0_23 = arith.constant 0 : index
    %47 = vector.load %arg3[%c6, %c0_22, %c0_23] : memref<9x128x128xbf16, #tpu.memory_space<vmem>>, vector<1x128x128xbf16>
    %48 = vector.shape_cast %47 : vector<1x128x128xbf16> to vector<128x128xbf16>
    %cst_24 = arith.constant dense<0.000000e+00> : vector<64x128xf32>
    %49 = tpu.matmul %46, %48, %cst_24 {dimension_numbers = #tpu.dot_dimension_numbers<[1], [0], [0], [1], [0, 0, 1, 1], [], []>} : vector<64x128xbf16>, vector<128x128xbf16>, vector<64x128xf32> -> vector<64x128xf32>
    %50 = arith.addf %43, %49 : vector<64x128xf32>
    %51 = vector.extract_strided_slice %2 {offsets = [2, 1, 0], sizes = [8, 8, 128], strides = [1, 1, 1]} : vector<10x10x128xf32> to vector<8x8x128xf32>
    %52 = vector.shape_cast %51 : vector<8x8x128xf32> to vector<64x128xf32>
    %53 = arith.truncf %52 : vector<64x128xf32> to vector<64x128xbf16>
    %c7 = arith.constant 7 : index
    %c0_25 = arith.constant 0 : index
    %c0_26 = arith.constant 0 : index
    %54 = vector.load %arg3[%c7, %c0_25, %c0_26] : memref<9x128x128xbf16, #tpu.memory_space<vmem>>, vector<1x128x128xbf16>
    %55 = vector.shape_cast %54 : vector<1x128x128xbf16> to vector<128x128xbf16>
    %cst_27 = arith.constant dense<0.000000e+00> : vector<64x128xf32>
    %56 = tpu.matmul %53, %55, %cst_27 {dimension_numbers = #tpu.dot_dimension_numbers<[1], [0], [0], [1], [0, 0, 1, 1], [], []>} : vector<64x128xbf16>, vector<128x128xbf16>, vector<64x128xf32> -> vector<64x128xf32>
    %57 = arith.addf %50, %56 : vector<64x128xf32>
    %58 = vector.extract_strided_slice %2 {offsets = [2, 2, 0], sizes = [8, 8, 128], strides = [1, 1, 1]} : vector<10x10x128xf32> to vector<8x8x128xf32>
    %59 = vector.shape_cast %58 : vector<8x8x128xf32> to vector<64x128xf32>
    %60 = arith.truncf %59 : vector<64x128xf32> to vector<64x128xbf16>
    %c8 = arith.constant 8 : index
    %c0_28 = arith.constant 0 : index
    %c0_29 = arith.constant 0 : index
    %61 = vector.load %arg3[%c8, %c0_28, %c0_29] : memref<9x128x128xbf16, #tpu.memory_space<vmem>>, vector<1x128x128xbf16>
    %62 = vector.shape_cast %61 : vector<1x128x128xbf16> to vector<128x128xbf16>
    %cst_30 = arith.constant dense<0.000000e+00> : vector<64x128xf32>
    %63 = tpu.matmul %60, %62, %cst_30 {dimension_numbers = #tpu.dot_dimension_numbers<[1], [0], [0], [1], [0, 0, 1, 1], [], []>} : vector<64x128xbf16>, vector<128x128xbf16>, vector<64x128xf32> -> vector<64x128xf32>
    %64 = arith.addf %57, %63 : vector<64x128xf32>
    %65 = vector.shape_cast %64 : vector<64x128xf32> to vector<1x64x128xf32>
    %c0_31 = arith.constant 0 : index
    %c0_32 = arith.constant 0 : index
    %c0_33 = arith.constant 0 : index
    %66 = vector.load %arg4[%c0_31, %c0_32, %c0_33] : memref<1x64x128xf32, #tpu.memory_space<vmem>>, vector<1x64x128xf32>
    tpu.vector_store %arg4[%c0_31, %c0_32, %c0_33], %65 {strides = array<i32>} : memref<1x64x128xf32, #tpu.memory_space<vmem>>, vector<1x64x128xf32>,
    %cst_34 = arith.constant dense<0.000000e+00> : vector<128xf32>
    %67 = vector.multi_reduction <add>, %64, %cst_34 [0] : vector<64x128xf32> to vector<128xf32>
    %68 = vector.shape_cast %67 : vector<128xf32> to vector<1x128xf32>
    %69 = vector.shape_cast %68 : vector<1x128xf32> to vector<1x1x128xf32>
    %c0_35 = arith.constant 0 : index
    %c0_36 = arith.constant 0 : index
    %c0_37 = arith.constant 0 : index
    %70 = vector.load %arg5[%c0_35, %c0_36, %c0_37] : memref<1x1x128xf32, #tpu.memory_space<vmem>>, vector<1x1x128xf32>
    tpu.vector_store %arg5[%c0_35, %c0_36, %c0_37], %69 {strides = array<i32>} : memref<1x1x128xf32, #tpu.memory_space<vmem>>, vector<1x1x128xf32>,
    %71 = arith.mulf %64, %64 : vector<64x128xf32>
    %cst_38 = arith.constant dense<0.000000e+00> : vector<128xf32>
    %72 = vector.multi_reduction <add>, %71, %cst_38 [0] : vector<64x128xf32> to vector<128xf32>
    %73 = vector.shape_cast %72 : vector<128xf32> to vector<1x128xf32>
    %74 = vector.shape_cast %73 : vector<1x128xf32> to vector<1x1x128xf32>
    %c0_39 = arith.constant 0 : index
    %c0_40 = arith.constant 0 : index
    %c0_41 = arith.constant 0 : index
    %75 = vector.load %arg6[%c0_39, %c0_40, %c0_41] : memref<1x1x128xf32, #tpu.memory_space<vmem>>, vector<1x1x128xf32>
    tpu.vector_store %arg6[%c0_39, %c0_40, %c0_41], %74 {strides = array<i32>} : memref<1x1x128xf32, #tpu.memory_space<vmem>>, vector<1x1x128xf32>,
    return
  }
  func.func @transform_0(%arg0: i32, %arg1: i32) -> (i32, i32, i32, i32, i32) {
    %c0_i32 = arith.constant 0 : i32
    %c0_i32_0 = arith.constant 0 : i32
    %c0_i32_1 = arith.constant 0 : i32
    %c0_i32_2 = arith.constant 0 : i32
    %c0_i32_3 = arith.constant 0 : i32
    return %arg0, %c0_i32, %c0_i32_0, %c0_i32_1, %c0_i32_2 : i32, i32, i32, i32, i32
  }
  func.func @transform_1(%arg0: i32, %arg1: i32) -> (i32, i32, i32) {
    %c0_i32 = arith.constant 0 : i32
    %c0_i32_0 = arith.constant 0 : i32
    %c0_i32_1 = arith.constant 0 : i32
    return %c0_i32, %c0_i32_0, %arg1 : i32, i32, i32
  }
  func.func @transform_2(%arg0: i32, %arg1: i32) -> (i32, i32, i32) {
    %c0_i32 = arith.constant 0 : i32
    %c0_i32_0 = arith.constant 0 : i32
    return %arg0, %c0_i32, %arg1 : i32, i32, i32
  }
  func.func @transform_3(%arg0: i32, %arg1: i32) -> (i32, i32, i32) {
    %c0_i32 = arith.constant 0 : i32
    %c0_i32_0 = arith.constant 0 : i32
    return %arg0, %c0_i32, %arg1 : i32, i32, i32
  }
  func.func @transform_4(%arg0: i32, %arg1: i32) -> (i32, i32, i32) {
    %c0_i32 = arith.constant 0 : i32
    %c0_i32_0 = arith.constant 0 : i32
    return %arg0, %c0_i32, %arg1 : i32, i32, i32
  }
}

module attributes {stable_mosaic.version = 11 : i64} {
  func.func @_conv_bn_stats_kernel(%arg0: i32, %arg1: i32, %arg2: memref<1x1x8x8x128xbf16, #tpu.memory_space<vmem>>, %arg3: memref<1x128x128xbf16, #tpu.memory_space<vmem>>, %arg4: memref<1x64x128xf32, #tpu.memory_space<vmem>>, %arg5: memref<1x1x128xf32, #tpu.memory_space<vmem>>, %arg6: memref<1x1x128xf32, #tpu.memory_space<vmem>>) attributes {dimension_semantics = [#tpu.dimension_semantics<parallel>, #tpu.dimension_semantics<parallel>], iteration_bounds = array<i64: 2, 1>, scalar_prefetch = 0 : i64, scratch_operands = 0 : i64, tpu.core_type = #tpu.core_type<tc>, window_params = [{transform_indices = @transform_0, window_bounds = array<i64: 1, 1, 8, 8, 128>}, {transform_indices = @transform_1, window_bounds = array<i64: 1, 128, 128>}, {transform_indices = @transform_2, window_bounds = array<i64: 1, 64, 128>}, {transform_indices = @transform_3, window_bounds = array<i64: 1, 1, 128>}, {transform_indices = @transform_4, window_bounds = array<i64: 1, 1, 128>}]} {
    %c0 = arith.constant 0 : index
    %c0_0 = arith.constant 0 : index
    %c0_1 = arith.constant 0 : index
    %c0_2 = arith.constant 0 : index
    %c0_3 = arith.constant 0 : index
    %0 = vector.load %arg2[%c0, %c0_0, %c0_1, %c0_2, %c0_3] : memref<1x1x8x8x128xbf16, #tpu.memory_space<vmem>>, vector<1x1x8x8x128xbf16>
    %1 = vector.shape_cast %0 : vector<1x1x8x8x128xbf16> to vector<8x8x128xbf16>
    %2 = arith.extf %1 : vector<8x8x128xbf16> to vector<8x8x128xf32>
    %3 = vector.shape_cast %2 : vector<8x8x128xf32> to vector<64x128xf32>
    %4 = arith.truncf %3 : vector<64x128xf32> to vector<64x128xbf16>
    %c0_4 = arith.constant 0 : index
    %c0_5 = arith.constant 0 : index
    %c0_6 = arith.constant 0 : index
    %5 = vector.load %arg3[%c0_4, %c0_5, %c0_6] : memref<1x128x128xbf16, #tpu.memory_space<vmem>>, vector<1x128x128xbf16>
    %6 = vector.shape_cast %5 : vector<1x128x128xbf16> to vector<128x128xbf16>
    %cst = arith.constant dense<0.000000e+00> : vector<64x128xf32>
    %7 = tpu.matmul %4, %6, %cst {dimension_numbers = #tpu.dot_dimension_numbers<[1], [0], [0], [1], [0, 0, 1, 1], [], []>} : vector<64x128xbf16>, vector<128x128xbf16>, vector<64x128xf32> -> vector<64x128xf32>
    %8 = vector.shape_cast %7 : vector<64x128xf32> to vector<1x64x128xf32>
    %c0_7 = arith.constant 0 : index
    %c0_8 = arith.constant 0 : index
    %c0_9 = arith.constant 0 : index
    %9 = vector.load %arg4[%c0_7, %c0_8, %c0_9] : memref<1x64x128xf32, #tpu.memory_space<vmem>>, vector<1x64x128xf32>
    tpu.vector_store %arg4[%c0_7, %c0_8, %c0_9], %8 {strides = array<i32>} : memref<1x64x128xf32, #tpu.memory_space<vmem>>, vector<1x64x128xf32>,
    %cst_10 = arith.constant dense<0.000000e+00> : vector<128xf32>
    %10 = vector.multi_reduction <add>, %7, %cst_10 [0] : vector<64x128xf32> to vector<128xf32>
    %11 = vector.shape_cast %10 : vector<128xf32> to vector<1x128xf32>
    %12 = vector.shape_cast %11 : vector<1x128xf32> to vector<1x1x128xf32>
    %c0_11 = arith.constant 0 : index
    %c0_12 = arith.constant 0 : index
    %c0_13 = arith.constant 0 : index
    %13 = vector.load %arg5[%c0_11, %c0_12, %c0_13] : memref<1x1x128xf32, #tpu.memory_space<vmem>>, vector<1x1x128xf32>
    tpu.vector_store %arg5[%c0_11, %c0_12, %c0_13], %12 {strides = array<i32>} : memref<1x1x128xf32, #tpu.memory_space<vmem>>, vector<1x1x128xf32>,
    %14 = arith.mulf %7, %7 : vector<64x128xf32>
    %cst_14 = arith.constant dense<0.000000e+00> : vector<128xf32>
    %15 = vector.multi_reduction <add>, %14, %cst_14 [0] : vector<64x128xf32> to vector<128xf32>
    %16 = vector.shape_cast %15 : vector<128xf32> to vector<1x128xf32>
    %17 = vector.shape_cast %16 : vector<1x128xf32> to vector<1x1x128xf32>
    %c0_15 = arith.constant 0 : index
    %c0_16 = arith.constant 0 : index
    %c0_17 = arith.constant 0 : index
    %18 = vector.load %arg6[%c0_15, %c0_16, %c0_17] : memref<1x1x128xf32, #tpu.memory_space<vmem>>, vector<1x1x128xf32>
    tpu.vector_store %arg6[%c0_15, %c0_16, %c0_17], %17 {strides = array<i32>} : memref<1x1x128xf32, #tpu.memory_space<vmem>>, vector<1x1x128xf32>,
    return
  }
  func.func @transform_0(%arg0: i32, %arg1: i32) -> (i32, i32, i32, i32, i32) {
    %c0_i32 = arith.constant 0 : i32
    %c0_i32_0 = arith.constant 0 : i32
    %c0_i32_1 = arith.constant 0 : i32
    %c0_i32_2 = arith.constant 0 : i32
    %c0_i32_3 = arith.constant 0 : i32
    return %arg0, %c0_i32, %c0_i32_0, %c0_i32_1, %c0_i32_2 : i32, i32, i32, i32, i32
  }
  func.func @transform_1(%arg0: i32, %arg1: i32) -> (i32, i32, i32) {
    %c0_i32 = arith.constant 0 : i32
    %c0_i32_0 = arith.constant 0 : i32
    %c0_i32_1 = arith.constant 0 : i32
    return %c0_i32, %c0_i32_0, %arg1 : i32, i32, i32
  }
  func.func @transform_2(%arg0: i32, %arg1: i32) -> (i32, i32, i32) {
    %c0_i32 = arith.constant 0 : i32
    %c0_i32_0 = arith.constant 0 : i32
    return %arg0, %c0_i32, %arg1 : i32, i32, i32
  }
  func.func @transform_3(%arg0: i32, %arg1: i32) -> (i32, i32, i32) {
    %c0_i32 = arith.constant 0 : i32
    %c0_i32_0 = arith.constant 0 : i32
    return %arg0, %c0_i32, %arg1 : i32, i32, i32
  }
  func.func @transform_4(%arg0: i32, %arg1: i32) -> (i32, i32, i32) {
    %c0_i32 = arith.constant 0 : i32
    %c0_i32_0 = arith.constant 0 : i32
    return %arg0, %c0_i32, %arg1 : i32, i32, i32
  }
}

module attributes {stable_mosaic.version = 11 : i64} {
  func.func @_bn_add_bn_relu_kernel(%arg0: i32, %arg1: memref<128x128xf32, #tpu.memory_space<vmem>>, %arg2: memref<1x128xf32, #tpu.memory_space<vmem>>, %arg3: memref<1x128xf32, #tpu.memory_space<vmem>>, %arg4: memref<128x128xf32, #tpu.memory_space<vmem>>, %arg5: memref<1x128xf32, #tpu.memory_space<vmem>>, %arg6: memref<1x128xf32, #tpu.memory_space<vmem>>, %arg7: memref<128x128xf32, #tpu.memory_space<vmem>>) attributes {dimension_semantics = [#tpu.dimension_semantics<parallel>], iteration_bounds = array<i64: 1>, scalar_prefetch = 0 : i64, scratch_operands = 0 : i64, tpu.core_type = #tpu.core_type<tc>, window_params = [{transform_indices = @transform_0, window_bounds = array<i64: 128, 128>}, {pipeline_mode = #tpu.pipeline_mode<synchronous>, transform_indices = @transform_1, window_bounds = array<i64: 1, 128>}, {pipeline_mode = #tpu.pipeline_mode<synchronous>, transform_indices = @transform_2, window_bounds = array<i64: 1, 128>}, {transform_indices = @transform_3, window_bounds = array<i64: 128, 128>}, {pipeline_mode = #tpu.pipeline_mode<synchronous>, transform_indices = @transform_4, window_bounds = array<i64: 1, 128>}, {pipeline_mode = #tpu.pipeline_mode<synchronous>, transform_indices = @transform_5, window_bounds = array<i64: 1, 128>}, {transform_indices = @transform_6, window_bounds = array<i64: 128, 128>}]} {
    %c0 = arith.constant 0 : index
    %c0_0 = arith.constant 0 : index
    %0 = vector.load %arg1[%c0, %c0_0] : memref<128x128xf32, #tpu.memory_space<vmem>>, vector<128x128xf32>
    %c0_1 = arith.constant 0 : index
    %c0_2 = arith.constant 0 : index
    %1 = vector.load %arg2[%c0_1, %c0_2] : memref<1x128xf32, #tpu.memory_space<vmem>>, vector<1x128xf32>
    %2 = vector.broadcast %1 : vector<1x128xf32> to vector<128x128xf32>
    %3 = arith.mulf %0, %2 : vector<128x128xf32>
    %c0_3 = arith.constant 0 : index
    %c0_4 = arith.constant 0 : index
    %4 = vector.load %arg3[%c0_3, %c0_4] : memref<1x128xf32, #tpu.memory_space<vmem>>, vector<1x128xf32>
    %5 = vector.broadcast %4 : vector<1x128xf32> to vector<128x128xf32>
    %6 = arith.addf %3, %5 : vector<128x128xf32>
    %c0_5 = arith.constant 0 : index
    %c0_6 = arith.constant 0 : index
    %7 = vector.load %arg4[%c0_5, %c0_6] : memref<128x128xf32, #tpu.memory_space<vmem>>, vector<128x128xf32>
    %c0_7 = arith.constant 0 : index
    %c0_8 = arith.constant 0 : index
    %8 = vector.load %arg5[%c0_7, %c0_8] : memref<1x128xf32, #tpu.memory_space<vmem>>, vector<1x128xf32>
    %9 = vector.broadcast %8 : vector<1x128xf32> to vector<128x128xf32>
    %10 = arith.mulf %7, %9 : vector<128x128xf32>
    %11 = arith.addf %6, %10 : vector<128x128xf32>
    %c0_9 = arith.constant 0 : index
    %c0_10 = arith.constant 0 : index
    %12 = vector.load %arg6[%c0_9, %c0_10] : memref<1x128xf32, #tpu.memory_space<vmem>>, vector<1x128xf32>
    %13 = vector.broadcast %12 : vector<1x128xf32> to vector<128x128xf32>
    %14 = arith.addf %11, %13 : vector<128x128xf32>
    %cst = arith.constant 0.000000e+00 : f32
    %15 = vector.broadcast %cst : f32 to vector<128x128xf32>
    %16 = arith.maximumf %14, %15 : vector<128x128xf32>
    %c0_11 = arith.constant 0 : index
    %c0_12 = arith.constant 0 : index
    %17 = vector.load %arg7[%c0_11, %c0_12] : memref<128x128xf32, #tpu.memory_space<vmem>>, vector<128x128xf32>
    tpu.vector_store %arg7[%c0_11, %c0_12], %16 {strides = array<i32>} : memref<128x128xf32, #tpu.memory_space<vmem>>, vector<128x128xf32>,
    return
  }
  func.func @transform_0(%arg0: i32) -> (i32, i32) {
    %c0_i32 = arith.constant 0 : i32
    %c0_i32_0 = arith.constant 0 : i32
    return %arg0, %c0_i32 : i32, i32
  }
  func.func @transform_1(%arg0: i32) -> (i32, i32) {
    %c0_i32 = arith.constant 0 : i32
    %c0_i32_0 = arith.constant 0 : i32
    %c0_i32_1 = arith.constant 0 : i32
    return %c0_i32, %c0_i32_0 : i32, i32
  }
  func.func @transform_2(%arg0: i32) -> (i32, i32) {
    %c0_i32 = arith.constant 0 : i32
    %c0_i32_0 = arith.constant 0 : i32
    %c0_i32_1 = arith.constant 0 : i32
    return %c0_i32, %c0_i32_0 : i32, i32
  }
  func.func @transform_3(%arg0: i32) -> (i32, i32) {
    %c0_i32 = arith.constant 0 : i32
    %c0_i32_0 = arith.constant 0 : i32
    return %arg0, %c0_i32 : i32, i32
  }
  func.func @transform_4(%arg0: i32) -> (i32, i32) {
    %c0_i32 = arith.constant 0 : i32
    %c0_i32_0 = arith.constant 0 : i32
    %c0_i32_1 = arith.constant 0 : i32
    return %c0_i32, %c0_i32_0 : i32, i32
  }
  func.func @transform_5(%arg0: i32) -> (i32, i32) {
    %c0_i32 = arith.constant 0 : i32
    %c0_i32_0 = arith.constant 0 : i32
    %c0_i32_1 = arith.constant 0 : i32
    return %c0_i32, %c0_i32_0 : i32, i32
  }
  func.func @transform_6(%arg0: i32) -> (i32, i32) {
    %c0_i32 = arith.constant 0 : i32
    %c0_i32_0 = arith.constant 0 : i32
    return %arg0, %c0_i32 : i32, i32
  }
}

</mosaic_0001>

<llo_original>
// kernel: basic_block_forward.6
$region0: #{basic_block_forward.6}
  #allocation0 [shape = 'u32[]', space=smem, size = 0x4, offset = 0x4, fixed_abs, tag = 'smem constant byte address 0x4 - core index']
  #allocation1 [shape = 'u32[144,128]{1,0:T(1,128)}', space=vmem, size = 0x12000, scoped, tag = 'internal scratch']
  %s0 = inlined_call_operand.vmem [shape: f32[128,128], index: 0, kind: input, shape index: {}]
  %s1 = inlined_call_operand.vmem [shape: f32[1,128], index: 1, kind: input, shape index: {}]
  %s2 = inlined_call_operand.vmem [shape: f32[1,128], index: 2, kind: input, shape index: {}]
  %s3 = inlined_call_operand.vmem [shape: bf16[128,128], index: 3, kind: output, shape index: {}]
  %s4 = sld [smem:[#allocation0]]
  $region22: #{basic_block_forward.6} parent=0
    _
  %s6 = ssub.s32 1, %s4
  %s7 = scalar_select 0, %s6, %s4
  // Predicated region
  $region2: #{basic_block_forward.6} parent=0 // pred_check
    _
  $region3: #{basic_block_forward.6} parent=0 // pred_check_branch
    %9 = sbr.rel (0) target = $region5
  $region4: #{basic_block_forward.6} parent=0 // pred_region
    _
  $region5: #{basic_block_forward.6} parent=0 // pred_fallthru
    _
  // Predicated region
  $region6: #{basic_block_forward.6} parent=0 // pred_check
    _
  $region7: #{basic_block_forward.6} parent=0 // pred_check_branch
    %11 = sbr.rel (0) target = $region9
  $region8: #{basic_block_forward.6} parent=0 // pred_region
    _
  $region9: #{basic_block_forward.6} parent=0 // pred_fallthru
    _
  // Predicated region
  $region10: #{basic_block_forward.6} parent=0 // pred_check
    _
  $region11: #{basic_block_forward.6} parent=0 // pred_check_branch
    %13 = sbr.rel (0) target = $region13
  $region12: #{basic_block_forward.6} parent=0 // pred_region
    _
  $region13: #{basic_block_forward.6} parent=0 // pred_fallthru
    _
  %v14 = vld [vmem:[%s0] sm:$0xff]
  %v15 = vld [vmem:[%s0 + $0x8] sm:$0xff]
  %v16 = vld [vmem:[%s0 + $0x10] sm:$0xff]
  %v17 = vld [vmem:[%s0 + $0x18] sm:$0xff]
  %v18 = vld [vmem:[%s0 + $0x20] sm:$0xff]
  %v19 = vld [vmem:[%s0 + $0x28] sm:$0xff]
  %v20 = vld [vmem:[%s0 + $0x30] sm:$0xff]
  %v21 = vld [vmem:[%s0 + $0x38] sm:$0xff]
  %v22 = vld [vmem:[%s0 + $0x40] sm:$0xff]
  %v23 = vld [vmem:[%s0 + $0x48] sm:$0xff]
  %v24 = vld [vmem:[%s0 + $0x50] sm:$0xff]
  %v25 = vld [vmem:[%s0 + $0x58] sm:$0xff]
  %v26 = vld [vmem:[%s0 + $0x60] sm:$0xff]
  %v27 = vld [vmem:[%s0 + $0x68] sm:$0xff]
  %v28 = vld [vmem:[%s0 + $0x70] sm:$0xff]
  %v29 = vld [vmem:[%s0 + $0x78] sm:$0xff]
  %v30 = vld [vmem:[%s1] sm:$0x1]
  %v32 = vlaneseq
  %v33 = vshrl.u32 %v32, 7
  %v34 = vsub.s32 0, %v33
  %v35 = vrot.slane %v30, %v34
  %v37 = vmul.f32 %v14, %v35
  %v38 = vmul.f32 %v15, %v35
  %v39 = vmul.f32 %v16, %v35
  %v40 = vmul.f32 %v17, %v35
  %v41 = vmul.f32 %v18, %v35
  %v42 = vmul.f32 %v19, %v35
  %v43 = vmul.f32 %v20, %v35
  %v44 = vmul.f32 %v21, %v35
  %v45 = vmul.f32 %v22, %v35
  %v46 = vmul.f32 %v23, %v35
  %v47 = vmul.f32 %v24, %v35
  %v48 = vmul.f32 %v25, %v35
  %v49 = vmul.f32 %v26, %v35
  %v50 = vmul.f32 %v27, %v35
  %v51 = vmul.f32 %v28, %v35
  %v52 = vmul.f32 %v29, %v35
  %v53 = vld [vmem:[%s2] sm:$0x1]
  %v55 = vlaneseq
  %v56 = vshrl.u32 %v55, 7
  %v57 = vsub.s32 0, %v56
  %v58 = vrot.slane %v53, %v57
  %v60 = vadd.f32 %v37, %v58
  %v61 = vadd.f32 %v38, %v58
  %v62 = vadd.f32 %v39, %v58
  %v63 = vadd.f32 %v40, %v58
  %v64 = vadd.f32 %v41, %v58
  %v65 = vadd.f32 %v42, %v58
  %v66 = vadd.f32 %v43, %v58
  %v67 = vadd.f32 %v44, %v58
  %v68 = vadd.f32 %v45, %v58
  %v69 = vadd.f32 %v46, %v58
  %v70 = vadd.f32 %v47, %v58
  %v71 = vadd.f32 %v48, %v58
  %v72 = vadd.f32 %v49, %v58
  %v73 = vadd.f32 %v50, %v58
  %v74 = vadd.f32 %v51, %v58
  %v75 = vadd.f32 %v52, %v58
  %v76 = vmax.f32 %v60, 0.0
  %v77 = vmax.f32 %v61, 0.0
  %v78 = vmax.f32 %v62, 0.0
  %v79 = vmax.f32 %v63, 0.0
  %v80 = vmax.f32 %v64, 0.0
  %v81 = vmax.f32 %v65, 0.0
  %v82 = vmax.f32 %v66, 0.0
  %v83 = vmax.f32 %v67, 0.0
  %v84 = vmax.f32 %v68, 0.0
  %v85 = vmax.f32 %v69, 0.0
  %v86 = vmax.f32 %v70, 0.0
  %v87 = vmax.f32 %v71, 0.0
  %v88 = vmax.f32 %v72, 0.0
  %v89 = vmax.f32 %v73, 0.0
  %v90 = vmax.f32 %v74, 0.0
  %v91 = vmax.f32 %v75, 0.0
  %v92 = vpack.c.bf16 %v77, %v76
  %v93 = vpack.c.bf16 %v79, %v78
  %v94 = vpack.c.bf16 %v81, %v80
  %v95 = vpack.c.bf16 %v83, %v82
  %v96 = vpack.c.bf16 %v85, %v84
  %v97 = vpack.c.bf16 %v87, %v86
  %v98 = vpack.c.bf16 %v89, %v88
  %v99 = vpack.c.bf16 %v91, %v90
  %v108 = vunpack.c.l.b16 %v92
  %v109 = vunpack.c.h.b16 %v92
  %v110 = vunpack.c.l.b16 %v93
  %v111 = vunpack.c.h.b16 %v93
  %v112 = vunpack.c.l.b16 %v94
  %v113 = vunpack.c.h.b16 %v94
  %v114 = vunpack.c.l.b16 %v95
  %v115 = vunpack.c.h.b16 %v95
  %v116 = vunpack.c.l.b16 %v96
  %v117 = vunpack.c.h.b16 %v96
  %v118 = vunpack.c.l.b16 %v97
  %v119 = vunpack.c.h.b16 %v97
  %v120 = vunpack.c.l.b16 %v98
  %v121 = vunpack.c.h.b16 %v98
  %v122 = vunpack.c.l.b16 %v99
  %v123 = vunpack.c.h.b16 %v99
  %v124 = vpack.c.b16 %v108, %v108
  %v125 = vpack.c.b16 %v109, %v109
  %v126 = vpack.c.b16 %v110, %v110
  %v127 = vpack.c.b16 %v111, %v111
  %v128 = vpack.c.b16 %v112, %v112
  %v129 = vpack.c.b16 %v113, %v113
  %v130 = vpack.c.b16 %v114, %v114
  %v131 = vpack.c.b16 %v115, %v115
  %v132 = vpack.c.b16 %v116, %v116
  %v133 = vpack.c.b16 %v117, %v117
  %v134 = vpack.c.b16 %v118, %v118
  %v135 = vpack.c.b16 %v119, %v119
  %v136 = vpack.c.b16 %v120, %v120
  %v137 = vpack.c.b16 %v121, %v121
  %v138 = vpack.c.b16 %v122, %v122
  %v139 = vpack.c.b16 %v123, %v123
  %156 = vst [vmem:[%s3] sm:$0xf] %v124
  %157 = vst [vmem:[%s3 + $0x4] sm:$0xf] %v125
  %158 = vst [vmem:[%s3 + $0x8] sm:$0xf] %v126
  %159 = vst [vmem:[%s3 + $0xc] sm:$0xf] %v127
  %160 = vst [vmem:[%s3 + $0x10] sm:$0xf] %v128
  %161 = vst [vmem:[%s3 + $0x14] sm:$0xf] %v129
  %162 = vst [vmem:[%s3 + $0x18] sm:$0xf] %v130
  %163 = vst [vmem:[%s3 + $0x1c] sm:$0xf] %v131
  %164 = vst [vmem:[%s3 + $0x20] sm:$0xf] %v132
  %165 = vst [vmem:[%s3 + $0x24] sm:$0xf] %v133
  %166 = vst [vmem:[%s3 + $0x28] sm:$0xf] %v134
  %167 = vst [vmem:[%s3 + $0x2c] sm:$0xf] %v135
  %168 = vst [vmem:[%s3 + $0x30] sm:$0xf] %v136
  %169 = vst [vmem:[%s3 + $0x34] sm:$0xf] %v137
  %170 = vst [vmem:[%s3 + $0x38] sm:$0xf] %v138
  %171 = vst [vmem:[%s3 + $0x3c] sm:$0xf] %v139
  // Predicated region
  $region14: #{basic_block_forward.6} parent=0 // pred_check
    _
  $region15: #{basic_block_forward.6} parent=0 // pred_check_branch
    %173 = sbr.rel (0) target = $region17
  $region16: #{basic_block_forward.6} parent=0 // pred_region
    _
  $region17: #{basic_block_forward.6} parent=0 // pred_fallthru
    _
  // Predicated region
  $region18: #{basic_block_forward.6} parent=0 // pred_check
    _
  $region19: #{basic_block_forward.6} parent=0 // pred_check_branch
    %175 = sbr.rel (0) target = $region21
  $region20: #{basic_block_forward.6} parent=0 // pred_region
    _
  $region21: #{basic_block_forward.6} parent=0 // pred_fallthru
    _

// kernel: basic_block_forward.8
$region0: #{basic_block_forward.8}
  #allocation0 [shape = 'u32[]', space=smem, size = 0x4, offset = 0x4, fixed_abs, tag = 'smem constant byte address 0x4 - core index']
  #allocation1 [shape = 'u32[144,128]{1,0:T(1,128)}', space=vmem, size = 0x12000, scoped, tag = 'internal scratch']
  %s0 = inlined_call_operand.vmem [shape: bf16[2,1,8,8,128], index: 0, kind: input, shape index: {}]
  %s1 = inlined_call_operand.vmem [shape: bf16[1,128,128], index: 1, kind: input, shape index: {}]
  %s2 = inlined_call_operand.vmem [shape: f32[2,64,128], index: 2, kind: output, shape index: {0}]
  %s3 = inlined_call_operand.vmem [shape: f32[2,1,128], index: 3, kind: output, shape index: {1}]
  %s4 = inlined_call_operand.vmem [shape: f32[2,1,128], index: 4, kind: output, shape index: {2}]
  %5 = xla_tuple %s2, %s3, %s4
  %s6 = sld [smem:[#allocation0]]
  $region57: #{basic_block_forward.8} parent=0
    _
  %s8 = ssub.s32 1, %s6
  %s9 = scalar_select 0, %s8, %s6
  loop: start=0, step=1, limit=4
  $region2: #{basic_block_forward.8} parent=0 // loop_pre_header
    _
  $region3: #{basic_block_forward.8} parent=0 // loop_header
    %s11 = sphi 0, %s15
    %p12 = scmp.ge.s32.totalorder %s11, 4
    %s18 = sphi 0, %s30
    %s19 = sphi 0, %s26
    %s20 = sphi 0, %s18
    %s21 = sphi 0, %s19
    %s22 = sphi 0, %s20
    %s23 = sphi 0, %s21
    %s33 = sphi 0, %s35
    %s36 = sphi 0, %s33
    %s37 = sphi 0, %s36
    %s53 = sphi 0, %s37
    %s59 = sphi 0, %s61
    %s62 = sphi 0, %s59
    %s63 = sphi 0, %s62
    %s79 = sphi 0, %s63
    %s87 = sphi 0, %s89
    %s90 = sphi 0, %s87
    %s91 = sphi 0, %s90
    %s107 = sphi 0, %s91
    %s115 = sphi 0, %s117
    %s118 = sphi 0, %s115
    %s119 = sphi 0, %s118
    %s135 = sphi 0, %s119
    %s143 = sphi 0, %s145
    %s146 = sphi 0, %s143
    %s147 = sphi 0, %s146
    %s163 = sphi 0, %s147
  $region4: #{basic_block_forward.8} parent=0 // loop_header_branch
    %14 = sbr.rel (%p12) target = $region8
  $region5: #{basic_block_forward.8} parent=0 // loop_body
    %s16 = ssub.s32 %s11, 1
    %s17 = ssub.s32 %s11, 2
    %s24 = sadd.s32 1, %s19
    %p25 = scmp.ge.s32.totalorder %s24, 1
    %s26 = scalar_select %p25, 0, %s24
    %s27 = sadd.s32 1, %s18
    %s28 = scalar_select %p25, %s27, %s18
    %p29 = scmp.ge.s32.totalorder %s28, 2
    %s30 = scalar_select %p29, 0, %s28
    %s31 = ssub.s32 %s18, %s30
    %p32 = scmp.eq.s32.totalorder %s31, 0
    %s34 = sadd.s32 %s33, 1
    %s35 = scalar_select %p32, %s33, %s34
    %p38 = pneg %p32
    %p39 = scmp.eq.s32.totalorder %s11, 1
    %p40 = por %p38, %p39
    %p41 = scmp.ne.s32.totalorder %s33, %s36
    %p42 = scmp.eq.s32.totalorder %s11, 0
    %p43 = por %p41, %p42
    %p44 = scmp.ne.s32.totalorder %s33, %s36
    %p45 = scmp.eq.s32.totalorder %s16, 1
    %p46 = por %p44, %p45
    %p47 = scmp.ne.s32.totalorder %s36, %s37
    %p48 = scmp.eq.s32.totalorder %s16, 0
    %p49 = por %p47, %p48
    %p50 = scmp.ne.s32.totalorder %s36, %s37
    %p51 = scmp.eq.s32.totalorder %s17, 1
    %p52 = por %p50, %p51
    %p54 = scmp.ne.s32.totalorder %s37, %s53
    %p55 = scmp.eq.s32.totalorder %s17, 0
    %p56 = por %p54, %p55
    %s57 = ssub.s32 %s19, %s26
    %p58 = scmp.eq.s32.totalorder %s57, 0
    %s60 = sadd.s32 %s59, 1
    %s61 = scalar_select %p58, %s59, %s60
    %p64 = pneg %p58
    %p65 = scmp.eq.s32.totalorder %s11, 1
    %p66 = por %p64, %p65
    %p67 = scmp.ne.s32.totalorder %s59, %s62
    %p68 = scmp.eq.s32.totalorder %s11, 0
    %p69 = por %p67, %p68
    %p70 = scmp.ne.s32.totalorder %s59, %s62
    %p71 = scmp.eq.s32.totalorder %s16, 1
    %p72 = por %p70, %p71
    %p73 = scmp.ne.s32.totalorder %s62, %s63
    %p74 = scmp.eq.s32.totalorder %s16, 0
    %p75 = por %p73, %p74
    %p76 = scmp.ne.s32.totalorder %s62, %s63
    %p77 = scmp.eq.s32.totalorder %s17, 1
    %p78 = por %p76, %p77
    %p80 = scmp.ne.s32.totalorder %s63, %s79
    %p81 = scmp.eq.s32.totalorder %s17, 0
    %p82 = por %p80, %p81
    %s83 = ssub.s32 %s18, %s30
    %s84 = ssub.s32 %s19, %s26
    %s85 = sor.u32 %s83, %s84
    %p86 = scmp.eq.s32.totalorder %s85, 0
    %s88 = sadd.s32 %s87, 1
    %s89 = scalar_select %p86, %s87, %s88
    %p92 = pneg %p86
    %p93 = scmp.eq.s32.totalorder %s11, 1
    %p94 = por %p92, %p93
    %p95 = scmp.ne.s32.totalorder %s87, %s90
    %p96 = scmp.eq.s32.totalorder %s11, 0
    %p97 = por %p95, %p96
    %p98 = scmp.ne.s32.totalorder %s87, %s90
    %p99 = scmp.eq.s32.totalorder %s16, 1
    %p100 = por %p98, %p99
    %p101 = scmp.ne.s32.totalorder %s90, %s91
    %p102 = scmp.eq.s32.totalorder %s16, 0
    %p103 = por %p101, %p102
    %p104 = scmp.ne.s32.totalorder %s90, %s91
    %p105 = scmp.eq.s32.totalorder %s17, 1
    %p106 = por %p104, %p105
    %p108 = scmp.ne.s32.totalorder %s91, %s107
    %p109 = scmp.eq.s32.totalorder %s17, 0
    %p110 = por %p108, %p109
    %s111 = ssub.s32 %s18, %s30
    %s112 = ssub.s32 %s19, %s26
    %s113 = sor.u32 %s111, %s112
    %p114 = scmp.eq.s32.totalorder %s113, 0
    %s116 = sadd.s32 %s115, 1
    %s117 = scalar_select %p114, %s115, %s116
    %p120 = pneg %p114
    %p121 = scmp.eq.s32.totalorder %s11, 1
    %p122 = por %p120, %p121
    %p123 = scmp.ne.s32.totalorder %s115, %s118
    %p124 = scmp.eq.s32.totalorder %s11, 0
    %p125 = por %p123, %p124
    %p126 = scmp.ne.s32.totalorder %s115, %s118
    %p127 = scmp.eq.s32.totalorder %s16, 1
    %p128 = por %p126, %p127
    %p129 = scmp.ne.s32.totalorder %s118, %s119
    %p130 = scmp.eq.s32.totalorder %s16, 0
    %p131 = por %p129, %p130
    %p132 = scmp.ne.s32.totalorder %s118, %s119
    %p133 = scmp.eq.s32.totalorder %s17, 1
    %p134 = por %p132, %p133
    %p136 = scmp.ne.s32.totalorder %s119, %s135
    %p137 = scmp.eq.s32.totalorder %s17, 0
    %p138 = por %p136, %p137
    %s139 = ssub.s32 %s18, %s30
    %s140 = ssub.s32 %s19, %s26
    %s141 = sor.u32 %s139, %s140
    %p142 = scmp.eq.s32.totalorder %s141, 0
    %s144 = sadd.s32 %s143, 1
    %s145 = scalar_select %p142, %s143, %s144
    %p148 = pneg %p142
    %p149 = scmp.eq.s32.totalorder %s11, 1
    %p150 = por %p148, %p149
    %p151 = scmp.ne.s32.totalorder %s143, %s146
    %p152 = scmp.eq.s32.totalorder %s11, 0
    %p153 = por %p151, %p152
    %p154 = scmp.ne.s32.totalorder %s143, %s146
    %p155 = scmp.eq.s32.totalorder %s16, 1
    %p156 = por %p154, %p155
    %p157 = scmp.ne.s32.totalorder %s146, %s147
    %p158 = scmp.eq.s32.totalorder %s16, 0
    %p159 = por %p157, %p158
    %p160 = scmp.ne.s32.totalorder %s146, %s147
    %p161 = scmp.eq.s32.totalorder %s17, 1
    %p162 = por %p160, %p161
    %p164 = scmp.ne.s32.totalorder %s147, %s163
    %p165 = scmp.eq.s32.totalorder %s17, 0
    %p166 = por %p164, %p165
    %p167 = scmp.le.s32.totalorder 1, %s11
    %p168 = scmp.lt.s32.totalorder %s11, 3
    %p169 = pnand %p167, %p168
    %p170 = pneg %p169
    // Predicated region
    $region9: #{basic_block_forward.8} parent=5 // pred_check
      _
    $region10: #{basic_block_forward.8} parent=5 // pred_check_branch
      %172 = sbr.rel (%p169) target = $region12
    $region11: #{basic_block_forward.8} parent=5 // pred_region
      %s173 = ssub.s32 %s11, 1
      // Predicated region
      $region13: #{basic_block_forward.8} parent=11 // pred_check
        %p174 = pneg %p75
      $region14: #{basic_block_forward.8} parent=11 // pred_check_branch
        %176 = sbr.rel (%p174) target = $region16
      $region15: #{basic_block_forward.8} parent=11 // pred_region
        %p177 = scmp.lt.s32.totalorder %s21, 0
        %s178 = scalar_select %p177, %s21, 0
        %s179 = smul.addr %s178, 4
        %s180 = scalar_lea.vmem %s1, %s179
      $region16: #{basic_block_forward.8} parent=11 // pred_fallthru
        _
    $region12: #{basic_block_forward.8} parent=5 // pred_fallthru
      _
    %p181 = scmp.lt.s32.totalorder %s11, 2
    // Predicated region
    $region17: #{basic_block_forward.8} parent=5 // pred_check
      %p182 = pneg %p181
    $region18: #{basic_block_forward.8} parent=5 // pred_check_branch
      %184 = sbr.rel (%p182) target = $region20
    $region19: #{basic_block_forward.8} parent=5 // pred_region
      // Predicated region
      $region21: #{basic_block_forward.8} parent=19 // pred_check
        %p185 = pneg %p43
      $region22: #{basic_block_forward.8} parent=19 // pred_check_branch
        %187 = sbr.rel (%p185) target = $region24
      $region23: #{basic_block_forward.8} parent=19 // pred_region
        %p188 = scmp.lt.s32.totalorder %s18, 1
        %s189 = scalar_select %p188, %s18, 1
        %s190 = smul.addr %s189, 8
        %s191 = smul.addr %s190, 4
        %s192 = scalar_lea.vmem %s0, %s191
      $region24: #{basic_block_forward.8} parent=19 // pred_fallthru
        _
    $region20: #{basic_block_forward.8} parent=5 // pred_fallthru
      _
    %p193 = scmp.le.s32.totalorder 1, %s11
    %p194 = scmp.lt.s32.totalorder %s11, 3
    %p195 = pnand %p193, %p194
    %p196 = pneg %p195
    // Predicated region
    $region25: #{basic_block_forward.8} parent=5 // pred_check
      _
    $region26: #{basic_block_forward.8} parent=5 // pred_check_branch
      %198 = sbr.rel (%p195) target = $region28
    $region27: #{basic_block_forward.8} parent=5 // pred_region
      %s199 = ssub.s32 %s11, 1
      %p200 = scmp.lt.s32.totalorder %s20, 1
      %s201 = scalar_select %p200, %s20, 1
      %s202 = smul.addr %s201, 8
      %s203 = smul.addr %s202, 4
      %s204 = scalar_lea.vmem %s0, %s203
      %p205 = pneg %p49
      %p206 = pneg %p46
      %p207 = scmp.lt.s32.totalorder %s21, 0
      %s208 = scalar_select %p207, %s21, 0
      %s209 = smul.addr %s208, 4
      %s210 = scalar_lea.vmem %s1, %s209
      %p211 = pneg %p75
      %p212 = pneg %p72
      %p213 = pneg %p103
      %p214 = pneg %p100
      %p215 = scmp.lt.s32.totalorder %s20, 1
      %s216 = scalar_select %p215, %s20, 1
      %p217 = scmp.lt.s32.totalorder %s21, 0
      %s218 = scalar_select %p217, %s21, 0
      %s219 = smul.addr %s216, 8
      %s220 = sadd.s32 %s218, %s219
      %s221 = smul.addr %s220, 8
      %s222 = scalar_lea.vmem %s2, %s221
      %p223 = pneg %p131
      %p224 = pneg %p128
      %p225 = scmp.lt.s32.totalorder %s20, 1
      %s226 = scalar_select %p225, %s20, 1
      %p227 = scmp.lt.s32.totalorder %s21, 0
      %s228 = scalar_select %p227, %s21, 0
      %s229 = sadd.s32 %s228, %s226
      %s230 = scalar_lea.vmem %s3, %s229
      %p231 = pneg %p159
      %p232 = pneg %p156
      %p233 = scmp.lt.s32.totalorder %s20, 1
      %s234 = scalar_select %p233, %s20, 1
      %p235 = scmp.lt.s32.totalorder %s21, 0
      %s236 = scalar_select %p235, %s21, 0
      %s237 = sadd.s32 %s236, %s234
      %s238 = scalar_lea.vmem %s4, %s237
      %p239 = scmp.lt.s32.totalorder %s20, 1
      %s240 = scalar_select %p239, %s20, 1
      %s241 = smul.addr %s240, 8
      %s242 = smul.addr %s241, 4
      %s243 = scalar_lea.vmem %s0, %s242
      %p244 = scmp.lt.s32.totalorder %s21, 0
      %s245 = scalar_select %p244, %s21, 0
      %s246 = smul.addr %s245, 4
      %s247 = scalar_lea.vmem %s1, %s246
      %p248 = scmp.lt.s32.totalorder %s20, 1
      %s249 = scalar_select %p248, %s20, 1
      %p250 = scmp.lt.s32.totalorder %s21, 0
      %s251 = scalar_select %p250, %s21, 0
      %s252 = smul.addr %s249, 8
      %s253 = sadd.s32 %s251, %s252
      %s254 = smul.addr %s253, 8
      %s255 = scalar_lea.vmem %s2, %s254
      %p256 = scmp.lt.s32.totalorder %s20, 1
      %s257 = scalar_select %p256, %s20, 1
      %p258 = scmp.lt.s32.totalorder %s21, 0
      %s259 = scalar_select %p258, %s21, 0
      %s260 = sadd.s32 %s259, %s257
      %s261 = scalar_lea.vmem %s3, %s260
      %p262 = scmp.lt.s32.totalorder %s20, 1
      %s263 = scalar_select %p262, %s20, 1
      %p264 = scmp.lt.s32.totalorder %s21, 0
      %s265 = scalar_select %p264, %s21, 0
      %s266 = sadd.s32 %s265, %s263
      %s267 = scalar_lea.vmem %s4, %s266
      %v269 = vld [vmem:[%s243] sm:$0xf]
      %v270 = vld [vmem:[%s243 + $0x4] sm:$0xf]
      %v271 = vld [vmem:[%s243 + $0x8] sm:$0xf]
      %v272 = vld [vmem:[%s243 + $0xc] sm:$0xf]
      %v273 = vld [vmem:[%s243 + $0x10] sm:$0xf]
      %v274 = vld [vmem:[%s243 + $0x14] sm:$0xf]
      %v275 = vld [vmem:[%s243 + $0x18] sm:$0xf]
      %v276 = vld [vmem:[%s243 + $0x1c] sm:$0xf]
      %v277 = vunpack.c.l.bf16 %v269
      %v278 = vunpack.c.l.bf16 %v270
      %v279 = vunpack.c.l.bf16 %v271
      %v280 = vunpack.c.l.bf16 %v272
      %v281 = vunpack.c.l.bf16 %v273
      %v282 = vunpack.c.l.bf16 %v274
      %v283 = vunpack.c.l.bf16 %v275
      %v284 = vunpack.c.l.bf16 %v276
      %v285 = vpack.c.bf16 %v278, %v277
      %v286 = vpack.c.bf16 %v280, %v279
      %v287 = vpack.c.bf16 %v282, %v281
      %v288 = vpack.c.bf16 %v284, %v283
      %v289 = vld [vmem:[%s247] sm:$0xf]
      %v290 = vld [vmem:[%s247 + $0x4] sm:$0xf]
      %v291 = vld [vmem:[%s247 + $0x8] sm:$0xf]
      %v292 = vld [vmem:[%s247 + $0xc] sm:$0xf]
      %v293 = vld [vmem:[%s247 + $0x10] sm:$0xf]
      %v294 = vld [vmem:[%s247 + $0x14] sm:$0xf]
      %v295 = vld [vmem:[%s247 + $0x18] sm:$0xf]
      %v296 = vld [vmem:[%s247 + $0x1c] sm:$0xf]
      %v297 = vld [vmem:[%s247 + $0x20] sm:$0xf]
      %v298 = vld [vmem:[%s247 + $0x24] sm:$0xf]
      %v299 = vld [vmem:[%s247 + $0x28] sm:$0xf]
      %v300 = vld [vmem:[%s247 + $0x2c] sm:$0xf]
      %v301 = vld [vmem:[%s247 + $0x30] sm:$0xf]
      %v302 = vld [vmem:[%s247 + $0x34] sm:$0xf]
      %v303 = vld [vmem:[%s247 + $0x38] sm:$0xf]
      %v304 = vld [vmem:[%s247 + $0x3c] sm:$0xf]
      %v321 = vunpack.c.l.b16 %v289
      %v322 = vunpack.c.l.b16 %v290
      %v323 = vunpack.c.l.b16 %v291
      %v324 = vunpack.c.l.b16 %v292
      %v325 = vunpack.c.l.b16 %v293
      %v326 = vunpack.c.l.b16 %v294
      %v327 = vunpack.c.l.b16 %v295
      %v328 = vunpack.c.l.b16 %v296
      %v329 = vunpack.c.l.b16 %v297
      %v330 = vunpack.c.l.b16 %v298
      %v331 = vunpack.c.l.b16 %v299
      %v332 = vunpack.c.l.b16 %v300
      %v333 = vunpack.c.l.b16 %v301
      %v334 = vunpack.c.l.b16 %v302
      %v335 = vunpack.c.l.b16 %v303
      %v336 = vunpack.c.l.b16 %v304
      %v337 = vpack.c.b16 %v322, %v321
      %v338 = vpack.c.b16 %v324, %v323
      %v339 = vpack.c.b16 %v326, %v325
      %v340 = vpack.c.b16 %v328, %v327
      %v341 = vpack.c.b16 %v330, %v329
      %v342 = vpack.c.b16 %v332, %v331
      %v343 = vpack.c.b16 %v334, %v333
      %v344 = vpack.c.b16 %v336, %v335
      %353 = vmatprep.subr.bf16.mxu0 0
      %354 = vmatpush1.bf16.msra.mxu0 %v337
      %355 = vmatprep.subr.bf16.mxu0 0
      %356 = vmatpush1.bf16.msra.mxu0 %v338
      %357 = vmatprep.subr.bf16.mxu0 0
      %358 = vmatpush1.bf16.msra.mxu0 %v339
      %359 = vmatprep.subr.bf16.mxu0 0
      %360 = vmatpush1.bf16.msra.mxu0 %v340
      %361 = vmatprep.subr.bf16.mxu0 0
      %362 = vmatpush1.bf16.msra.mxu0 %v341
      %363 = vmatprep.subr.bf16.mxu0 0
      %364 = vmatpush1.bf16.msra.mxu0 %v342
      %365 = vmatprep.subr.bf16.mxu0 0
      %366 = vmatpush1.bf16.msra.mxu0 %v343
      %367 = vmatprep.subr.bf16.mxu0 0
      %368 = vmatpush1.bf16.msra.mxu0 %v344
      %369 = vmatprep.subr.bf16.mxu0 0
      %370 = vmatpush1.bf16.msra.mxu0 0
      %371 = vmatprep.subr.bf16.mxu0 0
      %372 = vmatpush1.bf16.msra.mxu0 0
      %373 = vmatprep.subr.bf16.mxu0 0
      %374 = vmatpush1.bf16.msra.mxu0 0
      %375 = vmatprep.subr.bf16.mxu0 0
      %376 = vmatpush1.bf16.msra.mxu0 0
      %377 = vmatprep.subr.bf16.mxu0 0
      %378 = vmatpush1.bf16.msra.mxu0 0
      %379 = vmatprep.subr.bf16.mxu0 0
      %380 = vmatpush1.bf16.msra.mxu0 0
      %381 = vmatprep.subr.bf16.mxu0 0
      %382 = vmatpush1.bf16.msra.mxu0 0
      %383 = vmatprep.subr.bf16.mxu0 0
      %384 = vmatpush1.bf16.msra.mxu0 0
      %385 = vmatprep.mubr.bf16.mxu0 0
      %386 = vmatmul.mubr.bf16.gmra.mrb[0].mxu0 %v285
      %v387 = vpop.f32.mrb[0].mxu0
      %v388 = vadd.f32 0.0, %v387
      %v389 = vpop.f32.mrb[0].mxu0
      %v390 = vpop.f32.mrb[0].mxu0
      %v391 = vadd.f32 0.0, %v390
      %v392 = vpop.f32.mrb[0].mxu0
      %393 = vmatprep.mubr.bf16.mxu0 0
      %394 = vmatmul.mubr.bf16.gmra.mrb[0].mxu0 %v286
      %v395 = vpop.f32.mrb[0].mxu0
      %v396 = vadd.f32 0.0, %v395
      %v397 = vpop.f32.mrb[0].mxu0
      %v398 = vpop.f32.mrb[0].mxu0
      %v399 = vadd.f32 0.0, %v398
      %v400 = vpop.f32.mrb[0].mxu0
      %401 = vmatprep.mubr.bf16.mxu0 0
      %402 = vmatmul.mubr.bf16.gmra.mrb[0].mxu0 %v287
      %v403 = vpop.f32.mrb[0].mxu0
      %v404 = vadd.f32 0.0, %v403
      %v405 = vpop.f32.mrb[0].mxu0
      %v406 = vpop.f32.mrb[0].mxu0
      %v407 = vadd.f32 0.0, %v406
      %v408 = vpop.f32.mrb[0].mxu0
      %409 = vmatprep.mubr.bf16.mxu0 0
      %410 = vmatmul.mubr.bf16.gmra.mrb[0].mxu0 %v288
      %v411 = vpop.f32.mrb[0].mxu0
      %v412 = vadd.f32 0.0, %v411
      %v413 = vpop.f32.mrb[0].mxu0
      %v414 = vpop.f32.mrb[0].mxu0
      %v415 = vadd.f32 0.0, %v414
      %v416 = vpop.f32.mrb[0].mxu0
      %417 = vdwg.mxu0
      %418 = vst [vmem:[%s255] sm:$0xff] %v388
      %419 = vst [vmem:[%s255 + $0x8] sm:$0xff] %v391
      %420 = vst [vmem:[%s255 + $0x10] sm:$0xff] %v396
      %421 = vst [vmem:[%s255 + $0x18] sm:$0xff] %v399
      %422 = vst [vmem:[%s255 + $0x20] sm:$0xff] %v404
      %423 = vst [vmem:[%s255 + $0x28] sm:$0xff] %v407
      %424 = vst [vmem:[%s255 + $0x30] sm:$0xff] %v412
      %425 = vst [vmem:[%s255 + $0x38] sm:$0xff] %v415
      %v426 = vadd.f32 %v388, %v391
      %v427 = vadd.f32 %v426, %v396
      %v428 = vadd.f32 %v427, %v399
      %v429 = vadd.f32 %v428, %v404
      %v430 = vadd.f32 %v429, %v407
      %v431 = vadd.f32 %v430, %v412
      %v432 = vadd.f32 %v431, %v415
      %v433 = vrot.slane %v432, 4
      %v434 = vadd.f32 %v432, %v433
      %v435 = vrot.slane %v434, 2
      %v436 = vadd.f32 %v434, %v435
      %v437 = vrot.slane %v436, 1
      %v438 = vadd.f32 %v436, %v437
      %439 = vst [vmem:[%s261] sm:$0x1] %v438
      %v440 = vmul.f32 %v388, %v388
      %v441 = vmul.f32 %v391, %v391
      %v442 = vmul.f32 %v396, %v396
      %v443 = vmul.f32 %v399, %v399
      %v444 = vmul.f32 %v404, %v404
      %v445 = vmul.f32 %v407, %v407
      %v446 = vmul.f32 %v412, %v412
      %v447 = vmul.f32 %v415, %v415
      %v448 = vadd.f32 %v440, %v441
      %v449 = vadd.f32 %v448, %v442
      %v450 = vadd.f32 %v449, %v443
      %v451 = vadd.f32 %v450, %v444
      %v452 = vadd.f32 %v451, %v445
      %v453 = vadd.f32 %v452, %v446
      %v454 = vadd.f32 %v453, %v447
      %v455 = vrot.slane %v454, 4
      %v456 = vadd.f32 %v454, %v455
      %v457 = vrot.slane %v456, 2
      %v458 = vadd.f32 %v456, %v457
      %v459 = vrot.slane %v458, 1
      %v460 = vadd.f32 %v458, %v459
      %461 = vst [vmem:[%s267] sm:$0x1] %v460
      %p462 = scmp.lt.s32.totalorder %s20, 1
      %s463 = scalar_select %p462, %s20, 1
      %p464 = scmp.lt.s32.totalorder %s21, 0
      %s465 = scalar_select %p464, %s21, 0
      %s466 = smul.addr %s463, 8
      %s467 = sadd.s32 %s465, %s466
      %s468 = smul.addr %s467, 8
      %s469 = scalar_lea.vmem %s2, %s468
      %p470 = scmp.lt.s32.totalorder %s20, 1
      %s471 = scalar_select %p470, %s20, 1
      %p472 = scmp.lt.s32.totalorder %s21, 0
      %s473 = scalar_select %p472, %s21, 0
      %s474 = sadd.s32 %s473, %s471
      %s475 = scalar_lea.vmem %s3, %s474
      %p476 = scmp.lt.s32.totalorder %s20, 1
      %s477 = scalar_select %p476, %s20, 1
      %p478 = scmp.lt.s32.totalorder %s21, 0
      %s479 = scalar_select %p478, %s21, 0
      %s480 = sadd.s32 %s479, %s477
      %s481 = scalar_lea.vmem %s4, %s480
      // Predicated region
      $region29: #{basic_block_forward.8} parent=27 // pred_check
        %p482 = pneg %p100
      $region30: #{basic_block_forward.8} parent=27 // pred_check_branch
        %484 = sbr.rel (%p482) target = $region32
      $region31: #{basic_block_forward.8} parent=27 // pred_region
        _
      $region32: #{basic_block_forward.8} parent=27 // pred_fallthru
        _
      // Predicated region
      $region33: #{basic_block_forward.8} parent=27 // pred_check
        %p485 = pneg %p128
      $region34: #{basic_block_forward.8} parent=27 // pred_check_branch
        %487 = sbr.rel (%p485) target = $region36
      $region35: #{basic_block_forward.8} parent=27 // pred_region
        _
      $region36: #{basic_block_forward.8} parent=27 // pred_fallthru
        _
      // Predicated region
      $region37: #{basic_block_forward.8} parent=27 // pred_check
        %p488 = pneg %p156
      $region38: #{basic_block_forward.8} parent=27 // pred_check_branch
        %490 = sbr.rel (%p488) target = $region40
      $region39: #{basic_block_forward.8} parent=27 // pred_region
        _
      $region40: #{basic_block_forward.8} parent=27 // pred_fallthru
        _
    $region28: #{basic_block_forward.8} parent=5 // pred_fallthru
      _
    %p491 = scmp.le.s32.totalorder 2, %s11
    // Predicated region
    $region41: #{basic_block_forward.8} parent=5 // pred_check
      %p492 = pneg %p491
    $region42: #{basic_block_forward.8} parent=5 // pred_check_branch
      %494 = sbr.rel (%p492) target = $region44
    $region43: #{basic_block_forward.8} parent=5 // pred_region
      %s495 = ssub.s32 %s11, 2
      // Predicated region
      $region45: #{basic_block_forward.8} parent=43 // pred_check
        %p496 = pneg %p106
      $region46: #{basic_block_forward.8} parent=43 // pred_check_branch
        %498 = sbr.rel (%p496) target = $region48
      $region47: #{basic_block_forward.8} parent=43 // pred_region
        %p499 = scmp.lt.s32.totalorder %s22, 1
        %s500 = scalar_select %p499, %s22, 1
        %p501 = scmp.lt.s32.totalorder %s23, 0
        %s502 = scalar_select %p501, %s23, 0
        %s503 = smul.addr %s500, 8
        %s504 = sadd.s32 %s502, %s503
        %s505 = smul.addr %s504, 8
        %s506 = scalar_lea.vmem %s2, %s505
      $region48: #{basic_block_forward.8} parent=43 // pred_fallthru
        _
      // Predicated region
      $region49: #{basic_block_forward.8} parent=43 // pred_check
        %p507 = pneg %p134
      $region50: #{basic_block_forward.8} parent=43 // pred_check_branch
        %509 = sbr.rel (%p507) target = $region52
      $region51: #{basic_block_forward.8} parent=43 // pred_region
        %p510 = scmp.lt.s32.totalorder %s22, 1
        %s511 = scalar_select %p510, %s22, 1
        %p512 = scmp.lt.s32.totalorder %s23, 0
        %s513 = scalar_select %p512, %s23, 0
        %s514 = sadd.s32 %s513, %s511
        %s515 = scalar_lea.vmem %s3, %s514
      $region52: #{basic_block_forward.8} parent=43 // pred_fallthru
        _
      // Predicated region
      $region53: #{basic_block_forward.8} parent=43 // pred_check
        %p516 = pneg %p162
      $region54: #{basic_block_forward.8} parent=43 // pred_check_branch
        %518 = sbr.rel (%p516) target = $region56
      $region55: #{basic_block_forward.8} parent=43 // pred_region
        %p519 = scmp.lt.s32.totalorder %s22, 1
        %s520 = scalar_select %p519, %s22, 1
        %p521 = scmp.lt.s32.totalorder %s23, 0
        %s522 = scalar_select %p521, %s23, 0
        %s523 = sadd.s32 %s522, %s520
        %s524 = scalar_lea.vmem %s4, %s523
      $region56: #{basic_block_forward.8} parent=43 // pred_fallthru
        _
    $region44: #{basic_block_forward.8} parent=5 // pred_fallthru
      _
  $region6: #{basic_block_forward.8} parent=0 // loop_footer
    %s15 = sadd.s32 1, %s11
  $region7: #{basic_block_forward.8} parent=0 // loop_footer_branch
    %10 = sbr.rel target = $region3
  $region8: #{basic_block_forward.8} parent=0 // loop_exit
    _

// kernel: basic_block_forward.9
$region0: #{basic_block_forward.9}
  #allocation0 [shape = 'u32[]', space=smem, size = 0x4, offset = 0x4, fixed_abs, tag = 'smem constant byte address 0x4 - core index']
  #allocation1 [shape = 'u32[144,128]{1,0:T(1,128)}', space=vmem, size = 0x12000, scoped, tag = 'internal scratch']
  %s0 = inlined_call_operand.vmem [shape: f32[128,128], index: 0, kind: input, shape index: {}]
  %s1 = inlined_call_operand.vmem [shape: f32[1,128], index: 1, kind: input, shape index: {}]
  %s2 = inlined_call_operand.vmem [shape: f32[1,128], index: 2, kind: input, shape index: {}]
  %s3 = inlined_call_operand.vmem [shape: f32[128,128], index: 3, kind: input, shape index: {}]
  %s4 = inlined_call_operand.vmem [shape: f32[1,128], index: 4, kind: input, shape index: {}]
  %s5 = inlined_call_operand.vmem [shape: f32[1,128], index: 5, kind: input, shape index: {}]
  %s6 = inlined_call_operand.vmem [shape: f32[128,128], index: 6, kind: output, shape index: {}]
  %s7 = sld [smem:[#allocation0]]
  $region34: #{basic_block_forward.9} parent=0
    _
  %s9 = ssub.s32 1, %s7
  %s10 = scalar_select 0, %s9, %s7
  // Predicated region
  $region2: #{basic_block_forward.9} parent=0 // pred_check
    _
  $region3: #{basic_block_forward.9} parent=0 // pred_check_branch
    %12 = sbr.rel (0) target = $region5
  $region4: #{basic_block_forward.9} parent=0 // pred_region
    _
  $region5: #{basic_block_forward.9} parent=0 // pred_fallthru
    _
  // Predicated region
  $region6: #{basic_block_forward.9} parent=0 // pred_check
    _
  $region7: #{basic_block_forward.9} parent=0 // pred_check_branch
    %14 = sbr.rel (0) target = $region9
  $region8: #{basic_block_forward.9} parent=0 // pred_region
    _
  $region9: #{basic_block_forward.9} parent=0 // pred_fallthru
    _
  // Predicated region
  $region10: #{basic_block_forward.9} parent=0 // pred_check
    _
  $region11: #{basic_block_forward.9} parent=0 // pred_check_branch
    %16 = sbr.rel (0) target = $region13
  $region12: #{basic_block_forward.9} parent=0 // pred_region
    _
  $region13: #{basic_block_forward.9} parent=0 // pred_fallthru
    _
  // Predicated region
  $region14: #{basic_block_forward.9} parent=0 // pred_check
    _
  $region15: #{basic_block_forward.9} parent=0 // pred_check_branch
    %18 = sbr.rel (0) target = $region17
  $region16: #{basic_block_forward.9} parent=0 // pred_region
    _
  $region17: #{basic_block_forward.9} parent=0 // pred_fallthru
    _
  // Predicated region
  $region18: #{basic_block_forward.9} parent=0 // pred_check
    _
  $region19: #{basic_block_forward.9} parent=0 // pred_check_branch
    %20 = sbr.rel (0) target = $region21
  $region20: #{basic_block_forward.9} parent=0 // pred_region
    _
  $region21: #{basic_block_forward.9} parent=0 // pred_fallthru
    _
  // Predicated region
  $region22: #{basic_block_forward.9} parent=0 // pred_check
    _
  $region23: #{basic_block_forward.9} parent=0 // pred_check_branch
    %22 = sbr.rel (0) target = $region25
  $region24: #{basic_block_forward.9} parent=0 // pred_region
    _
  $region25: #{basic_block_forward.9} parent=0 // pred_fallthru
    _
  %v23 = vld [vmem:[%s0] sm:$0xff]
  %v24 = vld [vmem:[%s0 + $0x8] sm:$0xff]
  %v25 = vld [vmem:[%s0 + $0x10] sm:$0xff]
  %v26 = vld [vmem:[%s0 + $0x18] sm:$0xff]
  %v27 = vld [vmem:[%s0 + $0x20] sm:$0xff]
  %v28 = vld [vmem:[%s0 + $0x28] sm:$0xff]
  %v29 = vld [vmem:[%s0 + $0x30] sm:$0xff]
  %v30 = vld [vmem:[%s0 + $0x38] sm:$0xff]
  %v31 = vld [vmem:[%s0 + $0x40] sm:$0xff]
  %v32 = vld [vmem:[%s0 + $0x48] sm:$0xff]
  %v33 = vld [vmem:[%s0 + $0x50] sm:$0xff]
  %v34 = vld [vmem:[%s0 + $0x58] sm:$0xff]
  %v35 = vld [vmem:[%s0 + $0x60] sm:$0xff]
  %v36 = vld [vmem:[%s0 + $0x68] sm:$0xff]
  %v37 = vld [vmem:[%s0 + $0x70] sm:$0xff]
  %v38 = vld [vmem:[%s0 + $0x78] sm:$0xff]
  %v39 = vld [vmem:[%s1] sm:$0x1]
  %v41 = vlaneseq
  %v42 = vshrl.u32 %v41, 7
  %v43 = vsub.s32 0, %v42
  %v44 = vrot.slane %v39, %v43
  %v46 = vmul.f32 %v23, %v44
  %v47 = vmul.f32 %v24, %v44
  %v48 = vmul.f32 %v25, %v44
  %v49 = vmul.f32 %v26, %v44
  %v50 = vmul.f32 %v27, %v44
  %v51 = vmul.f32 %v28, %v44
  %v52 = vmul.f32 %v29, %v44
  %v53 = vmul.f32 %v30, %v44
  %v54 = vmul.f32 %v31, %v44
  %v55 = vmul.f32 %v32, %v44
  %v56 = vmul.f32 %v33, %v44
  %v57 = vmul.f32 %v34, %v44
  %v58 = vmul.f32 %v35, %v44
  %v59 = vmul.f32 %v36, %v44
  %v60 = vmul.f32 %v37, %v44
  %v61 = vmul.f32 %v38, %v44
  %v62 = vld [vmem:[%s2] sm:$0x1]
  %v64 = vlaneseq
  %v65 = vshrl.u32 %v64, 7
  %v66 = vsub.s32 0, %v65
  %v67 = vrot.slane %v62, %v66
  %v69 = vadd.f32 %v46, %v67
  %v70 = vadd.f32 %v47, %v67
  %v71 = vadd.f32 %v48, %v67
  %v72 = vadd.f32 %v49, %v67
  %v73 = vadd.f32 %v50, %v67
  %v74 = vadd.f32 %v51, %v67
  %v75 = vadd.f32 %v52, %v67
  %v76 = vadd.f32 %v53, %v67
  %v77 = vadd.f32 %v54, %v67
  %v78 = vadd.f32 %v55, %v67
  %v79 = vadd.f32 %v56, %v67
  %v80 = vadd.f32 %v57, %v67
  %v81 = vadd.f32 %v58, %v67
  %v82 = vadd.f32 %v59, %v67
  %v83 = vadd.f32 %v60, %v67
  %v84 = vadd.f32 %v61, %v67
  %v85 = vld [vmem:[%s3] sm:$0xff]
  %v86 = vld [vmem:[%s3 + $0x8] sm:$0xff]
  %v87 = vld [vmem:[%s3 + $0x10] sm:$0xff]
  %v88 = vld [vmem:[%s3 + $0x18] sm:$0xff]
  %v89 = vld [vmem:[%s3 + $0x20] sm:$0xff]
  %v90 = vld [vmem:[%s3 + $0x28] sm:$0xff]
  %v91 = vld [vmem:[%s3 + $0x30] sm:$0xff]
  %v92 = vld [vmem:[%s3 + $0x38] sm:$0xff]
  %v93 = vld [vmem:[%s3 + $0x40] sm:$0xff]
  %v94 = vld [vmem:[%s3 + $0x48] sm:$0xff]
  %v95 = vld [vmem:[%s3 + $0x50] sm:$0xff]
  %v96 = vld [vmem:[%s3 + $0x58] sm:$0xff]
  %v97 = vld [vmem:[%s3 + $0x60] sm:$0xff]
  %v98 = vld [vmem:[%s3 + $0x68] sm:$0xff]
  %v99 = vld [vmem:[%s3 + $0x70] sm:$0xff]
  %v100 = vld [vmem:[%s3 + $0x78] sm:$0xff]
  %v101 = vld [vmem:[%s4] sm:$0x1]
  %v103 = vlaneseq
  %v104 = vshrl.u32 %v103, 7
  %v105 = vsub.s32 0, %v104
  %v106 = vrot.slane %v101, %v105
  %v108 = vmul.f32 %v85, %v106
  %v109 = vmul.f32 %v86, %v106
  %v110 = vmul.f32 %v87, %v106
  %v111 = vmul.f32 %v88, %v106
  %v112 = vmul.f32 %v89, %v106
  %v113 = vmul.f32 %v90, %v106
  %v114 = vmul.f32 %v91, %v106
  %v115 = vmul.f32 %v92, %v106
  %v116 = vmul.f32 %v93, %v106
  %v117 = vmul.f32 %v94, %v106
  %v118 = vmul.f32 %v95, %v106
  %v119 = vmul.f32 %v96, %v106
  %v120 = vmul.f32 %v97, %v106
  %v121 = vmul.f32 %v98, %v106
  %v122 = vmul.f32 %v99, %v106
  %v123 = vmul.f32 %v100, %v106
  %v124 = vadd.f32 %v69, %v108
  %v125 = vadd.f32 %v70, %v109
  %v126 = vadd.f32 %v71, %v110
  %v127 = vadd.f32 %v72, %v111
  %v128 = vadd.f32 %v73, %v112
  %v129 = vadd.f32 %v74, %v113
  %v130 = vadd.f32 %v75, %v114
  %v131 = vadd.f32 %v76, %v115
  %v132 = vadd.f32 %v77, %v116
  %v133 = vadd.f32 %v78, %v117
  %v134 = vadd.f32 %v79, %v118
  %v135 = vadd.f32 %v80, %v119
  %v136 = vadd.f32 %v81, %v120
  %v137 = vadd.f32 %v82, %v121
  %v138 = vadd.f32 %v83, %v122
  %v139 = vadd.f32 %v84, %v123
  %v140 = vld [vmem:[%s5] sm:$0x1]
  %v142 = vlaneseq
  %v143 = vshrl.u32 %v142, 7
  %v144 = vsub.s32 0, %v143
  %v145 = vrot.slane %v140, %v144
  %v147 = vadd.f32 %v124, %v145
  %v148 = vadd.f32 %v125, %v145
  %v149 = vadd.f32 %v126, %v145
  %v150 = vadd.f32 %v127, %v145
  %v151 = vadd.f32 %v128, %v145
  %v152 = vadd.f32 %v129, %v145
  %v153 = vadd.f32 %v130, %v145
  %v154 = vadd.f32 %v131, %v145
  %v155 = vadd.f32 %v132, %v145
  %v156 = vadd.f32 %v133, %v145
  %v157 = vadd.f32 %v134, %v145
  %v158 = vadd.f32 %v135, %v145
  %v159 = vadd.f32 %v136, %v145
  %v160 = vadd.f32 %v137, %v145
  %v161 = vadd.f32 %v138, %v145
  %v162 = vadd.f32 %v139, %v145
  %v163 = vmax.f32 %v147, 0.0
  %v164 = vmax.f32 %v148, 0.0
  %v165 = vmax.f32 %v149, 0.0
  %v166 = vmax.f32 %v150, 0.0
  %v167 = vmax.f32 %v151, 0.0
  %v168 = vmax.f32 %v152, 0.0
  %v169 = vmax.f32 %v153, 0.0
  %v170 = vmax.f32 %v154, 0.0
  %v171 = vmax.f32 %v155, 0.0
  %v172 = vmax.f32 %v156, 0.0
  %v173 = vmax.f32 %v157, 0.0
  %v174 = vmax.f32 %v158, 0.0
  %v175 = vmax.f32 %v159, 0.0
  %v176 = vmax.f32 %v160, 0.0
  %v177 = vmax.f32 %v161, 0.0
  %v178 = vmax.f32 %v162, 0.0
  %179 = vst [vmem:[%s6] sm:$0xff] %v163
  %180 = vst [vmem:[%s6 + $0x8] sm:$0xff] %v164
  %181 = vst [vmem:[%s6 + $0x10] sm:$0xff] %v165
  %182 = vst [vmem:[%s6 + $0x18] sm:$0xff] %v166
  %183 = vst [vmem:[%s6 + $0x20] sm:$0xff] %v167
  %184 = vst [vmem:[%s6 + $0x28] sm:$0xff] %v168
  %185 = vst [vmem:[%s6 + $0x30] sm:$0xff] %v169
  %186 = vst [vmem:[%s6 + $0x38] sm:$0xff] %v170
  %187 = vst [vmem:[%s6 + $0x40] sm:$0xff] %v171
  %188 = vst [vmem:[%s6 + $0x48] sm:$0xff] %v172
  %189 = vst [vmem:[%s6 + $0x50] sm:$0xff] %v173
  %190 = vst [vmem:[%s6 + $0x58] sm:$0xff] %v174
  %191 = vst [vmem:[%s6 + $0x60] sm:$0xff] %v175
  %192 = vst [vmem:[%s6 + $0x68] sm:$0xff] %v176
  %193 = vst [vmem:[%s6 + $0x70] sm:$0xff] %v177
  %194 = vst [vmem:[%s6 + $0x78] sm:$0xff] %v178
  // Predicated region
  $region26: #{basic_block_forward.9} parent=0 // pred_check
    _
  $region27: #{basic_block_forward.9} parent=0 // pred_check_branch
    %196 = sbr.rel (0) target = $region29
  $region28: #{basic_block_forward.9} parent=0 // pred_region
    _
  $region29: #{basic_block_forward.9} parent=0 // pred_fallthru
    _
  // Predicated region
  $region30: #{basic_block_forward.9} parent=0 // pred_check
    _
  $region31: #{basic_block_forward.9} parent=0 // pred_check_branch
    %198 = sbr.rel (0) target = $region33
  $region32: #{basic_block_forward.9} parent=0 // pred_region
    _
  $region33: #{basic_block_forward.9} parent=0 // pred_fallthru
    _

// kernel: basic_block_forward.5
$region0: #{basic_block_forward.5}
  #allocation0 [shape = 'u32[]', space=smem, size = 0x4, offset = 0x4, fixed_abs, tag = 'smem constant byte address 0x4 - core index']
  #allocation1 [shape = 'u32[144,128]{1,0:T(1,128)}', space=vmem, size = 0x12000, scoped, tag = 'internal scratch']
  %s0 = inlined_call_operand.vmem [shape: bf16[2,4,9,9,128], index: 0, kind: input, shape index: {}]
  %s1 = inlined_call_operand.vmem [shape: bf16[9,128,128], index: 1, kind: input, shape index: {}]
  %s2 = inlined_call_operand.vmem [shape: f32[2,64,128], index: 2, kind: output, shape index: {0}]
  %s3 = inlined_call_operand.vmem [shape: f32[2,1,128], index: 3, kind: output, shape index: {1}]
  %s4 = inlined_call_operand.vmem [shape: f32[2,1,128], index: 4, kind: output, shape index: {2}]
  %5 = xla_tuple %s2, %s3, %s4
  %s6 = sld [smem:[#allocation0]]
  $region57: #{basic_block_forward.5} parent=0
    _
  %s8 = ssub.s32 1, %s6
  %s9 = scalar_select 0, %s8, %s6
  loop: start=0, step=1, limit=4
  $region2: #{basic_block_forward.5} parent=0 // loop_pre_header
    _
  $region3: #{basic_block_forward.5} parent=0 // loop_header
    %s11 = sphi 0, %s15
    %p12 = scmp.ge.s32.totalorder %s11, 4
    %s18 = sphi 0, %s30
    %s19 = sphi 0, %s26
    %s20 = sphi 0, %s18
    %s21 = sphi 0, %s19
    %s22 = sphi 0, %s20
    %s23 = sphi 0, %s21
    %s33 = sphi 0, %s35
    %s36 = sphi 0, %s33
    %s37 = sphi 0, %s36
    %s53 = sphi 0, %s37
    %s59 = sphi 0, %s61
    %s62 = sphi 0, %s59
    %s63 = sphi 0, %s62
    %s79 = sphi 0, %s63
    %s87 = sphi 0, %s89
    %s90 = sphi 0, %s87
    %s91 = sphi 0, %s90
    %s107 = sphi 0, %s91
    %s115 = sphi 0, %s117
    %s118 = sphi 0, %s115
    %s119 = sphi 0, %s118
    %s135 = sphi 0, %s119
    %s143 = sphi 0, %s145
    %s146 = sphi 0, %s143
    %s147 = sphi 0, %s146
    %s163 = sphi 0, %s147
  $region4: #{basic_block_forward.5} parent=0 // loop_header_branch
    %14 = sbr.rel (%p12) target = $region8
  $region5: #{basic_block_forward.5} parent=0 // loop_body
    %s16 = ssub.s32 %s11, 1
    %s17 = ssub.s32 %s11, 2
    %s24 = sadd.s32 1, %s19
    %p25 = scmp.ge.s32.totalorder %s24, 1
    %s26 = scalar_select %p25, 0, %s24
    %s27 = sadd.s32 1, %s18
    %s28 = scalar_select %p25, %s27, %s18
    %p29 = scmp.ge.s32.totalorder %s28, 2
    %s30 = scalar_select %p29, 0, %s28
    %s31 = ssub.s32 %s18, %s30
    %p32 = scmp.eq.s32.totalorder %s31, 0
    %s34 = sadd.s32 %s33, 1
    %s35 = scalar_select %p32, %s33, %s34
    %p38 = pneg %p32
    %p39 = scmp.eq.s32.totalorder %s11, 1
    %p40 = por %p38, %p39
    %p41 = scmp.ne.s32.totalorder %s33, %s36
    %p42 = scmp.eq.s32.totalorder %s11, 0
    %p43 = por %p41, %p42
    %p44 = scmp.ne.s32.totalorder %s33, %s36
    %p45 = scmp.eq.s32.totalorder %s16, 1
    %p46 = por %p44, %p45
    %p47 = scmp.ne.s32.totalorder %s36, %s37
    %p48 = scmp.eq.s32.totalorder %s16, 0
    %p49 = por %p47, %p48
    %p50 = scmp.ne.s32.totalorder %s36, %s37
    %p51 = scmp.eq.s32.totalorder %s17, 1
    %p52 = por %p50, %p51
    %p54 = scmp.ne.s32.totalorder %s37, %s53
    %p55 = scmp.eq.s32.totalorder %s17, 0
    %p56 = por %p54, %p55
    %s57 = ssub.s32 %s19, %s26
    %p58 = scmp.eq.s32.totalorder %s57, 0
    %s60 = sadd.s32 %s59, 1
    %s61 = scalar_select %p58, %s59, %s60
    %p64 = pneg %p58
    %p65 = scmp.eq.s32.totalorder %s11, 1
    %p66 = por %p64, %p65
    %p67 = scmp.ne.s32.totalorder %s59, %s62
    %p68 = scmp.eq.s32.totalorder %s11, 0
    %p69 = por %p67, %p68
    %p70 = scmp.ne.s32.totalorder %s59, %s62
    %p71 = scmp.eq.s32.totalorder %s16, 1
    %p72 = por %p70, %p71
    %p73 = scmp.ne.s32.totalorder %s62, %s63
    %p74 = scmp.eq.s32.totalorder %s16, 0
    %p75 = por %p73, %p74
    %p76 = scmp.ne.s32.totalorder %s62, %s63
    %p77 = scmp.eq.s32.totalorder %s17, 1
    %p78 = por %p76, %p77
    %p80 = scmp.ne.s32.totalorder %s63, %s79
    %p81 = scmp.eq.s32.totalorder %s17, 0
    %p82 = por %p80, %p81
    %s83 = ssub.s32 %s18, %s30
    %s84 = ssub.s32 %s19, %s26
    %s85 = sor.u32 %s83, %s84
    %p86 = scmp.eq.s32.totalorder %s85, 0
    %s88 = sadd.s32 %s87, 1
    %s89 = scalar_select %p86, %s87, %s88
    %p92 = pneg %p86
    %p93 = scmp.eq.s32.totalorder %s11, 1
    %p94 = por %p92, %p93
    %p95 = scmp.ne.s32.totalorder %s87, %s90
    %p96 = scmp.eq.s32.totalorder %s11, 0
    %p97 = por %p95, %p96
    %p98 = scmp.ne.s32.totalorder %s87, %s90
    %p99 = scmp.eq.s32.totalorder %s16, 1
    %p100 = por %p98, %p99
    %p101 = scmp.ne.s32.totalorder %s90, %s91
    %p102 = scmp.eq.s32.totalorder %s16, 0
    %p103 = por %p101, %p102
    %p104 = scmp.ne.s32.totalorder %s90, %s91
    %p105 = scmp.eq.s32.totalorder %s17, 1
    %p106 = por %p104, %p105
    %p108 = scmp.ne.s32.totalorder %s91, %s107
    %p109 = scmp.eq.s32.totalorder %s17, 0
    %p110 = por %p108, %p109
    %s111 = ssub.s32 %s18, %s30
    %s112 = ssub.s32 %s19, %s26
    %s113 = sor.u32 %s111, %s112
    %p114 = scmp.eq.s32.totalorder %s113, 0
    %s116 = sadd.s32 %s115, 1
    %s117 = scalar_select %p114, %s115, %s116
    %p120 = pneg %p114
    %p121 = scmp.eq.s32.totalorder %s11, 1
    %p122 = por %p120, %p121
    %p123 = scmp.ne.s32.totalorder %s115, %s118
    %p124 = scmp.eq.s32.totalorder %s11, 0
    %p125 = por %p123, %p124
    %p126 = scmp.ne.s32.totalorder %s115, %s118
    %p127 = scmp.eq.s32.totalorder %s16, 1
    %p128 = por %p126, %p127
    %p129 = scmp.ne.s32.totalorder %s118, %s119
    %p130 = scmp.eq.s32.totalorder %s16, 0
    %p131 = por %p129, %p130
    %p132 = scmp.ne.s32.totalorder %s118, %s119
    %p133 = scmp.eq.s32.totalorder %s17, 1
    %p134 = por %p132, %p133
    %p136 = scmp.ne.s32.totalorder %s119, %s135
    %p137 = scmp.eq.s32.totalorder %s17, 0
    %p138 = por %p136, %p137
    %s139 = ssub.s32 %s18, %s30
    %s140 = ssub.s32 %s19, %s26
    %s141 = sor.u32 %s139, %s140
    %p142 = scmp.eq.s32.totalorder %s141, 0
    %s144 = sadd.s32 %s143, 1
    %s145 = scalar_select %p142, %s143, %s144
    %p148 = pneg %p142
    %p149 = scmp.eq.s32.totalorder %s11, 1
    %p150 = por %p148, %p149
    %p151 = scmp.ne.s32.totalorder %s143, %s146
    %p152 = scmp.eq.s32.totalorder %s11, 0
    %p153 = por %p151, %p152
    %p154 = scmp.ne.s32.totalorder %s143, %s146
    %p155 = scmp.eq.s32.totalorder %s16, 1
    %p156 = por %p154, %p155
    %p157 = scmp.ne.s32.totalorder %s146, %s147
    %p158 = scmp.eq.s32.totalorder %s16, 0
    %p159 = por %p157, %p158
    %p160 = scmp.ne.s32.totalorder %s146, %s147
    %p161 = scmp.eq.s32.totalorder %s17, 1
    %p162 = por %p160, %p161
    %p164 = scmp.ne.s32.totalorder %s147, %s163
    %p165 = scmp.eq.s32.totalorder %s17, 0
    %p166 = por %p164, %p165
    %p167 = scmp.le.s32.totalorder 1, %s11
    %p168 = scmp.lt.s32.totalorder %s11, 3
    %p169 = pnand %p167, %p168
    %p170 = pneg %p169
    // Predicated region
    $region9: #{basic_block_forward.5} parent=5 // pred_check
      _
    $region10: #{basic_block_forward.5} parent=5 // pred_check_branch
      %172 = sbr.rel (%p169) target = $region12
    $region11: #{basic_block_forward.5} parent=5 // pred_region
      %s173 = ssub.s32 %s11, 1
      // Predicated region
      $region13: #{basic_block_forward.5} parent=11 // pred_check
        %p174 = pneg %p75
      $region14: #{basic_block_forward.5} parent=11 // pred_check_branch
        %176 = sbr.rel (%p174) target = $region16
      $region15: #{basic_block_forward.5} parent=11 // pred_region
        %p177 = scmp.lt.s32.totalorder %s21, 0
        %s178 = scalar_select %p177, %s21, 0
        %s179 = smul.addr %s178, 4
        %s180 = scalar_lea.vmem %s1, %s179
      $region16: #{basic_block_forward.5} parent=11 // pred_fallthru
        _
    $region12: #{basic_block_forward.5} parent=5 // pred_fallthru
      _
    %p181 = scmp.lt.s32.totalorder %s11, 2
    // Predicated region
    $region17: #{basic_block_forward.5} parent=5 // pred_check
      %p182 = pneg %p181
    $region18: #{basic_block_forward.5} parent=5 // pred_check_branch
      %184 = sbr.rel (%p182) target = $region20
    $region19: #{basic_block_forward.5} parent=5 // pred_region
      // Predicated region
      $region21: #{basic_block_forward.5} parent=19 // pred_check
        %p185 = pneg %p43
      $region22: #{basic_block_forward.5} parent=19 // pred_check_branch
        %187 = sbr.rel (%p185) target = $region24
      $region23: #{basic_block_forward.5} parent=19 // pred_region
        %p188 = scmp.lt.s32.totalorder %s18, 1
        %s189 = scalar_select %p188, %s18, 1
        %s190 = smul.addr %s189, 72
        %s191 = smul.addr %s190, 4
        %s192 = scalar_lea.vmem %s0, %s191
      $region24: #{basic_block_forward.5} parent=19 // pred_fallthru
        _
    $region20: #{basic_block_forward.5} parent=5 // pred_fallthru
      _
    %p193 = scmp.le.s32.totalorder 1, %s11
    %p194 = scmp.lt.s32.totalorder %s11, 3
    %p195 = pnand %p193, %p194
    %p196 = pneg %p195
    // Predicated region
    $region25: #{basic_block_forward.5} parent=5 // pred_check
      _
    $region26: #{basic_block_forward.5} parent=5 // pred_check_branch
      %198 = sbr.rel (%p195) target = $region28
    $region27: #{basic_block_forward.5} parent=5 // pred_region
      %s199 = ssub.s32 %s11, 1
      %p200 = scmp.lt.s32.totalorder %s20, 1
      %s201 = scalar_select %p200, %s20, 1
      %s202 = smul.addr %s201, 72
      %s203 = smul.addr %s202, 4
      %s204 = scalar_lea.vmem %s0, %s203
      %p205 = pneg %p49
      %p206 = pneg %p46
      %p207 = scmp.lt.s32.totalorder %s21, 0
      %s208 = scalar_select %p207, %s21, 0
      %s209 = smul.addr %s208, 4
      %s210 = scalar_lea.vmem %s1, %s209
      %p211 = pneg %p75
      %p212 = pneg %p72
      %p213 = pneg %p103
      %p214 = pneg %p100
      %p215 = scmp.lt.s32.totalorder %s20, 1
      %s216 = scalar_select %p215, %s20, 1
      %p217 = scmp.lt.s32.totalorder %s21, 0
      %s218 = scalar_select %p217, %s21, 0
      %s219 = smul.addr %s216, 8
      %s220 = sadd.s32 %s218, %s219
      %s221 = smul.addr %s220, 8
      %s222 = scalar_lea.vmem %s2, %s221
      %p223 = pneg %p131
      %p224 = pneg %p128
      %p225 = scmp.lt.s32.totalorder %s20, 1
      %s226 = scalar_select %p225, %s20, 1
      %p227 = scmp.lt.s32.totalorder %s21, 0
      %s228 = scalar_select %p227, %s21, 0
      %s229 = sadd.s32 %s228, %s226
      %s230 = scalar_lea.vmem %s3, %s229
      %p231 = pneg %p159
      %p232 = pneg %p156
      %p233 = scmp.lt.s32.totalorder %s20, 1
      %s234 = scalar_select %p233, %s20, 1
      %p235 = scmp.lt.s32.totalorder %s21, 0
      %s236 = scalar_select %p235, %s21, 0
      %s237 = sadd.s32 %s236, %s234
      %s238 = scalar_lea.vmem %s4, %s237
      %p239 = scmp.lt.s32.totalorder %s20, 1
      %s240 = scalar_select %p239, %s20, 1
      %s241 = smul.addr %s240, 72
      %s242 = smul.addr %s241, 4
      %s243 = scalar_lea.vmem %s0, %s242
      %p244 = scmp.lt.s32.totalorder %s21, 0
      %s245 = scalar_select %p244, %s21, 0
      %s246 = smul.addr %s245, 4
      %s247 = scalar_lea.vmem %s1, %s246
      %p248 = scmp.lt.s32.totalorder %s20, 1
      %s249 = scalar_select %p248, %s20, 1
      %p250 = scmp.lt.s32.totalorder %s21, 0
      %s251 = scalar_select %p250, %s21, 0
      %s252 = smul.addr %s249, 8
      %s253 = sadd.s32 %s251, %s252
      %s254 = smul.addr %s253, 8
      %s255 = scalar_lea.vmem %s2, %s254
      %p256 = scmp.lt.s32.totalorder %s20, 1
      %s257 = scalar_select %p256, %s20, 1
      %p258 = scmp.lt.s32.totalorder %s21, 0
      %s259 = scalar_select %p258, %s21, 0
      %s260 = sadd.s32 %s259, %s257
      %s261 = scalar_lea.vmem %s3, %s260
      %p262 = scmp.lt.s32.totalorder %s20, 1
      %s263 = scalar_select %p262, %s20, 1
      %p264 = scmp.lt.s32.totalorder %s21, 0
      %s265 = scalar_select %p264, %s21, 0
      %s266 = sadd.s32 %s265, %s263
      %s267 = scalar_lea.vmem %s4, %s266
      %v269 = vld [vmem:[%s243] sm:$0xf]
      %v270 = vld [vmem:[%s243 + $0x4] sm:$0x1]
      %v271 = vld [vmem:[%s243 + $0x8] sm:$0xf]
      %v272 = vld [vmem:[%s243 + $0xc] sm:$0x1]
      %v273 = vld [vmem:[%s243 + $0x10] sm:$0xf]
      %v274 = vld [vmem:[%s243 + $0x14] sm:$0x1]
      %v275 = vld [vmem:[%s243 + $0x18] sm:$0xf]
      %v276 = vld [vmem:[%s243 + $0x1c] sm:$0x1]
      %v277 = vld [vmem:[%s243 + $0x20] sm:$0xf]
      %v278 = vld [vmem:[%s243 + $0x24] sm:$0x1]
      %v279 = vld [vmem:[%s243 + $0x28] sm:$0xf]
      %v280 = vld [vmem:[%s243 + $0x2c] sm:$0x1]
      %v281 = vld [vmem:[%s243 + $0x30] sm:$0xf]
      %v282 = vld [vmem:[%s243 + $0x34] sm:$0x1]
      %v283 = vld [vmem:[%s243 + $0x38] sm:$0xf]
      %v284 = vld [vmem:[%s243 + $0x3c] sm:$0x1]
      %v285 = vld [vmem:[%s243 + $0x40] sm:$0xf]
      %v286 = vld [vmem:[%s243 + $0x44] sm:$0x1]
      %v287 = vunpack.c.l.bf16 %v269
      %v288 = vunpack.c.l.bf16 %v270
      %v289 = vunpack.c.l.bf16 %v271
      %v290 = vunpack.c.l.bf16 %v272
      %v291 = vunpack.c.l.bf16 %v273
      %v292 = vunpack.c.l.bf16 %v274
      %v293 = vunpack.c.l.bf16 %v275
      %v294 = vunpack.c.l.bf16 %v276
      %v295 = vunpack.c.l.bf16 %v277
      %v296 = vunpack.c.l.bf16 %v278
      %v297 = vunpack.c.l.bf16 %v279
      %v298 = vunpack.c.l.bf16 %v280
      %v299 = vunpack.c.l.bf16 %v281
      %v300 = vunpack.c.l.bf16 %v282
      %v301 = vunpack.c.l.bf16 %v283
      %v302 = vunpack.c.l.bf16 %v284
      %v303 = vunpack.c.l.bf16 %v285
      %v304 = vunpack.c.l.bf16 %v286
      %s305 = scalar_lea.vmem %s243, 72
      %v306 = vld [vmem:[%s305] sm:$0xf]
      %v307 = vld [vmem:[%s305 + $0x8] sm:$0xf]
      %v308 = vld [vmem:[%s305 + $0x10] sm:$0xf]
      %v309 = vld [vmem:[%s305 + $0x18] sm:$0xf]
      %v310 = vld [vmem:[%s305 + $0x20] sm:$0xf]
      %v311 = vld [vmem:[%s305 + $0x28] sm:$0xf]
      %v312 = vld [vmem:[%s305 + $0x30] sm:$0xf]
      %v313 = vld [vmem:[%s305 + $0x38] sm:$0xf]
      %v314 = vld [vmem:[%s305 + $0x40] sm:$0xf]
      %v315 = vunpack.c.l.bf16 %v306
      %v316 = vunpack.c.l.bf16 %v307
      %v317 = vunpack.c.l.bf16 %v308
      %v318 = vunpack.c.l.bf16 %v309
      %v319 = vunpack.c.l.bf16 %v310
      %v320 = vunpack.c.l.bf16 %v311
      %v321 = vunpack.c.l.bf16 %v312
      %v322 = vunpack.c.l.bf16 %v313
      %v323 = vunpack.c.l.bf16 %v314
      %s324 = scalar_lea.vmem %s243, 144
      %v325 = vld [vmem:[%s324] sm:$0xf]
      %v326 = vld [vmem:[%s324 + $0x4] sm:$0x1]
      %v327 = vld [vmem:[%s324 + $0x8] sm:$0xf]
      %v328 = vld [vmem:[%s324 + $0xc] sm:$0x1]
      %v329 = vld [vmem:[%s324 + $0x10] sm:$0xf]
      %v330 = vld [vmem:[%s324 + $0x14] sm:$0x1]
      %v331 = vld [vmem:[%s324 + $0x18] sm:$0xf]
      %v332 = vld [vmem:[%s324 + $0x1c] sm:$0x1]
      %v333 = vld [vmem:[%s324 + $0x20] sm:$0xf]
      %v334 = vld [vmem:[%s324 + $0x24] sm:$0x1]
      %v335 = vld [vmem:[%s324 + $0x28] sm:$0xf]
      %v336 = vld [vmem:[%s324 + $0x2c] sm:$0x1]
      %v337 = vld [vmem:[%s324 + $0x30] sm:$0xf]
      %v338 = vld [vmem:[%s324 + $0x34] sm:$0x1]
      %v339 = vld [vmem:[%s324 + $0x38] sm:$0xf]
      %v340 = vld [vmem:[%s324 + $0x3c] sm:$0x1]
      %v341 = vunpack.c.l.bf16 %v325
      %v342 = vunpack.c.l.bf16 %v326
      %v343 = vunpack.c.l.bf16 %v327
      %v344 = vunpack.c.l.bf16 %v328
      %v345 = vunpack.c.l.bf16 %v329
      %v346 = vunpack.c.l.bf16 %v330
      %v347 = vunpack.c.l.bf16 %v331
      %v348 = vunpack.c.l.bf16 %v332
      %v349 = vunpack.c.l.bf16 %v333
      %v350 = vunpack.c.l.bf16 %v334
      %v351 = vunpack.c.l.bf16 %v335
      %v352 = vunpack.c.l.bf16 %v336
      %v353 = vunpack.c.l.bf16 %v337
      %v354 = vunpack.c.l.bf16 %v338
      %v355 = vunpack.c.l.bf16 %v339
      %v356 = vunpack.c.l.bf16 %v340
      %s357 = scalar_lea.vmem %s243, 216
      %v358 = vld [vmem:[%s357] sm:$0xf]
      %v359 = vld [vmem:[%s357 + $0x8] sm:$0xf]
      %v360 = vld [vmem:[%s357 + $0x10] sm:$0xf]
      %v361 = vld [vmem:[%s357 + $0x18] sm:$0xf]
      %v362 = vld [vmem:[%s357 + $0x20] sm:$0xf]
      %v363 = vld [vmem:[%s357 + $0x28] sm:$0xf]
      %v364 = vld [vmem:[%s357 + $0x30] sm:$0xf]
      %v365 = vld [vmem:[%s357 + $0x38] sm:$0xf]
      %v366 = vunpack.c.l.bf16 %v358
      %v367 = vunpack.c.l.bf16 %v359
      %v368 = vunpack.c.l.bf16 %v360
      %v369 = vunpack.c.l.bf16 %v361
      %v370 = vunpack.c.l.bf16 %v362
      %v371 = vunpack.c.l.bf16 %v363
      %v372 = vunpack.c.l.bf16 %v364
      %v373 = vunpack.c.l.bf16 %v365
      %v374 = vpack.c.bf16 %v289, %v287
      %v375 = vpack.c.bf16 %v293, %v291
      %v376 = vpack.c.bf16 %v297, %v295
      %v377 = vpack.c.bf16 %v301, %v299
      %v378 = vld [vmem:[%s247] sm:$0xf]
      %v379 = vld [vmem:[%s247 + $0x4] sm:$0xf]
      %v380 = vld [vmem:[%s247 + $0x8] sm:$0xf]
      %v381 = vld [vmem:[%s247 + $0xc] sm:$0xf]
      %v382 = vld [vmem:[%s247 + $0x10] sm:$0xf]
      %v383 = vld [vmem:[%s247 + $0x14] sm:$0xf]
      %v384 = vld [vmem:[%s247 + $0x18] sm:$0xf]
      %v385 = vld [vmem:[%s247 + $0x1c] sm:$0xf]
      %v386 = vld [vmem:[%s247 + $0x20] sm:$0xf]
      %v387 = vld [vmem:[%s247 + $0x24] sm:$0xf]
      %v388 = vld [vmem:[%s247 + $0x28] sm:$0xf]
      %v389 = vld [vmem:[%s247 + $0x2c] sm:$0xf]
      %v390 = vld [vmem:[%s247 + $0x30] sm:$0xf]
      %v391 = vld [vmem:[%s247 + $0x34] sm:$0xf]
      %v392 = vld [vmem:[%s247 + $0x38] sm:$0xf]
      %v393 = vld [vmem:[%s247 + $0x3c] sm:$0xf]
      %v394 = vpack.c.bf16 %v316, %v315
      %v395 = vpack.c.bf16 %v318, %v317
      %v396 = vpack.c.bf16 %v320, %v319
      %v397 = vpack.c.bf16 %v322, %v321
      %s398 = scalar_lea.vmem %s247, 64
      %v399 = vld [vmem:[%s398] sm:$0xf]
      %v400 = vld [vmem:[%s398 + $0x4] sm:$0xf]
      %v401 = vld [vmem:[%s398 + $0x8] sm:$0xf]
      %v402 = vld [vmem:[%s398 + $0xc] sm:$0xf]
      %v403 = vld [vmem:[%s398 + $0x10] sm:$0xf]
      %v404 = vld [vmem:[%s398 + $0x14] sm:$0xf]
      %v405 = vld [vmem:[%s398 + $0x18] sm:$0xf]
      %v406 = vld [vmem:[%s398 + $0x1c] sm:$0xf]
      %v407 = vld [vmem:[%s398 + $0x20] sm:$0xf]
      %v408 = vld [vmem:[%s398 + $0x24] sm:$0xf]
      %v409 = vld [vmem:[%s398 + $0x28] sm:$0xf]
      %v410 = vld [vmem:[%s398 + $0x2c] sm:$0xf]
      %v411 = vld [vmem:[%s398 + $0x30] sm:$0xf]
      %v412 = vld [vmem:[%s398 + $0x34] sm:$0xf]
      %v413 = vld [vmem:[%s398 + $0x38] sm:$0xf]
      %v414 = vld [vmem:[%s398 + $0x3c] sm:$0xf]
      %v431 = vunpack.c.l.b16 %v399
      %v432 = vunpack.c.l.b16 %v400
      %v433 = vunpack.c.l.b16 %v401
      %v434 = vunpack.c.l.b16 %v402
      %v435 = vunpack.c.l.b16 %v403
      %v436 = vunpack.c.l.b16 %v404
      %v437 = vunpack.c.l.b16 %v405
      %v438 = vunpack.c.l.b16 %v406
      %v439 = vunpack.c.l.b16 %v407
      %v440 = vunpack.c.l.b16 %v408
      %v441 = vunpack.c.l.b16 %v409
      %v442 = vunpack.c.l.b16 %v410
      %v443 = vunpack.c.l.b16 %v411
      %v444 = vunpack.c.l.b16 %v412
      %v445 = vunpack.c.l.b16 %v413
      %v446 = vunpack.c.l.b16 %v414
      %v447 = vpack.c.b16 %v432, %v431
      %v448 = vpack.c.b16 %v434, %v433
      %v449 = vpack.c.b16 %v436, %v435
      %v450 = vpack.c.b16 %v438, %v437
      %v451 = vpack.c.b16 %v440, %v439
      %v452 = vpack.c.b16 %v442, %v441
      %v453 = vpack.c.b16 %v444, %v443
      %v454 = vpack.c.b16 %v446, %v445
      %463 = vmatprep.subr.bf16.mxu0 0
      %464 = vmatpush1.bf16.msra.mxu0 %v447
      %465 = vmatprep.subr.bf16.mxu0 0
      %466 = vmatpush1.bf16.msra.mxu0 %v448
      %467 = vmatprep.subr.bf16.mxu0 0
      %468 = vmatpush1.bf16.msra.mxu0 %v449
      %469 = vmatprep.subr.bf16.mxu0 0
      %470 = vmatpush1.bf16.msra.mxu0 %v450
      %471 = vmatprep.subr.bf16.mxu0 0
      %472 = vmatpush1.bf16.msra.mxu0 %v451
      %473 = vmatprep.subr.bf16.mxu0 0
      %474 = vmatpush1.bf16.msra.mxu0 %v452
      %475 = vmatprep.subr.bf16.mxu0 0
      %476 = vmatpush1.bf16.msra.mxu0 %v453
      %477 = vmatprep.subr.bf16.mxu0 0
      %478 = vmatpush1.bf16.msra.mxu0 %v454
      %479 = vmatprep.subr.bf16.mxu0 0
      %480 = vmatpush1.bf16.msra.mxu0 0
      %481 = vmatprep.subr.bf16.mxu0 0
      %482 = vmatpush1.bf16.msra.mxu0 0
      %483 = vmatprep.subr.bf16.mxu0 0
      %484 = vmatpush1.bf16.msra.mxu0 0
      %485 = vmatprep.subr.bf16.mxu0 0
      %486 = vmatpush1.bf16.msra.mxu0 0
      %487 = vmatprep.subr.bf16.mxu0 0
      %488 = vmatpush1.bf16.msra.mxu0 0
      %489 = vmatprep.subr.bf16.mxu0 0
      %490 = vmatpush1.bf16.msra.mxu0 0
      %491 = vmatprep.subr.bf16.mxu0 0
      %492 = vmatpush1.bf16.msra.mxu0 0
      %493 = vmatprep.subr.bf16.mxu0 0
      %494 = vmatpush1.bf16.msra.mxu0 0
      %495 = vmatprep.mubr.bf16.mxu0 0
      %496 = vmatmul.mubr.bf16.gmra.mrb[0].mxu0 %v394
      %v497 = vpop.f32.mrb[0].mxu0
      %v498 = vadd.f32 0.0, %v497
      %v499 = vpop.f32.mrb[0].mxu0
      %v500 = vpop.f32.mrb[0].mxu0
      %v501 = vadd.f32 0.0, %v500
      %v502 = vpop.f32.mrb[0].mxu0
      %503 = vmatprep.mubr.bf16.mxu0 0
      %504 = vmatmul.mubr.bf16.gmra.mrb[0].mxu0 %v395
      %v505 = vpop.f32.mrb[0].mxu0
      %v506 = vadd.f32 0.0, %v505
      %v507 = vpop.f32.mrb[0].mxu0
      %v508 = vpop.f32.mrb[0].mxu0
      %v509 = vadd.f32 0.0, %v508
      %v510 = vpop.f32.mrb[0].mxu0
      %511 = vmatprep.mubr.bf16.mxu0 0
      %512 = vmatmul.mubr.bf16.gmra.mrb[0].mxu0 %v396
      %v513 = vpop.f32.mrb[0].mxu0
      %v514 = vadd.f32 0.0, %v513
      %v515 = vpop.f32.mrb[0].mxu0
      %v516 = vpop.f32.mrb[0].mxu0
      %v517 = vadd.f32 0.0, %v516
      %v518 = vpop.f32.mrb[0].mxu0
      %519 = vmatprep.mubr.bf16.mxu0 0
      %520 = vmatmul.mubr.bf16.gmra.mrb[0].mxu0 %v397
      %v521 = vpop.f32.mrb[0].mxu0
      %v522 = vadd.f32 0.0, %v521
      %v523 = vpop.f32.mrb[0].mxu0
      %v524 = vpop.f32.mrb[0].mxu0
      %v525 = vadd.f32 0.0, %v524
      %v526 = vpop.f32.mrb[0].mxu0
      %527 = vdwg.mxu0
      %v544 = vunpack.c.l.b16 %v378
      %v545 = vunpack.c.l.b16 %v379
      %v546 = vunpack.c.l.b16 %v380
      %v547 = vunpack.c.l.b16 %v381
      %v548 = vunpack.c.l.b16 %v382
      %v549 = vunpack.c.l.b16 %v383
      %v550 = vunpack.c.l.b16 %v384
      %v551 = vunpack.c.l.b16 %v385
      %v552 = vunpack.c.l.b16 %v386
      %v553 = vunpack.c.l.b16 %v387
      %v554 = vunpack.c.l.b16 %v388
      %v555 = vunpack.c.l.b16 %v389
      %v556 = vunpack.c.l.b16 %v390
      %v557 = vunpack.c.l.b16 %v391
      %v558 = vunpack.c.l.b16 %v392
      %v559 = vunpack.c.l.b16 %v393
      %v560 = vpack.c.b16 %v545, %v544
      %v561 = vpack.c.b16 %v547, %v546
      %v562 = vpack.c.b16 %v549, %v548
      %v563 = vpack.c.b16 %v551, %v550
      %v564 = vpack.c.b16 %v553, %v552
      %v565 = vpack.c.b16 %v555, %v554
      %v566 = vpack.c.b16 %v557, %v556
      %v567 = vpack.c.b16 %v559, %v558
      %576 = vmatprep.subr.bf16.mxu0 0
      %577 = vmatpush1.bf16.msra.mxu0 %v560
      %578 = vmatprep.subr.bf16.mxu0 0
      %579 = vmatpush1.bf16.msra.mxu0 %v561
      %580 = vmatprep.subr.bf16.mxu0 0
      %581 = vmatpush1.bf16.msra.mxu0 %v562
      %582 = vmatprep.subr.bf16.mxu0 0
      %583 = vmatpush1.bf16.msra.mxu0 %v563
      %584 = vmatprep.subr.bf16.mxu0 0
      %585 = vmatpush1.bf16.msra.mxu0 %v564
      %586 = vmatprep.subr.bf16.mxu0 0
      %587 = vmatpush1.bf16.msra.mxu0 %v565
      %588 = vmatprep.subr.bf16.mxu0 0
      %589 = vmatpush1.bf16.msra.mxu0 %v566
      %590 = vmatprep.subr.bf16.mxu0 0
      %591 = vmatpush1.bf16.msra.mxu0 %v567
      %592 = vmatprep.subr.bf16.mxu0 0
      %593 = vmatpush1.bf16.msra.mxu0 0
      %594 = vmatprep.subr.bf16.mxu0 0
      %595 = vmatpush1.bf16.msra.mxu0 0
      %596 = vmatprep.subr.bf16.mxu0 0
      %597 = vmatpush1.bf16.msra.mxu0 0
      %598 = vmatprep.subr.bf16.mxu0 0
      %599 = vmatpush1.bf16.msra.mxu0 0
      %600 = vmatprep.subr.bf16.mxu0 0
      %601 = vmatpush1.bf16.msra.mxu0 0
      %602 = vmatprep.subr.bf16.mxu0 0
      %603 = vmatpush1.bf16.msra.mxu0 0
      %604 = vmatprep.subr.bf16.mxu0 0
      %605 = vmatpush1.bf16.msra.mxu0 0
      %606 = vmatprep.subr.bf16.mxu0 0
      %607 = vmatpush1.bf16.msra.mxu0 0
      %608 = vmatprep.mubr.bf16.mxu0 0
      %609 = vmatmul.mubr.bf16.gmra.mrb[0].mxu0 %v374
      %v610 = vpop.f32.mrb[0].mxu0
      %v611 = vadd.f32 %v498, %v610
      %v612 = vpop.f32.mrb[0].mxu0
      %v613 = vpop.f32.mrb[0].mxu0
      %v614 = vadd.f32 %v501, %v613
      %v615 = vpop.f32.mrb[0].mxu0
      %616 = vmatprep.mubr.bf16.mxu0 0
      %617 = vmatmul.mubr.bf16.gmra.mrb[0].mxu0 %v375
      %v618 = vpop.f32.mrb[0].mxu0
      %v619 = vadd.f32 %v506, %v618
      %v620 = vpop.f32.mrb[0].mxu0
      %v621 = vpop.f32.mrb[0].mxu0
      %v622 = vadd.f32 %v509, %v621
      %v623 = vpop.f32.mrb[0].mxu0
      %624 = vmatprep.mubr.bf16.mxu0 0
      %625 = vmatmul.mubr.bf16.gmra.mrb[0].mxu0 %v376
      %v626 = vpop.f32.mrb[0].mxu0
      %v627 = vadd.f32 %v514, %v626
      %v628 = vpop.f32.mrb[0].mxu0
      %v629 = vpop.f32.mrb[0].mxu0
      %v630 = vadd.f32 %v517, %v629
      %v631 = vpop.f32.mrb[0].mxu0
      %632 = vmatprep.mubr.bf16.mxu0 0
      %633 = vmatmul.mubr.bf16.gmra.mrb[0].mxu0 %v377
      %v634 = vpop.f32.mrb[0].mxu0
      %v635 = vadd.f32 %v522, %v634
      %v636 = vpop.f32.mrb[0].mxu0
      %v637 = vpop.f32.mrb[0].mxu0
      %v638 = vadd.f32 %v525, %v637
      %v639 = vpop.f32.mrb[0].mxu0
      %640 = vdwg.mxu0
      %vm657 = vcmask 1046528
      %v658 = vrot.slane %v287, 1
      %v659 = vrot.slane %v288, 1
      %v660 = vsel %vm657, %v658, %v659
      %v661 = vrot.slane %v289, 1
      %v662 = vrot.slane %v290, 1
      %v663 = vsel %vm657, %v661, %v662
      %v664 = vrot.slane %v291, 1
      %v665 = vrot.slane %v292, 1
      %v666 = vsel %vm657, %v664, %v665
      %v667 = vrot.slane %v293, 1
      %v668 = vrot.slane %v294, 1
      %v669 = vsel %vm657, %v667, %v668
      %v670 = vrot.slane %v295, 1
      %v671 = vrot.slane %v296, 1
      %v672 = vsel %vm657, %v670, %v671
      %v673 = vrot.slane %v297, 1
      %v674 = vrot.slane %v298, 1
      %v675 = vsel %vm657, %v673, %v674
      %v676 = vrot.slane %v299, 1
      %v677 = vrot.slane %v300, 1
      %v678 = vsel %vm657, %v676, %v677
      %v679 = vrot.slane %v301, 1
      %v680 = vrot.slane %v302, 1
      %v681 = vsel %vm657, %v679, %v680
      %v690 = vpack.c.bf16 %v663, %v660
      %v691 = vpack.c.bf16 %v669, %v666
      %v692 = vpack.c.bf16 %v675, %v672
      %v693 = vpack.c.bf16 %v681, %v678
      %s694 = scalar_lea.vmem %s247, 128
      %v695 = vld [vmem:[%s694] sm:$0xf]
      %v696 = vld [vmem:[%s694 + $0x4] sm:$0xf]
      %v697 = vld [vmem:[%s694 + $0x8] sm:$0xf]
      %v698 = vld [vmem:[%s694 + $0xc] sm:$0xf]
      %v699 = vld [vmem:[%s694 + $0x10] sm:$0xf]
      %v700 = vld [vmem:[%s694 + $0x14] sm:$0xf]
      %v701 = vld [vmem:[%s694 + $0x18] sm:$0xf]
      %v702 = vld [vmem:[%s694 + $0x1c] sm:$0xf]
      %v703 = vld [vmem:[%s694 + $0x20] sm:$0xf]
      %v704 = vld [vmem:[%s694 + $0x24] sm:$0xf]
      %v705 = vld [vmem:[%s694 + $0x28] sm:$0xf]
      %v706 = vld [vmem:[%s694 + $0x2c] sm:$0xf]
      %v707 = vld [vmem:[%s694 + $0x30] sm:$0xf]
      %v708 = vld [vmem:[%s694 + $0x34] sm:$0xf]
      %v709 = vld [vmem:[%s694 + $0x38] sm:$0xf]
      %v710 = vld [vmem:[%s694 + $0x3c] sm:$0xf]
      %v727 = vunpack.c.l.b16 %v695
      %v728 = vunpack.c.l.b16 %v696
      %v729 = vunpack.c.l.b16 %v697
      %v730 = vunpack.c.l.b16 %v698
      %v731 = vunpack.c.l.b16 %v699
      %v732 = vunpack.c.l.b16 %v700
      %v733 = vunpack.c.l.b16 %v701
      %v734 = vunpack.c.l.b16 %v702
      %v735 = vunpack.c.l.b16 %v703
      %v736 = vunpack.c.l.b16 %v704
      %v737 = vunpack.c.l.b16 %v705
      %v738 = vunpack.c.l.b16 %v706
      %v739 = vunpack.c.l.b16 %v707
      %v740 = vunpack.c.l.b16 %v708
      %v741 = vunpack.c.l.b16 %v709
      %v742 = vunpack.c.l.b16 %v710
      %v743 = vpack.c.b16 %v728, %v727
      %v744 = vpack.c.b16 %v730, %v729
      %v745 = vpack.c.b16 %v732, %v731
      %v746 = vpack.c.b16 %v734, %v733
      %v747 = vpack.c.b16 %v736, %v735
      %v748 = vpack.c.b16 %v738, %v737
      %v749 = vpack.c.b16 %v740, %v739
      %v750 = vpack.c.b16 %v742, %v741
      %759 = vmatprep.subr.bf16.mxu0 0
      %760 = vmatpush1.bf16.msra.mxu0 %v743
      %761 = vmatprep.subr.bf16.mxu0 0
      %762 = vmatpush1.bf16.msra.mxu0 %v744
      %763 = vmatprep.subr.bf16.mxu0 0
      %764 = vmatpush1.bf16.msra.mxu0 %v745
      %765 = vmatprep.subr.bf16.mxu0 0
      %766 = vmatpush1.bf16.msra.mxu0 %v746
      %767 = vmatprep.subr.bf16.mxu0 0
      %768 = vmatpush1.bf16.msra.mxu0 %v747
      %769 = vmatprep.subr.bf16.mxu0 0
      %770 = vmatpush1.bf16.msra.mxu0 %v748
      %771 = vmatprep.subr.bf16.mxu0 0
      %772 = vmatpush1.bf16.msra.mxu0 %v749
      %773 = vmatprep.subr.bf16.mxu0 0
      %774 = vmatpush1.bf16.msra.mxu0 %v750
      %775 = vmatprep.subr.bf16.mxu0 0
      %776 = vmatpush1.bf16.msra.mxu0 0
      %777 = vmatprep.subr.bf16.mxu0 0
      %778 = vmatpush1.bf16.msra.mxu0 0
      %779 = vmatprep.subr.bf16.mxu0 0
      %780 = vmatpush1.bf16.msra.mxu0 0
      %781 = vmatprep.subr.bf16.mxu0 0
      %782 = vmatpush1.bf16.msra.mxu0 0
      %783 = vmatprep.subr.bf16.mxu0 0
      %784 = vmatpush1.bf16.msra.mxu0 0
      %785 = vmatprep.subr.bf16.mxu0 0
      %786 = vmatpush1.bf16.msra.mxu0 0
      %787 = vmatprep.subr.bf16.mxu0 0
      %788 = vmatpush1.bf16.msra.mxu0 0
      %789 = vmatprep.subr.bf16.mxu0 0
      %790 = vmatpush1.bf16.msra.mxu0 0
      %791 = vmatprep.mubr.bf16.mxu0 0
      %792 = vmatmul.mubr.bf16.gmra.mrb[0].mxu0 %v690
      %v793 = vpop.f32.mrb[0].mxu0
      %v794 = vadd.f32 0.0, %v793
      %v795 = vpop.f32.mrb[0].mxu0
      %v796 = vpop.f32.mrb[0].mxu0
      %v797 = vadd.f32 0.0, %v796
      %v798 = vpop.f32.mrb[0].mxu0
      %799 = vmatprep.mubr.bf16.mxu0 0
      %800 = vmatmul.mubr.bf16.gmra.mrb[0].mxu0 %v691
      %v801 = vpop.f32.mrb[0].mxu0
      %v802 = vadd.f32 0.0, %v801
      %v803 = vpop.f32.mrb[0].mxu0
      %v804 = vpop.f32.mrb[0].mxu0
      %v805 = vadd.f32 0.0, %v804
      %v806 = vpop.f32.mrb[0].mxu0
      %807 = vmatprep.mubr.bf16.mxu0 0
      %808 = vmatmul.mubr.bf16.gmra.mrb[0].mxu0 %v692
      %v809 = vpop.f32.mrb[0].mxu0
      %v810 = vadd.f32 0.0, %v809
      %v811 = vpop.f32.mrb[0].mxu0
      %v812 = vpop.f32.mrb[0].mxu0
      %v813 = vadd.f32 0.0, %v812
      %v814 = vpop.f32.mrb[0].mxu0
      %815 = vmatprep.mubr.bf16.mxu0 0
      %816 = vmatmul.mubr.bf16.gmra.mrb[0].mxu0 %v693
      %v817 = vpop.f32.mrb[0].mxu0
      %v818 = vadd.f32 0.0, %v817
      %v819 = vpop.f32.mrb[0].mxu0
      %v820 = vpop.f32.mrb[0].mxu0
      %v821 = vadd.f32 0.0, %v820
      %v822 = vpop.f32.mrb[0].mxu0
      %823 = vdwg.mxu0
      %v824 = vadd.f32 %v611, %v794
      %v825 = vadd.f32 %v614, %v797
      %v826 = vadd.f32 %v619, %v802
      %v827 = vadd.f32 %v622, %v805
      %v828 = vadd.f32 %v627, %v810
      %v829 = vadd.f32 %v630, %v813
      %v830 = vadd.f32 %v635, %v818
      %v831 = vadd.f32 %v638, %v821
      %v832 = vpack.c.bf16 %v343, %v341
      %v833 = vpack.c.bf16 %v347, %v345
      %v834 = vpack.c.bf16 %v351, %v349
      %v835 = vpack.c.bf16 %v355, %v353
      %s836 = scalar_lea.vmem %s247, 192
      %v837 = vld [vmem:[%s836] sm:$0xf]
      %v838 = vld [vmem:[%s836 + $0x4] sm:$0xf]
      %v839 = vld [vmem:[%s836 + $0x8] sm:$0xf]
      %v840 = vld [vmem:[%s836 + $0xc] sm:$0xf]
      %v841 = vld [vmem:[%s836 + $0x10] sm:$0xf]
      %v842 = vld [vmem:[%s836 + $0x14] sm:$0xf]
      %v843 = vld [vmem:[%s836 + $0x18] sm:$0xf]
      %v844 = vld [vmem:[%s836 + $0x1c] sm:$0xf]
      %v845 = vld [vmem:[%s836 + $0x20] sm:$0xf]
      %v846 = vld [vmem:[%s836 + $0x24] sm:$0xf]
      %v847 = vld [vmem:[%s836 + $0x28] sm:$0xf]
      %v848 = vld [vmem:[%s836 + $0x2c] sm:$0xf]
      %v849 = vld [vmem:[%s836 + $0x30] sm:$0xf]
      %v850 = vld [vmem:[%s836 + $0x34] sm:$0xf]
      %v851 = vld [vmem:[%s836 + $0x38] sm:$0xf]
      %v852 = vld [vmem:[%s836 + $0x3c] sm:$0xf]
      %v869 = vunpack.c.l.b16 %v837
      %v870 = vunpack.c.l.b16 %v838
      %v871 = vunpack.c.l.b16 %v839
      %v872 = vunpack.c.l.b16 %v840
      %v873 = vunpack.c.l.b16 %v841
      %v874 = vunpack.c.l.b16 %v842
      %v875 = vunpack.c.l.b16 %v843
      %v876 = vunpack.c.l.b16 %v844
      %v877 = vunpack.c.l.b16 %v845
      %v878 = vunpack.c.l.b16 %v846
      %v879 = vunpack.c.l.b16 %v847
      %v880 = vunpack.c.l.b16 %v848
      %v881 = vunpack.c.l.b16 %v849
      %v882 = vunpack.c.l.b16 %v850
      %v883 = vunpack.c.l.b16 %v851
      %v884 = vunpack.c.l.b16 %v852
      %v885 = vpack.c.b16 %v870, %v869
      %v886 = vpack.c.b16 %v872, %v871
      %v887 = vpack.c.b16 %v874, %v873
      %v888 = vpack.c.b16 %v876, %v875
      %v889 = vpack.c.b16 %v878, %v877
      %v890 = vpack.c.b16 %v880, %v879
      %v891 = vpack.c.b16 %v882, %v881
      %v892 = vpack.c.b16 %v884, %v883
      %901 = vmatprep.subr.bf16.mxu0 0
      %902 = vmatpush1.bf16.msra.mxu0 %v885
      %903 = vmatprep.subr.bf16.mxu0 0
      %904 = vmatpush1.bf16.msra.mxu0 %v886
      %905 = vmatprep.subr.bf16.mxu0 0
      %906 = vmatpush1.bf16.msra.mxu0 %v887
      %907 = vmatprep.subr.bf16.mxu0 0
      %908 = vmatpush1.bf16.msra.mxu0 %v888
      %909 = vmatprep.subr.bf16.mxu0 0
      %910 = vmatpush1.bf16.msra.mxu0 %v889
      %911 = vmatprep.subr.bf16.mxu0 0
      %912 = vmatpush1.bf16.msra.mxu0 %v890
      %913 = vmatprep.subr.bf16.mxu0 0
      %914 = vmatpush1.bf16.msra.mxu0 %v891
      %915 = vmatprep.subr.bf16.mxu0 0
      %916 = vmatpush1.bf16.msra.mxu0 %v892
      %917 = vmatprep.subr.bf16.mxu0 0
      %918 = vmatpush1.bf16.msra.mxu0 0
      %919 = vmatprep.subr.bf16.mxu0 0
      %920 = vmatpush1.bf16.msra.mxu0 0
      %921 = vmatprep.subr.bf16.mxu0 0
      %922 = vmatpush1.bf16.msra.mxu0 0
      %923 = vmatprep.subr.bf16.mxu0 0
      %924 = vmatpush1.bf16.msra.mxu0 0
      %925 = vmatprep.subr.bf16.mxu0 0
      %926 = vmatpush1.bf16.msra.mxu0 0
      %927 = vmatprep.subr.bf16.mxu0 0
      %928 = vmatpush1.bf16.msra.mxu0 0
      %929 = vmatprep.subr.bf16.mxu0 0
      %930 = vmatpush1.bf16.msra.mxu0 0
      %931 = vmatprep.subr.bf16.mxu0 0
      %932 = vmatpush1.bf16.msra.mxu0 0
      %933 = vmatprep.mubr.bf16.mxu0 0
      %934 = vmatmul.mubr.bf16.gmra.mrb[0].mxu0 %v832
      %v935 = vpop.f32.mrb[0].mxu0
      %v936 = vadd.f32 0.0, %v935
      %v937 = vpop.f32.mrb[0].mxu0
      %v938 = vpop.f32.mrb[0].mxu0
      %v939 = vadd.f32 0.0, %v938
      %v940 = vpop.f32.mrb[0].mxu0
      %941 = vmatprep.mubr.bf16.mxu0 0
      %942 = vmatmul.mubr.bf16.gmra.mrb[0].mxu0 %v833
      %v943 = vpop.f32.mrb[0].mxu0
      %v944 = vadd.f32 0.0, %v943
      %v945 = vpop.f32.mrb[0].mxu0
      %v946 = vpop.f32.mrb[0].mxu0
      %v947 = vadd.f32 0.0, %v946
      %v948 = vpop.f32.mrb[0].mxu0
      %949 = vmatprep.mubr.bf16.mxu0 0
      %950 = vmatmul.mubr.bf16.gmra.mrb[0].mxu0 %v834
      %v951 = vpop.f32.mrb[0].mxu0
      %v952 = vadd.f32 0.0, %v951
      %v953 = vpop.f32.mrb[0].mxu0
      %v954 = vpop.f32.mrb[0].mxu0
      %v955 = vadd.f32 0.0, %v954
      %v956 = vpop.f32.mrb[0].mxu0
      %957 = vmatprep.mubr.bf16.mxu0 0
      %958 = vmatmul.mubr.bf16.gmra.mrb[0].mxu0 %v835
      %v959 = vpop.f32.mrb[0].mxu0
      %v960 = vadd.f32 0.0, %v959
      %v961 = vpop.f32.mrb[0].mxu0
      %v962 = vpop.f32.mrb[0].mxu0
      %v963 = vadd.f32 0.0, %v962
      %v964 = vpop.f32.mrb[0].mxu0
      %965 = vdwg.mxu0
      %v966 = vadd.f32 %v824, %v936
      %v967 = vadd.f32 %v825, %v939
      %v968 = vadd.f32 %v826, %v944
      %v969 = vadd.f32 %v827, %v947
      %v970 = vadd.f32 %v828, %v952
      %v971 = vadd.f32 %v829, %v955
      %v972 = vadd.f32 %v830, %v960
      %v973 = vadd.f32 %v831, %v963
      %v974 = vpack.c.bf16 %v367, %v366
      %v975 = vpack.c.bf16 %v369, %v368
      %v976 = vpack.c.bf16 %v371, %v370
      %v977 = vpack.c.bf16 %v373, %v372
      %s978 = scalar_lea.vmem %s247, 256
      %v979 = vld [vmem:[%s978] sm:$0xf]
      %v980 = vld [vmem:[%s978 + $0x4] sm:$0xf]
      %v981 = vld [vmem:[%s978 + $0x8] sm:$0xf]
      %v982 = vld [vmem:[%s978 + $0xc] sm:$0xf]
      %v983 = vld [vmem:[%s978 + $0x10] sm:$0xf]
      %v984 = vld [vmem:[%s978 + $0x14] sm:$0xf]
      %v985 = vld [vmem:[%s978 + $0x18] sm:$0xf]
      %v986 = vld [vmem:[%s978 + $0x1c] sm:$0xf]
      %v987 = vld [vmem:[%s978 + $0x20] sm:$0xf]
      %v988 = vld [vmem:[%s978 + $0x24] sm:$0xf]
      %v989 = vld [vmem:[%s978 + $0x28] sm:$0xf]
      %v990 = vld [vmem:[%s978 + $0x2c] sm:$0xf]
      %v991 = vld [vmem:[%s978 + $0x30] sm:$0xf]
      %v992 = vld [vmem:[%s978 + $0x34] sm:$0xf]
      %v993 = vld [vmem:[%s978 + $0x38] sm:$0xf]
      %v994 = vld [vmem:[%s978 + $0x3c] sm:$0xf]
      %v1011 = vunpack.c.l.b16 %v979
      %v1012 = vunpack.c.l.b16 %v980
      %v1013 = vunpack.c.l.b16 %v981
      %v1014 = vunpack.c.l.b16 %v982
      %v1015 = vunpack.c.l.b16 %v983
      %v1016 = vunpack.c.l.b16 %v984
      %v1017 = vunpack.c.l.b16 %v985
      %v1018 = vunpack.c.l.b16 %v986
      %v1019 = vunpack.c.l.b16 %v987
      %v1020 = vunpack.c.l.b16 %v988
      %v1021 = vunpack.c.l.b16 %v989
      %v1022 = vunpack.c.l.b16 %v990
      %v1023 = vunpack.c.l.b16 %v991
      %v1024 = vunpack.c.l.b16 %v992
      %v1025 = vunpack.c.l.b16 %v993
      %v1026 = vunpack.c.l.b16 %v994
      %v1027 = vpack.c.b16 %v1012, %v1011
      %v1028 = vpack.c.b16 %v1014, %v1013
      %v1029 = vpack.c.b16 %v1016, %v1015
      %v1030 = vpack.c.b16 %v1018, %v1017
      %v1031 = vpack.c.b16 %v1020, %v1019
      %v1032 = vpack.c.b16 %v1022, %v1021
      %v1033 = vpack.c.b16 %v1024, %v1023
      %v1034 = vpack.c.b16 %v1026, %v1025
      %1043 = vmatprep.subr.bf16.mxu0 0
      %1044 = vmatpush1.bf16.msra.mxu0 %v1027
      %1045 = vmatprep.subr.bf16.mxu0 0
      %1046 = vmatpush1.bf16.msra.mxu0 %v1028
      %1047 = vmatprep.subr.bf16.mxu0 0
      %1048 = vmatpush1.bf16.msra.mxu0 %v1029
      %1049 = vmatprep.subr.bf16.mxu0 0
      %1050 = vmatpush1.bf16.msra.mxu0 %v1030
      %1051 = vmatprep.subr.bf16.mxu0 0
      %1052 = vmatpush1.bf16.msra.mxu0 %v1031
      %1053 = vmatprep.subr.bf16.mxu0 0
      %1054 = vmatpush1.bf16.msra.mxu0 %v1032
      %1055 = vmatprep.subr.bf16.mxu0 0
      %1056 = vmatpush1.bf16.msra.mxu0 %v1033
      %1057 = vmatprep.subr.bf16.mxu0 0
      %1058 = vmatpush1.bf16.msra.mxu0 %v1034
      %1059 = vmatprep.subr.bf16.mxu0 0
      %1060 = vmatpush1.bf16.msra.mxu0 0
      %1061 = vmatprep.subr.bf16.mxu0 0
      %1062 = vmatpush1.bf16.msra.mxu0 0
      %1063 = vmatprep.subr.bf16.mxu0 0
      %1064 = vmatpush1.bf16.msra.mxu0 0
      %1065 = vmatprep.subr.bf16.mxu0 0
      %1066 = vmatpush1.bf16.msra.mxu0 0
      %1067 = vmatprep.subr.bf16.mxu0 0
      %1068 = vmatpush1.bf16.msra.mxu0 0
      %1069 = vmatprep.subr.bf16.mxu0 0
      %1070 = vmatpush1.bf16.msra.mxu0 0
      %1071 = vmatprep.subr.bf16.mxu0 0
      %1072 = vmatpush1.bf16.msra.mxu0 0
      %1073 = vmatprep.subr.bf16.mxu0 0
      %1074 = vmatpush1.bf16.msra.mxu0 0
      %1075 = vmatprep.mubr.bf16.mxu0 0
      %1076 = vmatmul.mubr.bf16.gmra.mrb[0].mxu0 %v974
      %v1077 = vpop.f32.mrb[0].mxu0
      %v1078 = vadd.f32 0.0, %v1077
      %v1079 = vpop.f32.mrb[0].mxu0
      %v1080 = vpop.f32.mrb[0].mxu0
      %v1081 = vadd.f32 0.0, %v1080
      %v1082 = vpop.f32.mrb[0].mxu0
      %1083 = vmatprep.mubr.bf16.mxu0 0
      %1084 = vmatmul.mubr.bf16.gmra.mrb[0].mxu0 %v975
      %v1085 = vpop.f32.mrb[0].mxu0
      %v1086 = vadd.f32 0.0, %v1085
      %v1087 = vpop.f32.mrb[0].mxu0
      %v1088 = vpop.f32.mrb[0].mxu0
      %v1089 = vadd.f32 0.0, %v1088
      %v1090 = vpop.f32.mrb[0].mxu0
      %1091 = vmatprep.mubr.bf16.mxu0 0
      %1092 = vmatmul.mubr.bf16.gmra.mrb[0].mxu0 %v976
      %v1093 = vpop.f32.mrb[0].mxu0
      %v1094 = vadd.f32 0.0, %v1093
      %v1095 = vpop.f32.mrb[0].mxu0
      %v1096 = vpop.f32.mrb[0].mxu0
      %v1097 = vadd.f32 0.0, %v1096
      %v1098 = vpop.f32.mrb[0].mxu0
      %1099 = vmatprep.mubr.bf16.mxu0 0
      %1100 = vmatmul.mubr.bf16.gmra.mrb[0].mxu0 %v977
      %v1101 = vpop.f32.mrb[0].mxu0
      %v1102 = vadd.f32 0.0, %v1101
      %v1103 = vpop.f32.mrb[0].mxu0
      %v1104 = vpop.f32.mrb[0].mxu0
      %v1105 = vadd.f32 0.0, %v1104
      %v1106 = vpop.f32.mrb[0].mxu0
      %1107 = vdwg.mxu0
      %v1108 = vadd.f32 %v966, %v1078
      %v1109 = vadd.f32 %v967, %v1081
      %v1110 = vadd.f32 %v968, %v1086
      %v1111 = vadd.f32 %v969, %v1089
      %v1112 = vadd.f32 %v970, %v1094
      %v1113 = vadd.f32 %v971, %v1097
      %v1114 = vadd.f32 %v972, %v1102
      %v1115 = vadd.f32 %v973, %v1105
      %v1132 = vrot.slane %v341, 1
      %v1133 = vrot.slane %v342, 1
      %v1134 = vsel %vm657, %v1132, %v1133
      %v1135 = vrot.slane %v343, 1
      %v1136 = vrot.slane %v344, 1
      %v1137 = vsel %vm657, %v1135, %v1136
      %v1138 = vrot.slane %v345, 1
      %v1139 = vrot.slane %v346, 1
      %v1140 = vsel %vm657, %v1138, %v1139
      %v1141 = vrot.slane %v347, 1
      %v1142 = vrot.slane %v348, 1
      %v1143 = vsel %vm657, %v1141, %v1142
      %v1144 = vrot.slane %v349, 1
      %v1145 = vrot.slane %v350, 1
      %v1146 = vsel %vm657, %v1144, %v1145
      %v1147 = vrot.slane %v351, 1
      %v1148 = vrot.slane %v352, 1
      %v1149 = vsel %vm657, %v1147, %v1148
      %v1150 = vrot.slane %v353, 1
      %v1151 = vrot.slane %v354, 1
      %v1152 = vsel %vm657, %v1150, %v1151
      %v1153 = vrot.slane %v355, 1
      %v1154 = vrot.slane %v356, 1
      %v1155 = vsel %vm657, %v1153, %v1154
      %v1164 = vpack.c.bf16 %v1137, %v1134
      %v1165 = vpack.c.bf16 %v1143, %v1140
      %v1166 = vpack.c.bf16 %v1149, %v1146
      %v1167 = vpack.c.bf16 %v1155, %v1152
      %s1168 = scalar_lea.vmem %s247, 320
      %v1169 = vld [vmem:[%s1168] sm:$0xf]
      %v1170 = vld [vmem:[%s1168 + $0x4] sm:$0xf]
      %v1171 = vld [vmem:[%s1168 + $0x8] sm:$0xf]
      %v1172 = vld [vmem:[%s1168 + $0xc] sm:$0xf]
      %v1173 = vld [vmem:[%s1168 + $0x10] sm:$0xf]
      %v1174 = vld [vmem:[%s1168 + $0x14] sm:$0xf]
      %v1175 = vld [vmem:[%s1168 + $0x18] sm:$0xf]
      %v1176 = vld [vmem:[%s1168 + $0x1c] sm:$0xf]
      %v1177 = vld [vmem:[%s1168 + $0x20] sm:$0xf]
      %v1178 = vld [vmem:[%s1168 + $0x24] sm:$0xf]
      %v1179 = vld [vmem:[%s1168 + $0x28] sm:$0xf]
      %v1180 = vld [vmem:[%s1168 + $0x2c] sm:$0xf]
      %v1181 = vld [vmem:[%s1168 + $0x30] sm:$0xf]
      %v1182 = vld [vmem:[%s1168 + $0x34] sm:$0xf]
      %v1183 = vld [vmem:[%s1168 + $0x38] sm:$0xf]
      %v1184 = vld [vmem:[%s1168 + $0x3c] sm:$0xf]
      %v1201 = vunpack.c.l.b16 %v1169
      %v1202 = vunpack.c.l.b16 %v1170
      %v1203 = vunpack.c.l.b16 %v1171
      %v1204 = vunpack.c.l.b16 %v1172
      %v1205 = vunpack.c.l.b16 %v1173
      %v1206 = vunpack.c.l.b16 %v1174
      %v1207 = vunpack.c.l.b16 %v1175
      %v1208 = vunpack.c.l.b16 %v1176
      %v1209 = vunpack.c.l.b16 %v1177
      %v1210 = vunpack.c.l.b16 %v1178
      %v1211 = vunpack.c.l.b16 %v1179
      %v1212 = vunpack.c.l.b16 %v1180
      %v1213 = vunpack.c.l.b16 %v1181
      %v1214 = vunpack.c.l.b16 %v1182
      %v1215 = vunpack.c.l.b16 %v1183
      %v1216 = vunpack.c.l.b16 %v1184
      %v1217 = vpack.c.b16 %v1202, %v1201
      %v1218 = vpack.c.b16 %v1204, %v1203
      %v1219 = vpack.c.b16 %v1206, %v1205
      %v1220 = vpack.c.b16 %v1208, %v1207
      %v1221 = vpack.c.b16 %v1210, %v1209
      %v1222 = vpack.c.b16 %v1212, %v1211
      %v1223 = vpack.c.b16 %v1214, %v1213
      %v1224 = vpack.c.b16 %v1216, %v1215
      %1233 = vmatprep.subr.bf16.mxu0 0
      %1234 = vmatpush1.bf16.msra.mxu0 %v1217
      %1235 = vmatprep.subr.bf16.mxu0 0
      %1236 = vmatpush1.bf16.msra.mxu0 %v1218
      %1237 = vmatprep.subr.bf16.mxu0 0
      %1238 = vmatpush1.bf16.msra.mxu0 %v1219
      %1239 = vmatprep.subr.bf16.mxu0 0
      %1240 = vmatpush1.bf16.msra.mxu0 %v1220
      %1241 = vmatprep.subr.bf16.mxu0 0
      %1242 = vmatpush1.bf16.msra.mxu0 %v1221
      %1243 = vmatprep.subr.bf16.mxu0 0
      %1244 = vmatpush1.bf16.msra.mxu0 %v1222
      %1245 = vmatprep.subr.bf16.mxu0 0
      %1246 = vmatpush1.bf16.msra.mxu0 %v1223
      %1247 = vmatprep.subr.bf16.mxu0 0
      %1248 = vmatpush1.bf16.msra.mxu0 %v1224
      %1249 = vmatprep.subr.bf16.mxu0 0
      %1250 = vmatpush1.bf16.msra.mxu0 0
      %1251 = vmatprep.subr.bf16.mxu0 0
      %1252 = vmatpush1.bf16.msra.mxu0 0
      %1253 = vmatprep.subr.bf16.mxu0 0
      %1254 = vmatpush1.bf16.msra.mxu0 0
      %1255 = vmatprep.subr.bf16.mxu0 0
      %1256 = vmatpush1.bf16.msra.mxu0 0
      %1257 = vmatprep.subr.bf16.mxu0 0
      %1258 = vmatpush1.bf16.msra.mxu0 0
      %1259 = vmatprep.subr.bf16.mxu0 0
      %1260 = vmatpush1.bf16.msra.mxu0 0
      %1261 = vmatprep.subr.bf16.mxu0 0
      %1262 = vmatpush1.bf16.msra.mxu0 0
      %1263 = vmatprep.subr.bf16.mxu0 0
      %1264 = vmatpush1.bf16.msra.mxu0 0
      %1265 = vmatprep.mubr.bf16.mxu0 0
      %1266 = vmatmul.mubr.bf16.gmra.mrb[0].mxu0 %v1164
      %v1267 = vpop.f32.mrb[0].mxu0
      %v1268 = vadd.f32 0.0, %v1267
      %v1269 = vpop.f32.mrb[0].mxu0
      %v1270 = vpop.f32.mrb[0].mxu0
      %v1271 = vadd.f32 0.0, %v1270
      %v1272 = vpop.f32.mrb[0].mxu0
      %1273 = vmatprep.mubr.bf16.mxu0 0
      %1274 = vmatmul.mubr.bf16.gmra.mrb[0].mxu0 %v1165
      %v1275 = vpop.f32.mrb[0].mxu0
      %v1276 = vadd.f32 0.0, %v1275
      %v1277 = vpop.f32.mrb[0].mxu0
      %v1278 = vpop.f32.mrb[0].mxu0
      %v1279 = vadd.f32 0.0, %v1278
      %v1280 = vpop.f32.mrb[0].mxu0
      %1281 = vmatprep.mubr.bf16.mxu0 0
      %1282 = vmatmul.mubr.bf16.gmra.mrb[0].mxu0 %v1166
      %v1283 = vpop.f32.mrb[0].mxu0
      %v1284 = vadd.f32 0.0, %v1283
      %v1285 = vpop.f32.mrb[0].mxu0
      %v1286 = vpop.f32.mrb[0].mxu0
      %v1287 = vadd.f32 0.0, %v1286
      %v1288 = vpop.f32.mrb[0].mxu0
      %1289 = vmatprep.mubr.bf16.mxu0 0
      %1290 = vmatmul.mubr.bf16.gmra.mrb[0].mxu0 %v1167
      %v1291 = vpop.f32.mrb[0].mxu0
      %v1292 = vadd.f32 0.0, %v1291
      %v1293 = vpop.f32.mrb[0].mxu0
      %v1294 = vpop.f32.mrb[0].mxu0
      %v1295 = vadd.f32 0.0, %v1294
      %v1296 = vpop.f32.mrb[0].mxu0
      %1297 = vdwg.mxu0
      %v1298 = vadd.f32 %v1108, %v1268
      %v1299 = vadd.f32 %v1109, %v1271
      %v1300 = vadd.f32 %v1110, %v1276
      %v1301 = vadd.f32 %v1111, %v1279
      %v1302 = vadd.f32 %v1112, %v1284
      %v1303 = vadd.f32 %v1113, %v1287
      %v1304 = vadd.f32 %v1114, %v1292
      %v1305 = vadd.f32 %v1115, %v1295
      %v1306 = vpack.c.bf16 %v291, %v289
      %v1307 = vpack.c.bf16 %v295, %v293
      %v1308 = vpack.c.bf16 %v299, %v297
      %v1309 = vpack.c.bf16 %v303, %v301
      %s1310 = scalar_lea.vmem %s247, 384
      %v1311 = vld [vmem:[%s1310] sm:$0xf]
      %v1312 = vld [vmem:[%s1310 + $0x4] sm:$0xf]
      %v1313 = vld [vmem:[%s1310 + $0x8] sm:$0xf]
      %v1314 = vld [vmem:[%s1310 + $0xc] sm:$0xf]
      %v1315 = vld [vmem:[%s1310 + $0x10] sm:$0xf]
      %v1316 = vld [vmem:[%s1310 + $0x14] sm:$0xf]
      %v1317 = vld [vmem:[%s1310 + $0x18] sm:$0xf]
      %v1318 = vld [vmem:[%s1310 + $0x1c] sm:$0xf]
      %v1319 = vld [vmem:[%s1310 + $0x20] sm:$0xf]
      %v1320 = vld [vmem:[%s1310 + $0x24] sm:$0xf]
      %v1321 = vld [vmem:[%s1310 + $0x28] sm:$0xf]
      %v1322 = vld [vmem:[%s1310 + $0x2c] sm:$0xf]
      %v1323 = vld [vmem:[%s1310 + $0x30] sm:$0xf]
      %v1324 = vld [vmem:[%s1310 + $0x34] sm:$0xf]
      %v1325 = vld [vmem:[%s1310 + $0x38] sm:$0xf]
      %v1326 = vld [vmem:[%s1310 + $0x3c] sm:$0xf]
      %v1343 = vunpack.c.l.b16 %v1311
      %v1344 = vunpack.c.l.b16 %v1312
      %v1345 = vunpack.c.l.b16 %v1313
      %v1346 = vunpack.c.l.b16 %v1314
      %v1347 = vunpack.c.l.b16 %v1315
      %v1348 = vunpack.c.l.b16 %v1316
      %v1349 = vunpack.c.l.b16 %v1317
      %v1350 = vunpack.c.l.b16 %v1318
      %v1351 = vunpack.c.l.b16 %v1319
      %v1352 = vunpack.c.l.b16 %v1320
      %v1353 = vunpack.c.l.b16 %v1321
      %v1354 = vunpack.c.l.b16 %v1322
      %v1355 = vunpack.c.l.b16 %v1323
      %v1356 = vunpack.c.l.b16 %v1324
      %v1357 = vunpack.c.l.b16 %v1325
      %v1358 = vunpack.c.l.b16 %v1326
      %v1359 = vpack.c.b16 %v1344, %v1343
      %v1360 = vpack.c.b16 %v1346, %v1345
      %v1361 = vpack.c.b16 %v1348, %v1347
      %v1362 = vpack.c.b16 %v1350, %v1349
      %v1363 = vpack.c.b16 %v1352, %v1351
      %v1364 = vpack.c.b16 %v1354, %v1353
      %v1365 = vpack.c.b16 %v1356, %v1355
      %v1366 = vpack.c.b16 %v1358, %v1357
      %1375 = vmatprep.subr.bf16.mxu0 0
      %1376 = vmatpush1.bf16.msra.mxu0 %v1359
      %1377 = vmatprep.subr.bf16.mxu0 0
      %1378 = vmatpush1.bf16.msra.mxu0 %v1360
      %1379 = vmatprep.subr.bf16.mxu0 0
      %1380 = vmatpush1.bf16.msra.mxu0 %v1361
      %1381 = vmatprep.subr.bf16.mxu0 0
      %1382 = vmatpush1.bf16.msra.mxu0 %v1362
      %1383 = vmatprep.subr.bf16.mxu0 0
      %1384 = vmatpush1.bf16.msra.mxu0 %v1363
      %1385 = vmatprep.subr.bf16.mxu0 0
      %1386 = vmatpush1.bf16.msra.mxu0 %v1364
      %1387 = vmatprep.subr.bf16.mxu0 0
      %1388 = vmatpush1.bf16.msra.mxu0 %v1365
      %1389 = vmatprep.subr.bf16.mxu0 0
      %1390 = vmatpush1.bf16.msra.mxu0 %v1366
      %1391 = vmatprep.subr.bf16.mxu0 0
      %1392 = vmatpush1.bf16.msra.mxu0 0
      %1393 = vmatprep.subr.bf16.mxu0 0
      %1394 = vmatpush1.bf16.msra.mxu0 0
      %1395 = vmatprep.subr.bf16.mxu0 0
      %1396 = vmatpush1.bf16.msra.mxu0 0
      %1397 = vmatprep.subr.bf16.mxu0 0
      %1398 = vmatpush1.bf16.msra.mxu0 0
      %1399 = vmatprep.subr.bf16.mxu0 0
      %1400 = vmatpush1.bf16.msra.mxu0 0
      %1401 = vmatprep.subr.bf16.mxu0 0
      %1402 = vmatpush1.bf16.msra.mxu0 0
      %1403 = vmatprep.subr.bf16.mxu0 0
      %1404 = vmatpush1.bf16.msra.mxu0 0
      %1405 = vmatprep.subr.bf16.mxu0 0
      %1406 = vmatpush1.bf16.msra.mxu0 0
      %1407 = vmatprep.mubr.bf16.mxu0 0
      %1408 = vmatmul.mubr.bf16.gmra.mrb[0].mxu0 %v1306
      %v1409 = vpop.f32.mrb[0].mxu0
      %v1410 = vadd.f32 0.0, %v1409
      %v1411 = vpop.f32.mrb[0].mxu0
      %v1412 = vpop.f32.mrb[0].mxu0
      %v1413 = vadd.f32 0.0, %v1412
      %v1414 = vpop.f32.mrb[0].mxu0
      %1415 = vmatprep.mubr.bf16.mxu0 0
      %1416 = vmatmul.mubr.bf16.gmra.mrb[0].mxu0 %v1307
      %v1417 = vpop.f32.mrb[0].mxu0
      %v1418 = vadd.f32 0.0, %v1417
      %v1419 = vpop.f32.mrb[0].mxu0
      %v1420 = vpop.f32.mrb[0].mxu0
      %v1421 = vadd.f32 0.0, %v1420
      %v1422 = vpop.f32.mrb[0].mxu0
      %1423 = vmatprep.mubr.bf16.mxu0 0
      %1424 = vmatmul.mubr.bf16.gmra.mrb[0].mxu0 %v1308
      %v1425 = vpop.f32.mrb[0].mxu0
      %v1426 = vadd.f32 0.0, %v1425
      %v1427 = vpop.f32.mrb[0].mxu0
      %v1428 = vpop.f32.mrb[0].mxu0
      %v1429 = vadd.f32 0.0, %v1428
      %v1430 = vpop.f32.mrb[0].mxu0
      %1431 = vmatprep.mubr.bf16.mxu0 0
      %1432 = vmatmul.mubr.bf16.gmra.mrb[0].mxu0 %v1309
      %v1433 = vpop.f32.mrb[0].mxu0
      %v1434 = vadd.f32 0.0, %v1433
      %v1435 = vpop.f32.mrb[0].mxu0
      %v1436 = vpop.f32.mrb[0].mxu0
      %v1437 = vadd.f32 0.0, %v1436
      %v1438 = vpop.f32.mrb[0].mxu0
      %1439 = vdwg.mxu0
      %v1440 = vadd.f32 %v1298, %v1410
      %v1441 = vadd.f32 %v1299, %v1413
      %v1442 = vadd.f32 %v1300, %v1418
      %v1443 = vadd.f32 %v1301, %v1421
      %v1444 = vadd.f32 %v1302, %v1426
      %v1445 = vadd.f32 %v1303, %v1429
      %v1446 = vadd.f32 %v1304, %v1434
      %v1447 = vadd.f32 %v1305, %v1437
      %v1448 = vpack.c.bf16 %v317, %v316
      %v1449 = vpack.c.bf16 %v319, %v318
      %v1450 = vpack.c.bf16 %v321, %v320
      %v1451 = vpack.c.bf16 %v323, %v322
      %s1452 = scalar_lea.vmem %s247, 448
      %v1453 = vld [vmem:[%s1452] sm:$0xf]
      %v1454 = vld [vmem:[%s1452 + $0x4] sm:$0xf]
      %v1455 = vld [vmem:[%s1452 + $0x8] sm:$0xf]
      %v1456 = vld [vmem:[%s1452 + $0xc] sm:$0xf]
      %v1457 = vld [vmem:[%s1452 + $0x10] sm:$0xf]
      %v1458 = vld [vmem:[%s1452 + $0x14] sm:$0xf]
      %v1459 = vld [vmem:[%s1452 + $0x18] sm:$0xf]
      %v1460 = vld [vmem:[%s1452 + $0x1c] sm:$0xf]
      %v1461 = vld [vmem:[%s1452 + $0x20] sm:$0xf]
      %v1462 = vld [vmem:[%s1452 + $0x24] sm:$0xf]
      %v1463 = vld [vmem:[%s1452 + $0x28] sm:$0xf]
      %v1464 = vld [vmem:[%s1452 + $0x2c] sm:$0xf]
      %v1465 = vld [vmem:[%s1452 + $0x30] sm:$0xf]
      %v1466 = vld [vmem:[%s1452 + $0x34] sm:$0xf]
      %v1467 = vld [vmem:[%s1452 + $0x38] sm:$0xf]
      %v1468 = vld [vmem:[%s1452 + $0x3c] sm:$0xf]
      %v1485 = vunpack.c.l.b16 %v1453
      %v1486 = vunpack.c.l.b16 %v1454
      %v1487 = vunpack.c.l.b16 %v1455
      %v1488 = vunpack.c.l.b16 %v1456
      %v1489 = vunpack.c.l.b16 %v1457
      %v1490 = vunpack.c.l.b16 %v1458
      %v1491 = vunpack.c.l.b16 %v1459
      %v1492 = vunpack.c.l.b16 %v1460
      %v1493 = vunpack.c.l.b16 %v1461
      %v1494 = vunpack.c.l.b16 %v1462
      %v1495 = vunpack.c.l.b16 %v1463
      %v1496 = vunpack.c.l.b16 %v1464
      %v1497 = vunpack.c.l.b16 %v1465
      %v1498 = vunpack.c.l.b16 %v1466
      %v1499 = vunpack.c.l.b16 %v1467
      %v1500 = vunpack.c.l.b16 %v1468
      %v1501 = vpack.c.b16 %v1486, %v1485
      %v1502 = vpack.c.b16 %v1488, %v1487
      %v1503 = vpack.c.b16 %v1490, %v1489
      %v1504 = vpack.c.b16 %v1492, %v1491
      %v1505 = vpack.c.b16 %v1494, %v1493
      %v1506 = vpack.c.b16 %v1496, %v1495
      %v1507 = vpack.c.b16 %v1498, %v1497
      %v1508 = vpack.c.b16 %v1500, %v1499
      %1517 = vmatprep.subr.bf16.mxu0 0
      %1518 = vmatpush1.bf16.msra.mxu0 %v1501
      %1519 = vmatprep.subr.bf16.mxu0 0
      %1520 = vmatpush1.bf16.msra.mxu0 %v1502
      %1521 = vmatprep.subr.bf16.mxu0 0
      %1522 = vmatpush1.bf16.msra.mxu0 %v1503
      %1523 = vmatprep.subr.bf16.mxu0 0
      %1524 = vmatpush1.bf16.msra.mxu0 %v1504
      %1525 = vmatprep.subr.bf16.mxu0 0
      %1526 = vmatpush1.bf16.msra.mxu0 %v1505
      %1527 = vmatprep.subr.bf16.mxu0 0
      %1528 = vmatpush1.bf16.msra.mxu0 %v1506
      %1529 = vmatprep.subr.bf16.mxu0 0
      %1530 = vmatpush1.bf16.msra.mxu0 %v1507
      %1531 = vmatprep.subr.bf16.mxu0 0
      %1532 = vmatpush1.bf16.msra.mxu0 %v1508
      %1533 = vmatprep.subr.bf16.mxu0 0
      %1534 = vmatpush1.bf16.msra.mxu0 0
      %1535 = vmatprep.subr.bf16.mxu0 0
      %1536 = vmatpush1.bf16.msra.mxu0 0
      %1537 = vmatprep.subr.bf16.mxu0 0
      %1538 = vmatpush1.bf16.msra.mxu0 0
      %1539 = vmatprep.subr.bf16.mxu0 0
      %1540 = vmatpush1.bf16.msra.mxu0 0
      %1541 = vmatprep.subr.bf16.mxu0 0
      %1542 = vmatpush1.bf16.msra.mxu0 0
      %1543 = vmatprep.subr.bf16.mxu0 0
      %1544 = vmatpush1.bf16.msra.mxu0 0
      %1545 = vmatprep.subr.bf16.mxu0 0
      %1546 = vmatpush1.bf16.msra.mxu0 0
      %1547 = vmatprep.subr.bf16.mxu0 0
      %1548 = vmatpush1.bf16.msra.mxu0 0
      %1549 = vmatprep.mubr.bf16.mxu0 0
      %1550 = vmatmul.mubr.bf16.gmra.mrb[0].mxu0 %v1448
      %v1551 = vpop.f32.mrb[0].mxu0
      %v1552 = vadd.f32 0.0, %v1551
      %v1553 = vpop.f32.mrb[0].mxu0
      %v1554 = vpop.f32.mrb[0].mxu0
      %v1555 = vadd.f32 0.0, %v1554
      %v1556 = vpop.f32.mrb[0].mxu0
      %1557 = vmatprep.mubr.bf16.mxu0 0
      %1558 = vmatmul.mubr.bf16.gmra.mrb[0].mxu0 %v1449
      %v1559 = vpop.f32.mrb[0].mxu0
      %v1560 = vadd.f32 0.0, %v1559
      %v1561 = vpop.f32.mrb[0].mxu0
      %v1562 = vpop.f32.mrb[0].mxu0
      %v1563 = vadd.f32 0.0, %v1562
      %v1564 = vpop.f32.mrb[0].mxu0
      %1565 = vmatprep.mubr.bf16.mxu0 0
      %1566 = vmatmul.mubr.bf16.gmra.mrb[0].mxu0 %v1450
      %v1567 = vpop.f32.mrb[0].mxu0
      %v1568 = vadd.f32 0.0, %v1567
      %v1569 = vpop.f32.mrb[0].mxu0
      %v1570 = vpop.f32.mrb[0].mxu0
      %v1571 = vadd.f32 0.0, %v1570
      %v1572 = vpop.f32.mrb[0].mxu0
      %1573 = vmatprep.mubr.bf16.mxu0 0
      %1574 = vmatmul.mubr.bf16.gmra.mrb[0].mxu0 %v1451
      %v1575 = vpop.f32.mrb[0].mxu0
      %v1576 = vadd.f32 0.0, %v1575
      %v1577 = vpop.f32.mrb[0].mxu0
      %v1578 = vpop.f32.mrb[0].mxu0
      %v1579 = vadd.f32 0.0, %v1578
      %v1580 = vpop.f32.mrb[0].mxu0
      %1581 = vdwg.mxu0
      %v1582 = vadd.f32 %v1440, %v1552
      %v1583 = vadd.f32 %v1441, %v1555
      %v1584 = vadd.f32 %v1442, %v1560
      %v1585 = vadd.f32 %v1443, %v1563
      %v1586 = vadd.f32 %v1444, %v1568
      %v1587 = vadd.f32 %v1445, %v1571
      %v1588 = vadd.f32 %v1446, %v1576
      %v1589 = vadd.f32 %v1447, %v1579
      %v1592 = vrot.slane %v303, 1
      %v1593 = vrot.slane %v304, 1
      %v1594 = vsel %vm657, %v1592, %v1593
      %v1596 = vpack.c.bf16 %v666, %v663
      %v1597 = vpack.c.bf16 %v672, %v669
      %v1598 = vpack.c.bf16 %v678, %v675
      %v1599 = vpack.c.bf16 %v1594, %v681
      %s1600 = scalar_lea.vmem %s247, 512
      %v1601 = vld [vmem:[%s1600] sm:$0xf]
      %v1602 = vld [vmem:[%s1600 + $0x4] sm:$0xf]
      %v1603 = vld [vmem:[%s1600 + $0x8] sm:$0xf]
      %v1604 = vld [vmem:[%s1600 + $0xc] sm:$0xf]
      %v1605 = vld [vmem:[%s1600 + $0x10] sm:$0xf]
      %v1606 = vld [vmem:[%s1600 + $0x14] sm:$0xf]
      %v1607 = vld [vmem:[%s1600 + $0x18] sm:$0xf]
      %v1608 = vld [vmem:[%s1600 + $0x1c] sm:$0xf]
      %v1609 = vld [vmem:[%s1600 + $0x20] sm:$0xf]
      %v1610 = vld [vmem:[%s1600 + $0x24] sm:$0xf]
      %v1611 = vld [vmem:[%s1600 + $0x28] sm:$0xf]
      %v1612 = vld [vmem:[%s1600 + $0x2c] sm:$0xf]
      %v1613 = vld [vmem:[%s1600 + $0x30] sm:$0xf]
      %v1614 = vld [vmem:[%s1600 + $0x34] sm:$0xf]
      %v1615 = vld [vmem:[%s1600 + $0x38] sm:$0xf]
      %v1616 = vld [vmem:[%s1600 + $0x3c] sm:$0xf]
      %v1633 = vunpack.c.l.b16 %v1601
      %v1634 = vunpack.c.l.b16 %v1602
      %v1635 = vunpack.c.l.b16 %v1603
      %v1636 = vunpack.c.l.b16 %v1604
      %v1637 = vunpack.c.l.b16 %v1605
      %v1638 = vunpack.c.l.b16 %v1606
      %v1639 = vunpack.c.l.b16 %v1607
      %v1640 = vunpack.c.l.b16 %v1608
      %v1641 = vunpack.c.l.b16 %v1609
      %v1642 = vunpack.c.l.b16 %v1610
      %v1643 = vunpack.c.l.b16 %v1611
      %v1644 = vunpack.c.l.b16 %v1612
      %v1645 = vunpack.c.l.b16 %v1613
      %v1646 = vunpack.c.l.b16 %v1614
      %v1647 = vunpack.c.l.b16 %v1615
      %v1648 = vunpack.c.l.b16 %v1616
      %v1649 = vpack.c.b16 %v1634, %v1633
      %v1650 = vpack.c.b16 %v1636, %v1635
      %v1651 = vpack.c.b16 %v1638, %v1637
      %v1652 = vpack.c.b16 %v1640, %v1639
      %v1653 = vpack.c.b16 %v1642, %v1641
      %v1654 = vpack.c.b16 %v1644, %v1643
      %v1655 = vpack.c.b16 %v1646, %v1645
      %v1656 = vpack.c.b16 %v1648, %v1647
      %1665 = vmatprep.subr.bf16.mxu0 0
      %1666 = vmatpush1.bf16.msra.mxu0 %v1649
      %1667 = vmatprep.subr.bf16.mxu0 0
      %1668 = vmatpush1.bf16.msra.mxu0 %v1650
      %1669 = vmatprep.subr.bf16.mxu0 0
      %1670 = vmatpush1.bf16.msra.mxu0 %v1651
      %1671 = vmatprep.subr.bf16.mxu0 0
      %1672 = vmatpush1.bf16.msra.mxu0 %v1652
      %1673 = vmatprep.subr.bf16.mxu0 0
      %1674 = vmatpush1.bf16.msra.mxu0 %v1653
      %1675 = vmatprep.subr.bf16.mxu0 0
      %1676 = vmatpush1.bf16.msra.mxu0 %v1654
      %1677 = vmatprep.subr.bf16.mxu0 0
      %1678 = vmatpush1.bf16.msra.mxu0 %v1655
      %1679 = vmatprep.subr.bf16.mxu0 0
      %1680 = vmatpush1.bf16.msra.mxu0 %v1656
      %1681 = vmatprep.subr.bf16.mxu0 0
      %1682 = vmatpush1.bf16.msra.mxu0 0
      %1683 = vmatprep.subr.bf16.mxu0 0
      %1684 = vmatpush1.bf16.msra.mxu0 0
      %1685 = vmatprep.subr.bf16.mxu0 0
      %1686 = vmatpush1.bf16.msra.mxu0 0
      %1687 = vmatprep.subr.bf16.mxu0 0
      %1688 = vmatpush1.bf16.msra.mxu0 0
      %1689 = vmatprep.subr.bf16.mxu0 0
      %1690 = vmatpush1.bf16.msra.mxu0 0
      %1691 = vmatprep.subr.bf16.mxu0 0
      %1692 = vmatpush1.bf16.msra.mxu0 0
      %1693 = vmatprep.subr.bf16.mxu0 0
      %1694 = vmatpush1.bf16.msra.mxu0 0
      %1695 = vmatprep.subr.bf16.mxu0 0
      %1696 = vmatpush1.bf16.msra.mxu0 0
      %1697 = vmatprep.mubr.bf16.mxu0 0
      %1698 = vmatmul.mubr.bf16.gmra.mrb[0].mxu0 %v1596
      %v1699 = vpop.f32.mrb[0].mxu0
      %v1700 = vadd.f32 0.0, %v1699
      %v1701 = vpop.f32.mrb[0].mxu0
      %v1702 = vpop.f32.mrb[0].mxu0
      %v1703 = vadd.f32 0.0, %v1702
      %v1704 = vpop.f32.mrb[0].mxu0
      %1705 = vmatprep.mubr.bf16.mxu0 0
      %1706 = vmatmul.mubr.bf16.gmra.mrb[0].mxu0 %v1597
      %v1707 = vpop.f32.mrb[0].mxu0
      %v1708 = vadd.f32 0.0, %v1707
      %v1709 = vpop.f32.mrb[0].mxu0
      %v1710 = vpop.f32.mrb[0].mxu0
      %v1711 = vadd.f32 0.0, %v1710
      %v1712 = vpop.f32.mrb[0].mxu0
      %1713 = vmatprep.mubr.bf16.mxu0 0
      %1714 = vmatmul.mubr.bf16.gmra.mrb[0].mxu0 %v1598
      %v1715 = vpop.f32.mrb[0].mxu0
      %v1716 = vadd.f32 0.0, %v1715
      %v1717 = vpop.f32.mrb[0].mxu0
      %v1718 = vpop.f32.mrb[0].mxu0
      %v1719 = vadd.f32 0.0, %v1718
      %v1720 = vpop.f32.mrb[0].mxu0
      %1721 = vmatprep.mubr.bf16.mxu0 0
      %1722 = vmatmul.mubr.bf16.gmra.mrb[0].mxu0 %v1599
      %v1723 = vpop.f32.mrb[0].mxu0
      %v1724 = vadd.f32 0.0, %v1723
      %v1725 = vpop.f32.mrb[0].mxu0
      %v1726 = vpop.f32.mrb[0].mxu0
      %v1727 = vadd.f32 0.0, %v1726
      %v1728 = vpop.f32.mrb[0].mxu0
      %1729 = vdwg.mxu0
      %v1730 = vadd.f32 %v1582, %v1700
      %v1731 = vadd.f32 %v1583, %v1703
      %v1732 = vadd.f32 %v1584, %v1708
      %v1733 = vadd.f32 %v1585, %v1711
      %v1734 = vadd.f32 %v1586, %v1716
      %v1735 = vadd.f32 %v1587, %v1719
      %v1736 = vadd.f32 %v1588, %v1724
      %v1737 = vadd.f32 %v1589, %v1727
      %1738 = vst [vmem:[%s255] sm:$0xff] %v1730
      %1739 = vst [vmem:[%s255 + $0x8] sm:$0xff] %v1731
      %1740 = vst [vmem:[%s255 + $0x10] sm:$0xff] %v1732
      %1741 = vst [vmem:[%s255 + $0x18] sm:$0xff] %v1733
      %1742 = vst [vmem:[%s255 + $0x20] sm:$0xff] %v1734
      %1743 = vst [vmem:[%s255 + $0x28] sm:$0xff] %v1735
      %1744 = vst [vmem:[%s255 + $0x30] sm:$0xff] %v1736
      %1745 = vst [vmem:[%s255 + $0x38] sm:$0xff] %v1737
      %v1746 = vadd.f32 %v1730, %v1731
      %v1747 = vadd.f32 %v1746, %v1732
      %v1748 = vadd.f32 %v1747, %v1733
      %v1749 = vadd.f32 %v1748, %v1734
      %v1750 = vadd.f32 %v1749, %v1735
      %v1751 = vadd.f32 %v1750, %v1736
      %v1752 = vadd.f32 %v1751, %v1737
      %v1753 = vrot.slane %v1752, 4
      %v1754 = vadd.f32 %v1752, %v1753
      %v1755 = vrot.slane %v1754, 2
      %v1756 = vadd.f32 %v1754, %v1755
      %v1757 = vrot.slane %v1756, 1
      %v1758 = vadd.f32 %v1756, %v1757
      %1759 = vst [vmem:[%s261] sm:$0x1] %v1758
      %v1760 = vmul.f32 %v1730, %v1730
      %v1761 = vmul.f32 %v1731, %v1731
      %v1762 = vmul.f32 %v1732, %v1732
      %v1763 = vmul.f32 %v1733, %v1733
      %v1764 = vmul.f32 %v1734, %v1734
      %v1765 = vmul.f32 %v1735, %v1735
      %v1766 = vmul.f32 %v1736, %v1736
      %v1767 = vmul.f32 %v1737, %v1737
      %v1768 = vadd.f32 %v1760, %v1761
      %v1769 = vadd.f32 %v1768, %v1762
      %v1770 = vadd.f32 %v1769, %v1763
      %v1771 = vadd.f32 %v1770, %v1764
      %v1772 = vadd.f32 %v1771, %v1765
      %v1773 = vadd.f32 %v1772, %v1766
      %v1774 = vadd.f32 %v1773, %v1767
      %v1775 = vrot.slane %v1774, 4
      %v1776 = vadd.f32 %v1774, %v1775
      %v1777 = vrot.slane %v1776, 2
      %v1778 = vadd.f32 %v1776, %v1777
      %v1779 = vrot.slane %v1778, 1
      %v1780 = vadd.f32 %v1778, %v1779
      %1781 = vst [vmem:[%s267] sm:$0x1] %v1780
      %p1782 = scmp.lt.s32.totalorder %s20, 1
      %s1783 = scalar_select %p1782, %s20, 1
      %p1784 = scmp.lt.s32.totalorder %s21, 0
      %s1785 = scalar_select %p1784, %s21, 0
      %s1786 = smul.addr %s1783, 8
      %s1787 = sadd.s32 %s1785, %s1786
      %s1788 = smul.addr %s1787, 8
      %s1789 = scalar_lea.vmem %s2, %s1788
      %p1790 = scmp.lt.s32.totalorder %s20, 1
      %s1791 = scalar_select %p1790, %s20, 1
      %p1792 = scmp.lt.s32.totalorder %s21, 0
      %s1793 = scalar_select %p1792, %s21, 0
      %s1794 = sadd.s32 %s1793, %s1791
      %s1795 = scalar_lea.vmem %s3, %s1794
      %p1796 = scmp.lt.s32.totalorder %s20, 1
      %s1797 = scalar_select %p1796, %s20, 1
      %p1798 = scmp.lt.s32.totalorder %s21, 0
      %s1799 = scalar_select %p1798, %s21, 0
      %s1800 = sadd.s32 %s1799, %s1797
      %s1801 = scalar_lea.vmem %s4, %s1800
      // Predicated region
      $region29: #{basic_block_forward.5} parent=27 // pred_check
        %p1802 = pneg %p100
      $region30: #{basic_block_forward.5} parent=27 // pred_check_branch
        %1804 = sbr.rel (%p1802) target = $region32
      $region31: #{basic_block_forward.5} parent=27 // pred_region
        _
      $region32: #{basic_block_forward.5} parent=27 // pred_fallthru
        _
      // Predicated region
      $region33: #{basic_block_forward.5} parent=27 // pred_check
        %p1805 = pneg %p128
      $region34: #{basic_block_forward.5} parent=27 // pred_check_branch
        %1807 = sbr.rel (%p1805) target = $region36
      $region35: #{basic_block_forward.5} parent=27 // pred_region
        _
      $region36: #{basic_block_forward.5} parent=27 // pred_fallthru
        _
      // Predicated region
      $region37: #{basic_block_forward.5} parent=27 // pred_check
        %p1808 = pneg %p156
      $region38: #{basic_block_forward.5} parent=27 // pred_check_branch
        %1810 = sbr.rel (%p1808) target = $region40
      $region39: #{basic_block_forward.5} parent=27 // pred_region
        _
      $region40: #{basic_block_forward.5} parent=27 // pred_fallthru
        _
    $region28: #{basic_block_forward.5} parent=5 // pred_fallthru
      _
    %p1811 = scmp.le.s32.totalorder 2, %s11
    // Predicated region
    $region41: #{basic_block_forward.5} parent=5 // pred_check
      %p1812 = pneg %p1811
    $region42: #{basic_block_forward.5} parent=5 // pred_check_branch
      %1814 = sbr.rel (%p1812) target = $region44
    $region43: #{basic_block_forward.5} parent=5 // pred_region
      %s1815 = ssub.s32 %s11, 2
      // Predicated region
      $region45: #{basic_block_forward.5} parent=43 // pred_check
        %p1816 = pneg %p106
      $region46: #{basic_block_forward.5} parent=43 // pred_check_branch
        %1818 = sbr.rel (%p1816) target = $region48
      $region47: #{basic_block_forward.5} parent=43 // pred_region
        %p1819 = scmp.lt.s32.totalorder %s22, 1
        %s1820 = scalar_select %p1819, %s22, 1
        %p1821 = scmp.lt.s32.totalorder %s23, 0
        %s1822 = scalar_select %p1821, %s23, 0
        %s1823 = smul.addr %s1820, 8
        %s1824 = sadd.s32 %s1822, %s1823
        %s1825 = smul.addr %s1824, 8
        %s1826 = scalar_lea.vmem %s2, %s1825
      $region48: #{basic_block_forward.5} parent=43 // pred_fallthru
        _
      // Predicated region
      $region49: #{basic_block_forward.5} parent=43 // pred_check
        %p1827 = pneg %p134
      $region50: #{basic_block_forward.5} parent=43 // pred_check_branch
        %1829 = sbr.rel (%p1827) target = $region52
      $region51: #{basic_block_forward.5} parent=43 // pred_region
        %p1830 = scmp.lt.s32.totalorder %s22, 1
        %s1831 = scalar_select %p1830, %s22, 1
        %p1832 = scmp.lt.s32.totalorder %s23, 0
        %s1833 = scalar_select %p1832, %s23, 0
        %s1834 = sadd.s32 %s1833, %s1831
        %s1835 = scalar_lea.vmem %s3, %s1834
      $region52: #{basic_block_forward.5} parent=43 // pred_fallthru
        _
      // Predicated region
      $region53: #{basic_block_forward.5} parent=43 // pred_check
        %p1836 = pneg %p162
      $region54: #{basic_block_forward.5} parent=43 // pred_check_branch
        %1838 = sbr.rel (%p1836) target = $region56
      $region55: #{basic_block_forward.5} parent=43 // pred_region
        %p1839 = scmp.lt.s32.totalorder %s22, 1
        %s1840 = scalar_select %p1839, %s22, 1
        %p1841 = scmp.lt.s32.totalorder %s23, 0
        %s1842 = scalar_select %p1841, %s23, 0
        %s1843 = sadd.s32 %s1842, %s1840
        %s1844 = scalar_lea.vmem %s4, %s1843
      $region56: #{basic_block_forward.5} parent=43 // pred_fallthru
        _
    $region44: #{basic_block_forward.5} parent=5 // pred_fallthru
      _
  $region6: #{basic_block_forward.5} parent=0 // loop_footer
    %s15 = sadd.s32 1, %s11
  $region7: #{basic_block_forward.5} parent=0 // loop_footer_branch
    %10 = sbr.rel target = $region3
  $region8: #{basic_block_forward.5} parent=0 // loop_exit
    _

// kernel: basic_block_forward.7
$region0: #{basic_block_forward.7}
  #allocation0 [shape = 'u32[]', space=smem, size = 0x4, offset = 0x4, fixed_abs, tag = 'smem constant byte address 0x4 - core index']
  #allocation1 [shape = 'u32[144,128]{1,0:T(1,128)}', space=vmem, size = 0x12000, scoped, tag = 'internal scratch']
  %s0 = inlined_call_operand.vmem [shape: bf16[2,1,10,10,128], index: 0, kind: input, shape index: {}]
  %s1 = inlined_call_operand.vmem [shape: bf16[9,128,128], index: 1, kind: input, shape index: {}]
  %s2 = inlined_call_operand.vmem [shape: f32[2,64,128], index: 2, kind: output, shape index: {0}]
  %s3 = inlined_call_operand.vmem [shape: f32[2,1,128], index: 3, kind: output, shape index: {1}]
  %s4 = inlined_call_operand.vmem [shape: f32[2,1,128], index: 4, kind: output, shape index: {2}]
  %5 = xla_tuple %s2, %s3, %s4
  %s6 = sld [smem:[#allocation0]]
  $region57: #{basic_block_forward.7} parent=0
    _
  %s8 = ssub.s32 1, %s6
  %s9 = scalar_select 0, %s8, %s6
  loop: start=0, step=1, limit=4
  $region2: #{basic_block_forward.7} parent=0 // loop_pre_header
    _
  $region3: #{basic_block_forward.7} parent=0 // loop_header
    %s11 = sphi 0, %s15
    %p12 = scmp.ge.s32.totalorder %s11, 4
    %s18 = sphi 0, %s30
    %s19 = sphi 0, %s26
    %s20 = sphi 0, %s18
    %s21 = sphi 0, %s19
    %s22 = sphi 0, %s20
    %s23 = sphi 0, %s21
    %s33 = sphi 0, %s35
    %s36 = sphi 0, %s33
    %s37 = sphi 0, %s36
    %s53 = sphi 0, %s37
    %s59 = sphi 0, %s61
    %s62 = sphi 0, %s59
    %s63 = sphi 0, %s62
    %s79 = sphi 0, %s63
    %s87 = sphi 0, %s89
    %s90 = sphi 0, %s87
    %s91 = sphi 0, %s90
    %s107 = sphi 0, %s91
    %s115 = sphi 0, %s117
    %s118 = sphi 0, %s115
    %s119 = sphi 0, %s118
    %s135 = sphi 0, %s119
    %s143 = sphi 0, %s145
    %s146 = sphi 0, %s143
    %s147 = sphi 0, %s146
    %s163 = sphi 0, %s147
  $region4: #{basic_block_forward.7} parent=0 // loop_header_branch
    %14 = sbr.rel (%p12) target = $region8
  $region5: #{basic_block_forward.7} parent=0 // loop_body
    %s16 = ssub.s32 %s11, 1
    %s17 = ssub.s32 %s11, 2
    %s24 = sadd.s32 1, %s19
    %p25 = scmp.ge.s32.totalorder %s24, 1
    %s26 = scalar_select %p25, 0, %s24
    %s27 = sadd.s32 1, %s18
    %s28 = scalar_select %p25, %s27, %s18
    %p29 = scmp.ge.s32.totalorder %s28, 2
    %s30 = scalar_select %p29, 0, %s28
    %s31 = ssub.s32 %s18, %s30
    %p32 = scmp.eq.s32.totalorder %s31, 0
    %s34 = sadd.s32 %s33, 1
    %s35 = scalar_select %p32, %s33, %s34
    %p38 = pneg %p32
    %p39 = scmp.eq.s32.totalorder %s11, 1
    %p40 = por %p38, %p39
    %p41 = scmp.ne.s32.totalorder %s33, %s36
    %p42 = scmp.eq.s32.totalorder %s11, 0
    %p43 = por %p41, %p42
    %p44 = scmp.ne.s32.totalorder %s33, %s36
    %p45 = scmp.eq.s32.totalorder %s16, 1
    %p46 = por %p44, %p45
    %p47 = scmp.ne.s32.totalorder %s36, %s37
    %p48 = scmp.eq.s32.totalorder %s16, 0
    %p49 = por %p47, %p48
    %p50 = scmp.ne.s32.totalorder %s36, %s37
    %p51 = scmp.eq.s32.totalorder %s17, 1
    %p52 = por %p50, %p51
    %p54 = scmp.ne.s32.totalorder %s37, %s53
    %p55 = scmp.eq.s32.totalorder %s17, 0
    %p56 = por %p54, %p55
    %s57 = ssub.s32 %s19, %s26
    %p58 = scmp.eq.s32.totalorder %s57, 0
    %s60 = sadd.s32 %s59, 1
    %s61 = scalar_select %p58, %s59, %s60
    %p64 = pneg %p58
    %p65 = scmp.eq.s32.totalorder %s11, 1
    %p66 = por %p64, %p65
    %p67 = scmp.ne.s32.totalorder %s59, %s62
    %p68 = scmp.eq.s32.totalorder %s11, 0
    %p69 = por %p67, %p68
    %p70 = scmp.ne.s32.totalorder %s59, %s62
    %p71 = scmp.eq.s32.totalorder %s16, 1
    %p72 = por %p70, %p71
    %p73 = scmp.ne.s32.totalorder %s62, %s63
    %p74 = scmp.eq.s32.totalorder %s16, 0
    %p75 = por %p73, %p74
    %p76 = scmp.ne.s32.totalorder %s62, %s63
    %p77 = scmp.eq.s32.totalorder %s17, 1
    %p78 = por %p76, %p77
    %p80 = scmp.ne.s32.totalorder %s63, %s79
    %p81 = scmp.eq.s32.totalorder %s17, 0
    %p82 = por %p80, %p81
    %s83 = ssub.s32 %s18, %s30
    %s84 = ssub.s32 %s19, %s26
    %s85 = sor.u32 %s83, %s84
    %p86 = scmp.eq.s32.totalorder %s85, 0
    %s88 = sadd.s32 %s87, 1
    %s89 = scalar_select %p86, %s87, %s88
    %p92 = pneg %p86
    %p93 = scmp.eq.s32.totalorder %s11, 1
    %p94 = por %p92, %p93
    %p95 = scmp.ne.s32.totalorder %s87, %s90
    %p96 = scmp.eq.s32.totalorder %s11, 0
    %p97 = por %p95, %p96
    %p98 = scmp.ne.s32.totalorder %s87, %s90
    %p99 = scmp.eq.s32.totalorder %s16, 1
    %p100 = por %p98, %p99
    %p101 = scmp.ne.s32.totalorder %s90, %s91
    %p102 = scmp.eq.s32.totalorder %s16, 0
    %p103 = por %p101, %p102
    %p104 = scmp.ne.s32.totalorder %s90, %s91
    %p105 = scmp.eq.s32.totalorder %s17, 1
    %p106 = por %p104, %p105
    %p108 = scmp.ne.s32.totalorder %s91, %s107
    %p109 = scmp.eq.s32.totalorder %s17, 0
    %p110 = por %p108, %p109
    %s111 = ssub.s32 %s18, %s30
    %s112 = ssub.s32 %s19, %s26
    %s113 = sor.u32 %s111, %s112
    %p114 = scmp.eq.s32.totalorder %s113, 0
    %s116 = sadd.s32 %s115, 1
    %s117 = scalar_select %p114, %s115, %s116
    %p120 = pneg %p114
    %p121 = scmp.eq.s32.totalorder %s11, 1
    %p122 = por %p120, %p121
    %p123 = scmp.ne.s32.totalorder %s115, %s118
    %p124 = scmp.eq.s32.totalorder %s11, 0
    %p125 = por %p123, %p124
    %p126 = scmp.ne.s32.totalorder %s115, %s118
    %p127 = scmp.eq.s32.totalorder %s16, 1
    %p128 = por %p126, %p127
    %p129 = scmp.ne.s32.totalorder %s118, %s119
    %p130 = scmp.eq.s32.totalorder %s16, 0
    %p131 = por %p129, %p130
    %p132 = scmp.ne.s32.totalorder %s118, %s119
    %p133 = scmp.eq.s32.totalorder %s17, 1
    %p134 = por %p132, %p133
    %p136 = scmp.ne.s32.totalorder %s119, %s135
    %p137 = scmp.eq.s32.totalorder %s17, 0
    %p138 = por %p136, %p137
    %s139 = ssub.s32 %s18, %s30
    %s140 = ssub.s32 %s19, %s26
    %s141 = sor.u32 %s139, %s140
    %p142 = scmp.eq.s32.totalorder %s141, 0
    %s144 = sadd.s32 %s143, 1
    %s145 = scalar_select %p142, %s143, %s144
    %p148 = pneg %p142
    %p149 = scmp.eq.s32.totalorder %s11, 1
    %p150 = por %p148, %p149
    %p151 = scmp.ne.s32.totalorder %s143, %s146
    %p152 = scmp.eq.s32.totalorder %s11, 0
    %p153 = por %p151, %p152
    %p154 = scmp.ne.s32.totalorder %s143, %s146
    %p155 = scmp.eq.s32.totalorder %s16, 1
    %p156 = por %p154, %p155
    %p157 = scmp.ne.s32.totalorder %s146, %s147
    %p158 = scmp.eq.s32.totalorder %s16, 0
    %p159 = por %p157, %p158
    %p160 = scmp.ne.s32.totalorder %s146, %s147
    %p161 = scmp.eq.s32.totalorder %s17, 1
    %p162 = por %p160, %p161
    %p164 = scmp.ne.s32.totalorder %s147, %s163
    %p165 = scmp.eq.s32.totalorder %s17, 0
    %p166 = por %p164, %p165
    %p167 = scmp.le.s32.totalorder 1, %s11
    %p168 = scmp.lt.s32.totalorder %s11, 3
    %p169 = pnand %p167, %p168
    %p170 = pneg %p169
    // Predicated region
    $region9: #{basic_block_forward.7} parent=5 // pred_check
      _
    $region10: #{basic_block_forward.7} parent=5 // pred_check_branch
      %172 = sbr.rel (%p169) target = $region12
    $region11: #{basic_block_forward.7} parent=5 // pred_region
      %s173 = ssub.s32 %s11, 1
      // Predicated region
      $region13: #{basic_block_forward.7} parent=11 // pred_check
        %p174 = pneg %p75
      $region14: #{basic_block_forward.7} parent=11 // pred_check_branch
        %176 = sbr.rel (%p174) target = $region16
      $region15: #{basic_block_forward.7} parent=11 // pred_region
        %p177 = scmp.lt.s32.totalorder %s21, 0
        %s178 = scalar_select %p177, %s21, 0
        %s179 = smul.addr %s178, 4
        %s180 = scalar_lea.vmem %s1, %s179
      $region16: #{basic_block_forward.7} parent=11 // pred_fallthru
        _
    $region12: #{basic_block_forward.7} parent=5 // pred_fallthru
      _
    %p181 = scmp.lt.s32.totalorder %s11, 2
    // Predicated region
    $region17: #{basic_block_forward.7} parent=5 // pred_check
      %p182 = pneg %p181
    $region18: #{basic_block_forward.7} parent=5 // pred_check_branch
      %184 = sbr.rel (%p182) target = $region20
    $region19: #{basic_block_forward.7} parent=5 // pred_region
      // Predicated region
      $region21: #{basic_block_forward.7} parent=19 // pred_check
        %p185 = pneg %p43
      $region22: #{basic_block_forward.7} parent=19 // pred_check_branch
        %187 = sbr.rel (%p185) target = $region24
      $region23: #{basic_block_forward.7} parent=19 // pred_region
        %p188 = scmp.lt.s32.totalorder %s18, 1
        %s189 = scalar_select %p188, %s18, 1
        %s190 = smul.addr %s189, 20
        %s191 = smul.addr %s190, 4
        %s192 = scalar_lea.vmem %s0, %s191
      $region24: #{basic_block_forward.7} parent=19 // pred_fallthru
        _
    $region20: #{basic_block_forward.7} parent=5 // pred_fallthru
      _
    %p193 = scmp.le.s32.totalorder 1, %s11
    %p194 = scmp.lt.s32.totalorder %s11, 3
    %p195 = pnand %p193, %p194
    %p196 = pneg %p195
    // Predicated region
    $region25: #{basic_block_forward.7} parent=5 // pred_check
      _
    $region26: #{basic_block_forward.7} parent=5 // pred_check_branch
      %198 = sbr.rel (%p195) target = $region28
    $region27: #{basic_block_forward.7} parent=5 // pred_region
      %s199 = ssub.s32 %s11, 1
      %p200 = scmp.lt.s32.totalorder %s20, 1
      %s201 = scalar_select %p200, %s20, 1
      %s202 = smul.addr %s201, 20
      %s203 = smul.addr %s202, 4
      %s204 = scalar_lea.vmem %s0, %s203
      %p205 = pneg %p49
      %p206 = pneg %p46
      %p207 = scmp.lt.s32.totalorder %s21, 0
      %s208 = scalar_select %p207, %s21, 0
      %s209 = smul.addr %s208, 4
      %s210 = scalar_lea.vmem %s1, %s209
      %p211 = pneg %p75
      %p212 = pneg %p72
      %p213 = pneg %p103
      %p214 = pneg %p100
      %p215 = scmp.lt.s32.totalorder %s20, 1
      %s216 = scalar_select %p215, %s20, 1
      %p217 = scmp.lt.s32.totalorder %s21, 0
      %s218 = scalar_select %p217, %s21, 0
      %s219 = smul.addr %s216, 8
      %s220 = sadd.s32 %s218, %s219
      %s221 = smul.addr %s220, 8
      %s222 = scalar_lea.vmem %s2, %s221
      %p223 = pneg %p131
      %p224 = pneg %p128
      %p225 = scmp.lt.s32.totalorder %s20, 1
      %s226 = scalar_select %p225, %s20, 1
      %p227 = scmp.lt.s32.totalorder %s21, 0
      %s228 = scalar_select %p227, %s21, 0
      %s229 = sadd.s32 %s228, %s226
      %s230 = scalar_lea.vmem %s3, %s229
      %p231 = pneg %p159
      %p232 = pneg %p156
      %p233 = scmp.lt.s32.totalorder %s20, 1
      %s234 = scalar_select %p233, %s20, 1
      %p235 = scmp.lt.s32.totalorder %s21, 0
      %s236 = scalar_select %p235, %s21, 0
      %s237 = sadd.s32 %s236, %s234
      %s238 = scalar_lea.vmem %s4, %s237
      %p239 = scmp.lt.s32.totalorder %s20, 1
      %s240 = scalar_select %p239, %s20, 1
      %s241 = smul.addr %s240, 20
      %s242 = smul.addr %s241, 4
      %s243 = scalar_lea.vmem %s0, %s242
      %p244 = scmp.lt.s32.totalorder %s21, 0
      %s245 = scalar_select %p244, %s21, 0
      %s246 = smul.addr %s245, 4
      %s247 = scalar_lea.vmem %s1, %s246
      %p248 = scmp.lt.s32.totalorder %s20, 1
      %s249 = scalar_select %p248, %s20, 1
      %p250 = scmp.lt.s32.totalorder %s21, 0
      %s251 = scalar_select %p250, %s21, 0
      %s252 = smul.addr %s249, 8
      %s253 = sadd.s32 %s251, %s252
      %s254 = smul.addr %s253, 8
      %s255 = scalar_lea.vmem %s2, %s254
      %p256 = scmp.lt.s32.totalorder %s20, 1
      %s257 = scalar_select %p256, %s20, 1
      %p258 = scmp.lt.s32.totalorder %s21, 0
      %s259 = scalar_select %p258, %s21, 0
      %s260 = sadd.s32 %s259, %s257
      %s261 = scalar_lea.vmem %s3, %s260
      %p262 = scmp.lt.s32.totalorder %s20, 1
      %s263 = scalar_select %p262, %s20, 1
      %p264 = scmp.lt.s32.totalorder %s21, 0
      %s265 = scalar_select %p264, %s21, 0
      %s266 = sadd.s32 %s265, %s263
      %s267 = scalar_lea.vmem %s4, %s266
      %v269 = vld [vmem:[%s243] sm:$0xf]
      %v270 = vld [vmem:[%s243 + $0x4] sm:$0x1]
      %v271 = vld [vmem:[%s243 + $0x8] sm:$0xf]
      %v272 = vld [vmem:[%s243 + $0xc] sm:$0x1]
      %v273 = vld [vmem:[%s243 + $0x10] sm:$0xf]
      %v274 = vld [vmem:[%s243 + $0x14] sm:$0x1]
      %v275 = vld [vmem:[%s243 + $0x18] sm:$0xf]
      %v276 = vld [vmem:[%s243 + $0x1c] sm:$0x1]
      %v277 = vld [vmem:[%s243 + $0x20] sm:$0xf]
      %v278 = vld [vmem:[%s243 + $0x24] sm:$0x1]
      %v279 = vld [vmem:[%s243 + $0x28] sm:$0xf]
      %v280 = vld [vmem:[%s243 + $0x2c] sm:$0x1]
      %v281 = vld [vmem:[%s243 + $0x30] sm:$0xf]
      %v282 = vld [vmem:[%s243 + $0x34] sm:$0x1]
      %v283 = vld [vmem:[%s243 + $0x38] sm:$0xf]
      %v284 = vld [vmem:[%s243 + $0x3c] sm:$0x1]
      %v285 = vld [vmem:[%s243 + $0x40] sm:$0xf]
      %v286 = vld [vmem:[%s243 + $0x44] sm:$0x1]
      %v287 = vld [vmem:[%s243 + $0x48] sm:$0xf]
      %v288 = vld [vmem:[%s243 + $0x4c] sm:$0x1]
      %v289 = vunpack.c.l.bf16 %v269
      %v290 = vunpack.c.l.bf16 %v270
      %v291 = vunpack.c.l.bf16 %v271
      %v292 = vunpack.c.l.bf16 %v272
      %v293 = vunpack.c.l.bf16 %v273
      %v294 = vunpack.c.l.bf16 %v274
      %v295 = vunpack.c.l.bf16 %v275
      %v296 = vunpack.c.l.bf16 %v276
      %v297 = vunpack.c.l.bf16 %v277
      %v298 = vunpack.c.l.bf16 %v278
      %v299 = vunpack.c.l.bf16 %v279
      %v300 = vunpack.c.l.bf16 %v280
      %v301 = vunpack.c.l.bf16 %v281
      %v302 = vunpack.c.l.bf16 %v282
      %v303 = vunpack.c.l.bf16 %v283
      %v304 = vunpack.c.l.bf16 %v284
      %v305 = vunpack.c.l.bf16 %v285
      %v306 = vunpack.c.l.bf16 %v286
      %v307 = vunpack.c.l.bf16 %v287
      %v308 = vunpack.c.l.bf16 %v288
      %v309 = vpack.c.bf16 %v291, %v289
      %v310 = vpack.c.bf16 %v295, %v293
      %v311 = vpack.c.bf16 %v299, %v297
      %v312 = vpack.c.bf16 %v303, %v301
      %v313 = vld [vmem:[%s247] sm:$0xf]
      %v314 = vld [vmem:[%s247 + $0x4] sm:$0xf]
      %v315 = vld [vmem:[%s247 + $0x8] sm:$0xf]
      %v316 = vld [vmem:[%s247 + $0xc] sm:$0xf]
      %v317 = vld [vmem:[%s247 + $0x10] sm:$0xf]
      %v318 = vld [vmem:[%s247 + $0x14] sm:$0xf]
      %v319 = vld [vmem:[%s247 + $0x18] sm:$0xf]
      %v320 = vld [vmem:[%s247 + $0x1c] sm:$0xf]
      %v321 = vld [vmem:[%s247 + $0x20] sm:$0xf]
      %v322 = vld [vmem:[%s247 + $0x24] sm:$0xf]
      %v323 = vld [vmem:[%s247 + $0x28] sm:$0xf]
      %v324 = vld [vmem:[%s247 + $0x2c] sm:$0xf]
      %v325 = vld [vmem:[%s247 + $0x30] sm:$0xf]
      %v326 = vld [vmem:[%s247 + $0x34] sm:$0xf]
      %v327 = vld [vmem:[%s247 + $0x38] sm:$0xf]
      %v328 = vld [vmem:[%s247 + $0x3c] sm:$0xf]
      %vm345 = vcmask 1046528
      %v346 = vrot.slane %v289, 1
      %v347 = vrot.slane %v290, 1
      %v348 = vsel %vm345, %v346, %v347
      %v349 = vrot.slane %v291, 1
      %v350 = vrot.slane %v292, 1
      %v351 = vsel %vm345, %v349, %v350
      %v352 = vrot.slane %v293, 1
      %v353 = vrot.slane %v294, 1
      %v354 = vsel %vm345, %v352, %v353
      %v355 = vrot.slane %v295, 1
      %v356 = vrot.slane %v296, 1
      %v357 = vsel %vm345, %v355, %v356
      %v358 = vrot.slane %v297, 1
      %v359 = vrot.slane %v298, 1
      %v360 = vsel %vm345, %v358, %v359
      %v361 = vrot.slane %v299, 1
      %v362 = vrot.slane %v300, 1
      %v363 = vsel %vm345, %v361, %v362
      %v364 = vrot.slane %v301, 1
      %v365 = vrot.slane %v302, 1
      %v366 = vsel %vm345, %v364, %v365
      %v367 = vrot.slane %v303, 1
      %v368 = vrot.slane %v304, 1
      %v369 = vsel %vm345, %v367, %v368
      %v378 = vpack.c.bf16 %v351, %v348
      %v379 = vpack.c.bf16 %v357, %v354
      %v380 = vpack.c.bf16 %v363, %v360
      %v381 = vpack.c.bf16 %v369, %v366
      %s382 = scalar_lea.vmem %s247, 64
      %v383 = vld [vmem:[%s382] sm:$0xf]
      %v384 = vld [vmem:[%s382 + $0x4] sm:$0xf]
      %v385 = vld [vmem:[%s382 + $0x8] sm:$0xf]
      %v386 = vld [vmem:[%s382 + $0xc] sm:$0xf]
      %v387 = vld [vmem:[%s382 + $0x10] sm:$0xf]
      %v388 = vld [vmem:[%s382 + $0x14] sm:$0xf]
      %v389 = vld [vmem:[%s382 + $0x18] sm:$0xf]
      %v390 = vld [vmem:[%s382 + $0x1c] sm:$0xf]
      %v391 = vld [vmem:[%s382 + $0x20] sm:$0xf]
      %v392 = vld [vmem:[%s382 + $0x24] sm:$0xf]
      %v393 = vld [vmem:[%s382 + $0x28] sm:$0xf]
      %v394 = vld [vmem:[%s382 + $0x2c] sm:$0xf]
      %v395 = vld [vmem:[%s382 + $0x30] sm:$0xf]
      %v396 = vld [vmem:[%s382 + $0x34] sm:$0xf]
      %v397 = vld [vmem:[%s382 + $0x38] sm:$0xf]
      %v398 = vld [vmem:[%s382 + $0x3c] sm:$0xf]
      %v415 = vunpack.c.l.b16 %v383
      %v416 = vunpack.c.l.b16 %v384
      %v417 = vunpack.c.l.b16 %v385
      %v418 = vunpack.c.l.b16 %v386
      %v419 = vunpack.c.l.b16 %v387
      %v420 = vunpack.c.l.b16 %v388
      %v421 = vunpack.c.l.b16 %v389
      %v422 = vunpack.c.l.b16 %v390
      %v423 = vunpack.c.l.b16 %v391
      %v424 = vunpack.c.l.b16 %v392
      %v425 = vunpack.c.l.b16 %v393
      %v426 = vunpack.c.l.b16 %v394
      %v427 = vunpack.c.l.b16 %v395
      %v428 = vunpack.c.l.b16 %v396
      %v429 = vunpack.c.l.b16 %v397
      %v430 = vunpack.c.l.b16 %v398
      %v431 = vpack.c.b16 %v416, %v415
      %v432 = vpack.c.b16 %v418, %v417
      %v433 = vpack.c.b16 %v420, %v419
      %v434 = vpack.c.b16 %v422, %v421
      %v435 = vpack.c.b16 %v424, %v423
      %v436 = vpack.c.b16 %v426, %v425
      %v437 = vpack.c.b16 %v428, %v427
      %v438 = vpack.c.b16 %v430, %v429
      %447 = vmatprep.subr.bf16.mxu0 0
      %448 = vmatpush1.bf16.msra.mxu0 %v431
      %449 = vmatprep.subr.bf16.mxu0 0
      %450 = vmatpush1.bf16.msra.mxu0 %v432
      %451 = vmatprep.subr.bf16.mxu0 0
      %452 = vmatpush1.bf16.msra.mxu0 %v433
      %453 = vmatprep.subr.bf16.mxu0 0
      %454 = vmatpush1.bf16.msra.mxu0 %v434
      %455 = vmatprep.subr.bf16.mxu0 0
      %456 = vmatpush1.bf16.msra.mxu0 %v435
      %457 = vmatprep.subr.bf16.mxu0 0
      %458 = vmatpush1.bf16.msra.mxu0 %v436
      %459 = vmatprep.subr.bf16.mxu0 0
      %460 = vmatpush1.bf16.msra.mxu0 %v437
      %461 = vmatprep.subr.bf16.mxu0 0
      %462 = vmatpush1.bf16.msra.mxu0 %v438
      %463 = vmatprep.subr.bf16.mxu0 0
      %464 = vmatpush1.bf16.msra.mxu0 0
      %465 = vmatprep.subr.bf16.mxu0 0
      %466 = vmatpush1.bf16.msra.mxu0 0
      %467 = vmatprep.subr.bf16.mxu0 0
      %468 = vmatpush1.bf16.msra.mxu0 0
      %469 = vmatprep.subr.bf16.mxu0 0
      %470 = vmatpush1.bf16.msra.mxu0 0
      %471 = vmatprep.subr.bf16.mxu0 0
      %472 = vmatpush1.bf16.msra.mxu0 0
      %473 = vmatprep.subr.bf16.mxu0 0
      %474 = vmatpush1.bf16.msra.mxu0 0
      %475 = vmatprep.subr.bf16.mxu0 0
      %476 = vmatpush1.bf16.msra.mxu0 0
      %477 = vmatprep.subr.bf16.mxu0 0
      %478 = vmatpush1.bf16.msra.mxu0 0
      %479 = vmatprep.mubr.bf16.mxu0 0
      %480 = vmatmul.mubr.bf16.gmra.mrb[0].mxu0 %v378
      %v481 = vpop.f32.mrb[0].mxu0
      %v482 = vadd.f32 0.0, %v481
      %v483 = vpop.f32.mrb[0].mxu0
      %v484 = vpop.f32.mrb[0].mxu0
      %v485 = vadd.f32 0.0, %v484
      %v486 = vpop.f32.mrb[0].mxu0
      %487 = vmatprep.mubr.bf16.mxu0 0
      %488 = vmatmul.mubr.bf16.gmra.mrb[0].mxu0 %v379
      %v489 = vpop.f32.mrb[0].mxu0
      %v490 = vadd.f32 0.0, %v489
      %v491 = vpop.f32.mrb[0].mxu0
      %v492 = vpop.f32.mrb[0].mxu0
      %v493 = vadd.f32 0.0, %v492
      %v494 = vpop.f32.mrb[0].mxu0
      %495 = vmatprep.mubr.bf16.mxu0 0
      %496 = vmatmul.mubr.bf16.gmra.mrb[0].mxu0 %v380
      %v497 = vpop.f32.mrb[0].mxu0
      %v498 = vadd.f32 0.0, %v497
      %v499 = vpop.f32.mrb[0].mxu0
      %v500 = vpop.f32.mrb[0].mxu0
      %v501 = vadd.f32 0.0, %v500
      %v502 = vpop.f32.mrb[0].mxu0
      %503 = vmatprep.mubr.bf16.mxu0 0
      %504 = vmatmul.mubr.bf16.gmra.mrb[0].mxu0 %v381
      %v505 = vpop.f32.mrb[0].mxu0
      %v506 = vadd.f32 0.0, %v505
      %v507 = vpop.f32.mrb[0].mxu0
      %v508 = vpop.f32.mrb[0].mxu0
      %v509 = vadd.f32 0.0, %v508
      %v510 = vpop.f32.mrb[0].mxu0
      %511 = vdwg.mxu0
      %v528 = vunpack.c.l.b16 %v313
      %v529 = vunpack.c.l.b16 %v314
      %v530 = vunpack.c.l.b16 %v315
      %v531 = vunpack.c.l.b16 %v316
      %v532 = vunpack.c.l.b16 %v317
      %v533 = vunpack.c.l.b16 %v318
      %v534 = vunpack.c.l.b16 %v319
      %v535 = vunpack.c.l.b16 %v320
      %v536 = vunpack.c.l.b16 %v321
      %v537 = vunpack.c.l.b16 %v322
      %v538 = vunpack.c.l.b16 %v323
      %v539 = vunpack.c.l.b16 %v324
      %v540 = vunpack.c.l.b16 %v325
      %v541 = vunpack.c.l.b16 %v326
      %v542 = vunpack.c.l.b16 %v327
      %v543 = vunpack.c.l.b16 %v328
      %v544 = vpack.c.b16 %v529, %v528
      %v545 = vpack.c.b16 %v531, %v530
      %v546 = vpack.c.b16 %v533, %v532
      %v547 = vpack.c.b16 %v535, %v534
      %v548 = vpack.c.b16 %v537, %v536
      %v549 = vpack.c.b16 %v539, %v538
      %v550 = vpack.c.b16 %v541, %v540
      %v551 = vpack.c.b16 %v543, %v542
      %560 = vmatprep.subr.bf16.mxu0 0
      %561 = vmatpush1.bf16.msra.mxu0 %v544
      %562 = vmatprep.subr.bf16.mxu0 0
      %563 = vmatpush1.bf16.msra.mxu0 %v545
      %564 = vmatprep.subr.bf16.mxu0 0
      %565 = vmatpush1.bf16.msra.mxu0 %v546
      %566 = vmatprep.subr.bf16.mxu0 0
      %567 = vmatpush1.bf16.msra.mxu0 %v547
      %568 = vmatprep.subr.bf16.mxu0 0
      %569 = vmatpush1.bf16.msra.mxu0 %v548
      %570 = vmatprep.subr.bf16.mxu0 0
      %571 = vmatpush1.bf16.msra.mxu0 %v549
      %572 = vmatprep.subr.bf16.mxu0 0
      %573 = vmatpush1.bf16.msra.mxu0 %v550
      %574 = vmatprep.subr.bf16.mxu0 0
      %575 = vmatpush1.bf16.msra.mxu0 %v551
      %576 = vmatprep.subr.bf16.mxu0 0
      %577 = vmatpush1.bf16.msra.mxu0 0
      %578 = vmatprep.subr.bf16.mxu0 0
      %579 = vmatpush1.bf16.msra.mxu0 0
      %580 = vmatprep.subr.bf16.mxu0 0
      %581 = vmatpush1.bf16.msra.mxu0 0
      %582 = vmatprep.subr.bf16.mxu0 0
      %583 = vmatpush1.bf16.msra.mxu0 0
      %584 = vmatprep.subr.bf16.mxu0 0
      %585 = vmatpush1.bf16.msra.mxu0 0
      %586 = vmatprep.subr.bf16.mxu0 0
      %587 = vmatpush1.bf16.msra.mxu0 0
      %588 = vmatprep.subr.bf16.mxu0 0
      %589 = vmatpush1.bf16.msra.mxu0 0
      %590 = vmatprep.subr.bf16.mxu0 0
      %591 = vmatpush1.bf16.msra.mxu0 0
      %592 = vmatprep.mubr.bf16.mxu0 0
      %593 = vmatmul.mubr.bf16.gmra.mrb[0].mxu0 %v309
      %v594 = vpop.f32.mrb[0].mxu0
      %v595 = vadd.f32 %v482, %v594
      %v596 = vpop.f32.mrb[0].mxu0
      %v597 = vpop.f32.mrb[0].mxu0
      %v598 = vadd.f32 %v485, %v597
      %v599 = vpop.f32.mrb[0].mxu0
      %600 = vmatprep.mubr.bf16.mxu0 0
      %601 = vmatmul.mubr.bf16.gmra.mrb[0].mxu0 %v310
      %v602 = vpop.f32.mrb[0].mxu0
      %v603 = vadd.f32 %v490, %v602
      %v604 = vpop.f32.mrb[0].mxu0
      %v605 = vpop.f32.mrb[0].mxu0
      %v606 = vadd.f32 %v493, %v605
      %v607 = vpop.f32.mrb[0].mxu0
      %608 = vmatprep.mubr.bf16.mxu0 0
      %609 = vmatmul.mubr.bf16.gmra.mrb[0].mxu0 %v311
      %v610 = vpop.f32.mrb[0].mxu0
      %v611 = vadd.f32 %v498, %v610
      %v612 = vpop.f32.mrb[0].mxu0
      %v613 = vpop.f32.mrb[0].mxu0
      %v614 = vadd.f32 %v501, %v613
      %v615 = vpop.f32.mrb[0].mxu0
      %616 = vmatprep.mubr.bf16.mxu0 0
      %617 = vmatmul.mubr.bf16.gmra.mrb[0].mxu0 %v312
      %v618 = vpop.f32.mrb[0].mxu0
      %v619 = vadd.f32 %v506, %v618
      %v620 = vpop.f32.mrb[0].mxu0
      %v621 = vpop.f32.mrb[0].mxu0
      %v622 = vadd.f32 %v509, %v621
      %v623 = vpop.f32.mrb[0].mxu0
      %624 = vdwg.mxu0
      %vm625 = vcmask 1045504
      %v626 = vrot.slane %v289, 2
      %v627 = vrot.slane %v290, 2
      %v628 = vsel %vm625, %v626, %v627
      %v629 = vrot.slane %v291, 2
      %v630 = vrot.slane %v292, 2
      %v631 = vsel %vm625, %v629, %v630
      %v632 = vrot.slane %v293, 2
      %v633 = vrot.slane %v294, 2
      %v634 = vsel %vm625, %v632, %v633
      %v635 = vrot.slane %v295, 2
      %v636 = vrot.slane %v296, 2
      %v637 = vsel %vm625, %v635, %v636
      %v638 = vrot.slane %v297, 2
      %v639 = vrot.slane %v298, 2
      %v640 = vsel %vm625, %v638, %v639
      %v641 = vrot.slane %v299, 2
      %v642 = vrot.slane %v300, 2
      %v643 = vsel %vm625, %v641, %v642
      %v644 = vrot.slane %v301, 2
      %v645 = vrot.slane %v302, 2
      %v646 = vsel %vm625, %v644, %v645
      %v647 = vrot.slane %v303, 2
      %v648 = vrot.slane %v304, 2
      %v649 = vsel %vm625, %v647, %v648
      %v658 = vpack.c.bf16 %v631, %v628
      %v659 = vpack.c.bf16 %v637, %v634
      %v660 = vpack.c.bf16 %v643, %v640
      %v661 = vpack.c.bf16 %v649, %v646
      %s662 = scalar_lea.vmem %s247, 128
      %v663 = vld [vmem:[%s662] sm:$0xf]
      %v664 = vld [vmem:[%s662 + $0x4] sm:$0xf]
      %v665 = vld [vmem:[%s662 + $0x8] sm:$0xf]
      %v666 = vld [vmem:[%s662 + $0xc] sm:$0xf]
      %v667 = vld [vmem:[%s662 + $0x10] sm:$0xf]
      %v668 = vld [vmem:[%s662 + $0x14] sm:$0xf]
      %v669 = vld [vmem:[%s662 + $0x18] sm:$0xf]
      %v670 = vld [vmem:[%s662 + $0x1c] sm:$0xf]
      %v671 = vld [vmem:[%s662 + $0x20] sm:$0xf]
      %v672 = vld [vmem:[%s662 + $0x24] sm:$0xf]
      %v673 = vld [vmem:[%s662 + $0x28] sm:$0xf]
      %v674 = vld [vmem:[%s662 + $0x2c] sm:$0xf]
      %v675 = vld [vmem:[%s662 + $0x30] sm:$0xf]
      %v676 = vld [vmem:[%s662 + $0x34] sm:$0xf]
      %v677 = vld [vmem:[%s662 + $0x38] sm:$0xf]
      %v678 = vld [vmem:[%s662 + $0x3c] sm:$0xf]
      %v695 = vunpack.c.l.b16 %v663
      %v696 = vunpack.c.l.b16 %v664
      %v697 = vunpack.c.l.b16 %v665
      %v698 = vunpack.c.l.b16 %v666
      %v699 = vunpack.c.l.b16 %v667
      %v700 = vunpack.c.l.b16 %v668
      %v701 = vunpack.c.l.b16 %v669
      %v702 = vunpack.c.l.b16 %v670
      %v703 = vunpack.c.l.b16 %v671
      %v704 = vunpack.c.l.b16 %v672
      %v705 = vunpack.c.l.b16 %v673
      %v706 = vunpack.c.l.b16 %v674
      %v707 = vunpack.c.l.b16 %v675
      %v708 = vunpack.c.l.b16 %v676
      %v709 = vunpack.c.l.b16 %v677
      %v710 = vunpack.c.l.b16 %v678
      %v711 = vpack.c.b16 %v696, %v695
      %v712 = vpack.c.b16 %v698, %v697
      %v713 = vpack.c.b16 %v700, %v699
      %v714 = vpack.c.b16 %v702, %v701
      %v715 = vpack.c.b16 %v704, %v703
      %v716 = vpack.c.b16 %v706, %v705
      %v717 = vpack.c.b16 %v708, %v707
      %v718 = vpack.c.b16 %v710, %v709
      %727 = vmatprep.subr.bf16.mxu0 0
      %728 = vmatpush1.bf16.msra.mxu0 %v711
      %729 = vmatprep.subr.bf16.mxu0 0
      %730 = vmatpush1.bf16.msra.mxu0 %v712
      %731 = vmatprep.subr.bf16.mxu0 0
      %732 = vmatpush1.bf16.msra.mxu0 %v713
      %733 = vmatprep.subr.bf16.mxu0 0
      %734 = vmatpush1.bf16.msra.mxu0 %v714
      %735 = vmatprep.subr.bf16.mxu0 0
      %736 = vmatpush1.bf16.msra.mxu0 %v715
      %737 = vmatprep.subr.bf16.mxu0 0
      %738 = vmatpush1.bf16.msra.mxu0 %v716
      %739 = vmatprep.subr.bf16.mxu0 0
      %740 = vmatpush1.bf16.msra.mxu0 %v717
      %741 = vmatprep.subr.bf16.mxu0 0
      %742 = vmatpush1.bf16.msra.mxu0 %v718
      %743 = vmatprep.subr.bf16.mxu0 0
      %744 = vmatpush1.bf16.msra.mxu0 0
      %745 = vmatprep.subr.bf16.mxu0 0
      %746 = vmatpush1.bf16.msra.mxu0 0
      %747 = vmatprep.subr.bf16.mxu0 0
      %748 = vmatpush1.bf16.msra.mxu0 0
      %749 = vmatprep.subr.bf16.mxu0 0
      %750 = vmatpush1.bf16.msra.mxu0 0
      %751 = vmatprep.subr.bf16.mxu0 0
      %752 = vmatpush1.bf16.msra.mxu0 0
      %753 = vmatprep.subr.bf16.mxu0 0
      %754 = vmatpush1.bf16.msra.mxu0 0
      %755 = vmatprep.subr.bf16.mxu0 0
      %756 = vmatpush1.bf16.msra.mxu0 0
      %757 = vmatprep.subr.bf16.mxu0 0
      %758 = vmatpush1.bf16.msra.mxu0 0
      %759 = vmatprep.mubr.bf16.mxu0 0
      %760 = vmatmul.mubr.bf16.gmra.mrb[0].mxu0 %v658
      %v761 = vpop.f32.mrb[0].mxu0
      %v762 = vadd.f32 0.0, %v761
      %v763 = vpop.f32.mrb[0].mxu0
      %v764 = vpop.f32.mrb[0].mxu0
      %v765 = vadd.f32 0.0, %v764
      %v766 = vpop.f32.mrb[0].mxu0
      %767 = vmatprep.mubr.bf16.mxu0 0
      %768 = vmatmul.mubr.bf16.gmra.mrb[0].mxu0 %v659
      %v769 = vpop.f32.mrb[0].mxu0
      %v770 = vadd.f32 0.0, %v769
      %v771 = vpop.f32.mrb[0].mxu0
      %v772 = vpop.f32.mrb[0].mxu0
      %v773 = vadd.f32 0.0, %v772
      %v774 = vpop.f32.mrb[0].mxu0
      %775 = vmatprep.mubr.bf16.mxu0 0
      %776 = vmatmul.mubr.bf16.gmra.mrb[0].mxu0 %v660
      %v777 = vpop.f32.mrb[0].mxu0
      %v778 = vadd.f32 0.0, %v777
      %v779 = vpop.f32.mrb[0].mxu0
      %v780 = vpop.f32.mrb[0].mxu0
      %v781 = vadd.f32 0.0, %v780
      %v782 = vpop.f32.mrb[0].mxu0
      %783 = vmatprep.mubr.bf16.mxu0 0
      %784 = vmatmul.mubr.bf16.gmra.mrb[0].mxu0 %v661
      %v785 = vpop.f32.mrb[0].mxu0
      %v786 = vadd.f32 0.0, %v785
      %v787 = vpop.f32.mrb[0].mxu0
      %v788 = vpop.f32.mrb[0].mxu0
      %v789 = vadd.f32 0.0, %v788
      %v790 = vpop.f32.mrb[0].mxu0
      %791 = vdwg.mxu0
      %v792 = vadd.f32 %v595, %v762
      %v793 = vadd.f32 %v598, %v765
      %v794 = vadd.f32 %v603, %v770
      %v795 = vadd.f32 %v606, %v773
      %v796 = vadd.f32 %v611, %v778
      %v797 = vadd.f32 %v614, %v781
      %v798 = vadd.f32 %v619, %v786
      %v799 = vadd.f32 %v622, %v789
      %v800 = vpack.c.bf16 %v293, %v291
      %v801 = vpack.c.bf16 %v297, %v295
      %v802 = vpack.c.bf16 %v301, %v299
      %v803 = vpack.c.bf16 %v305, %v303
      %s804 = scalar_lea.vmem %s247, 192
      %v805 = vld [vmem:[%s804] sm:$0xf]
      %v806 = vld [vmem:[%s804 + $0x4] sm:$0xf]
      %v807 = vld [vmem:[%s804 + $0x8] sm:$0xf]
      %v808 = vld [vmem:[%s804 + $0xc] sm:$0xf]
      %v809 = vld [vmem:[%s804 + $0x10] sm:$0xf]
      %v810 = vld [vmem:[%s804 + $0x14] sm:$0xf]
      %v811 = vld [vmem:[%s804 + $0x18] sm:$0xf]
      %v812 = vld [vmem:[%s804 + $0x1c] sm:$0xf]
      %v813 = vld [vmem:[%s804 + $0x20] sm:$0xf]
      %v814 = vld [vmem:[%s804 + $0x24] sm:$0xf]
      %v815 = vld [vmem:[%s804 + $0x28] sm:$0xf]
      %v816 = vld [vmem:[%s804 + $0x2c] sm:$0xf]
      %v817 = vld [vmem:[%s804 + $0x30] sm:$0xf]
      %v818 = vld [vmem:[%s804 + $0x34] sm:$0xf]
      %v819 = vld [vmem:[%s804 + $0x38] sm:$0xf]
      %v820 = vld [vmem:[%s804 + $0x3c] sm:$0xf]
      %v837 = vunpack.c.l.b16 %v805
      %v838 = vunpack.c.l.b16 %v806
      %v839 = vunpack.c.l.b16 %v807
      %v840 = vunpack.c.l.b16 %v808
      %v841 = vunpack.c.l.b16 %v809
      %v842 = vunpack.c.l.b16 %v810
      %v843 = vunpack.c.l.b16 %v811
      %v844 = vunpack.c.l.b16 %v812
      %v845 = vunpack.c.l.b16 %v813
      %v846 = vunpack.c.l.b16 %v814
      %v847 = vunpack.c.l.b16 %v815
      %v848 = vunpack.c.l.b16 %v816
      %v849 = vunpack.c.l.b16 %v817
      %v850 = vunpack.c.l.b16 %v818
      %v851 = vunpack.c.l.b16 %v819
      %v852 = vunpack.c.l.b16 %v820
      %v853 = vpack.c.b16 %v838, %v837
      %v854 = vpack.c.b16 %v840, %v839
      %v855 = vpack.c.b16 %v842, %v841
      %v856 = vpack.c.b16 %v844, %v843
      %v857 = vpack.c.b16 %v846, %v845
      %v858 = vpack.c.b16 %v848, %v847
      %v859 = vpack.c.b16 %v850, %v849
      %v860 = vpack.c.b16 %v852, %v851
      %869 = vmatprep.subr.bf16.mxu0 0
      %870 = vmatpush1.bf16.msra.mxu0 %v853
      %871 = vmatprep.subr.bf16.mxu0 0
      %872 = vmatpush1.bf16.msra.mxu0 %v854
      %873 = vmatprep.subr.bf16.mxu0 0
      %874 = vmatpush1.bf16.msra.mxu0 %v855
      %875 = vmatprep.subr.bf16.mxu0 0
      %876 = vmatpush1.bf16.msra.mxu0 %v856
      %877 = vmatprep.subr.bf16.mxu0 0
      %878 = vmatpush1.bf16.msra.mxu0 %v857
      %879 = vmatprep.subr.bf16.mxu0 0
      %880 = vmatpush1.bf16.msra.mxu0 %v858
      %881 = vmatprep.subr.bf16.mxu0 0
      %882 = vmatpush1.bf16.msra.mxu0 %v859
      %883 = vmatprep.subr.bf16.mxu0 0
      %884 = vmatpush1.bf16.msra.mxu0 %v860
      %885 = vmatprep.subr.bf16.mxu0 0
      %886 = vmatpush1.bf16.msra.mxu0 0
      %887 = vmatprep.subr.bf16.mxu0 0
      %888 = vmatpush1.bf16.msra.mxu0 0
      %889 = vmatprep.subr.bf16.mxu0 0
      %890 = vmatpush1.bf16.msra.mxu0 0
      %891 = vmatprep.subr.bf16.mxu0 0
      %892 = vmatpush1.bf16.msra.mxu0 0
      %893 = vmatprep.subr.bf16.mxu0 0
      %894 = vmatpush1.bf16.msra.mxu0 0
      %895 = vmatprep.subr.bf16.mxu0 0
      %896 = vmatpush1.bf16.msra.mxu0 0
      %897 = vmatprep.subr.bf16.mxu0 0
      %898 = vmatpush1.bf16.msra.mxu0 0
      %899 = vmatprep.subr.bf16.mxu0 0
      %900 = vmatpush1.bf16.msra.mxu0 0
      %901 = vmatprep.mubr.bf16.mxu0 0
      %902 = vmatmul.mubr.bf16.gmra.mrb[0].mxu0 %v800
      %v903 = vpop.f32.mrb[0].mxu0
      %v904 = vadd.f32 0.0, %v903
      %v905 = vpop.f32.mrb[0].mxu0
      %v906 = vpop.f32.mrb[0].mxu0
      %v907 = vadd.f32 0.0, %v906
      %v908 = vpop.f32.mrb[0].mxu0
      %909 = vmatprep.mubr.bf16.mxu0 0
      %910 = vmatmul.mubr.bf16.gmra.mrb[0].mxu0 %v801
      %v911 = vpop.f32.mrb[0].mxu0
      %v912 = vadd.f32 0.0, %v911
      %v913 = vpop.f32.mrb[0].mxu0
      %v914 = vpop.f32.mrb[0].mxu0
      %v915 = vadd.f32 0.0, %v914
      %v916 = vpop.f32.mrb[0].mxu0
      %917 = vmatprep.mubr.bf16.mxu0 0
      %918 = vmatmul.mubr.bf16.gmra.mrb[0].mxu0 %v802
      %v919 = vpop.f32.mrb[0].mxu0
      %v920 = vadd.f32 0.0, %v919
      %v921 = vpop.f32.mrb[0].mxu0
      %v922 = vpop.f32.mrb[0].mxu0
      %v923 = vadd.f32 0.0, %v922
      %v924 = vpop.f32.mrb[0].mxu0
      %925 = vmatprep.mubr.bf16.mxu0 0
      %926 = vmatmul.mubr.bf16.gmra.mrb[0].mxu0 %v803
      %v927 = vpop.f32.mrb[0].mxu0
      %v928 = vadd.f32 0.0, %v927
      %v929 = vpop.f32.mrb[0].mxu0
      %v930 = vpop.f32.mrb[0].mxu0
      %v931 = vadd.f32 0.0, %v930
      %v932 = vpop.f32.mrb[0].mxu0
      %933 = vdwg.mxu0
      %v934 = vadd.f32 %v792, %v904
      %v935 = vadd.f32 %v793, %v907
      %v936 = vadd.f32 %v794, %v912
      %v937 = vadd.f32 %v795, %v915
      %v938 = vadd.f32 %v796, %v920
      %v939 = vadd.f32 %v797, %v923
      %v940 = vadd.f32 %v798, %v928
      %v941 = vadd.f32 %v799, %v931
      %v944 = vrot.slane %v305, 1
      %v945 = vrot.slane %v306, 1
      %v946 = vsel %vm345, %v944, %v945
      %v948 = vpack.c.bf16 %v354, %v351
      %v949 = vpack.c.bf16 %v360, %v357
      %v950 = vpack.c.bf16 %v366, %v363
      %v951 = vpack.c.bf16 %v946, %v369
      %s952 = scalar_lea.vmem %s247, 256
      %v953 = vld [vmem:[%s952] sm:$0xf]
      %v954 = vld [vmem:[%s952 + $0x4] sm:$0xf]
      %v955 = vld [vmem:[%s952 + $0x8] sm:$0xf]
      %v956 = vld [vmem:[%s952 + $0xc] sm:$0xf]
      %v957 = vld [vmem:[%s952 + $0x10] sm:$0xf]
      %v958 = vld [vmem:[%s952 + $0x14] sm:$0xf]
      %v959 = vld [vmem:[%s952 + $0x18] sm:$0xf]
      %v960 = vld [vmem:[%s952 + $0x1c] sm:$0xf]
      %v961 = vld [vmem:[%s952 + $0x20] sm:$0xf]
      %v962 = vld [vmem:[%s952 + $0x24] sm:$0xf]
      %v963 = vld [vmem:[%s952 + $0x28] sm:$0xf]
      %v964 = vld [vmem:[%s952 + $0x2c] sm:$0xf]
      %v965 = vld [vmem:[%s952 + $0x30] sm:$0xf]
      %v966 = vld [vmem:[%s952 + $0x34] sm:$0xf]
      %v967 = vld [vmem:[%s952 + $0x38] sm:$0xf]
      %v968 = vld [vmem:[%s952 + $0x3c] sm:$0xf]
      %v985 = vunpack.c.l.b16 %v953
      %v986 = vunpack.c.l.b16 %v954
      %v987 = vunpack.c.l.b16 %v955
      %v988 = vunpack.c.l.b16 %v956
      %v989 = vunpack.c.l.b16 %v957
      %v990 = vunpack.c.l.b16 %v958
      %v991 = vunpack.c.l.b16 %v959
      %v992 = vunpack.c.l.b16 %v960
      %v993 = vunpack.c.l.b16 %v961
      %v994 = vunpack.c.l.b16 %v962
      %v995 = vunpack.c.l.b16 %v963
      %v996 = vunpack.c.l.b16 %v964
      %v997 = vunpack.c.l.b16 %v965
      %v998 = vunpack.c.l.b16 %v966
      %v999 = vunpack.c.l.b16 %v967
      %v1000 = vunpack.c.l.b16 %v968
      %v1001 = vpack.c.b16 %v986, %v985
      %v1002 = vpack.c.b16 %v988, %v987
      %v1003 = vpack.c.b16 %v990, %v989
      %v1004 = vpack.c.b16 %v992, %v991
      %v1005 = vpack.c.b16 %v994, %v993
      %v1006 = vpack.c.b16 %v996, %v995
      %v1007 = vpack.c.b16 %v998, %v997
      %v1008 = vpack.c.b16 %v1000, %v999
      %1017 = vmatprep.subr.bf16.mxu0 0
      %1018 = vmatpush1.bf16.msra.mxu0 %v1001
      %1019 = vmatprep.subr.bf16.mxu0 0
      %1020 = vmatpush1.bf16.msra.mxu0 %v1002
      %1021 = vmatprep.subr.bf16.mxu0 0
      %1022 = vmatpush1.bf16.msra.mxu0 %v1003
      %1023 = vmatprep.subr.bf16.mxu0 0
      %1024 = vmatpush1.bf16.msra.mxu0 %v1004
      %1025 = vmatprep.subr.bf16.mxu0 0
      %1026 = vmatpush1.bf16.msra.mxu0 %v1005
      %1027 = vmatprep.subr.bf16.mxu0 0
      %1028 = vmatpush1.bf16.msra.mxu0 %v1006
      %1029 = vmatprep.subr.bf16.mxu0 0
      %1030 = vmatpush1.bf16.msra.mxu0 %v1007
      %1031 = vmatprep.subr.bf16.mxu0 0
      %1032 = vmatpush1.bf16.msra.mxu0 %v1008
      %1033 = vmatprep.subr.bf16.mxu0 0
      %1034 = vmatpush1.bf16.msra.mxu0 0
      %1035 = vmatprep.subr.bf16.mxu0 0
      %1036 = vmatpush1.bf16.msra.mxu0 0
      %1037 = vmatprep.subr.bf16.mxu0 0
      %1038 = vmatpush1.bf16.msra.mxu0 0
      %1039 = vmatprep.subr.bf16.mxu0 0
      %1040 = vmatpush1.bf16.msra.mxu0 0
      %1041 = vmatprep.subr.bf16.mxu0 0
      %1042 = vmatpush1.bf16.msra.mxu0 0
      %1043 = vmatprep.subr.bf16.mxu0 0
      %1044 = vmatpush1.bf16.msra.mxu0 0
      %1045 = vmatprep.subr.bf16.mxu0 0
      %1046 = vmatpush1.bf16.msra.mxu0 0
      %1047 = vmatprep.subr.bf16.mxu0 0
      %1048 = vmatpush1.bf16.msra.mxu0 0
      %1049 = vmatprep.mubr.bf16.mxu0 0
      %1050 = vmatmul.mubr.bf16.gmra.mrb[0].mxu0 %v948
      %v1051 = vpop.f32.mrb[0].mxu0
      %v1052 = vadd.f32 0.0, %v1051
      %v1053 = vpop.f32.mrb[0].mxu0
      %v1054 = vpop.f32.mrb[0].mxu0
      %v1055 = vadd.f32 0.0, %v1054
      %v1056 = vpop.f32.mrb[0].mxu0
      %1057 = vmatprep.mubr.bf16.mxu0 0
      %1058 = vmatmul.mubr.bf16.gmra.mrb[0].mxu0 %v949
      %v1059 = vpop.f32.mrb[0].mxu0
      %v1060 = vadd.f32 0.0, %v1059
      %v1061 = vpop.f32.mrb[0].mxu0
      %v1062 = vpop.f32.mrb[0].mxu0
      %v1063 = vadd.f32 0.0, %v1062
      %v1064 = vpop.f32.mrb[0].mxu0
      %1065 = vmatprep.mubr.bf16.mxu0 0
      %1066 = vmatmul.mubr.bf16.gmra.mrb[0].mxu0 %v950
      %v1067 = vpop.f32.mrb[0].mxu0
      %v1068 = vadd.f32 0.0, %v1067
      %v1069 = vpop.f32.mrb[0].mxu0
      %v1070 = vpop.f32.mrb[0].mxu0
      %v1071 = vadd.f32 0.0, %v1070
      %v1072 = vpop.f32.mrb[0].mxu0
      %1073 = vmatprep.mubr.bf16.mxu0 0
      %1074 = vmatmul.mubr.bf16.gmra.mrb[0].mxu0 %v951
      %v1075 = vpop.f32.mrb[0].mxu0
      %v1076 = vadd.f32 0.0, %v1075
      %v1077 = vpop.f32.mrb[0].mxu0
      %v1078 = vpop.f32.mrb[0].mxu0
      %v1079 = vadd.f32 0.0, %v1078
      %v1080 = vpop.f32.mrb[0].mxu0
      %1081 = vdwg.mxu0
      %v1082 = vadd.f32 %v934, %v1052
      %v1083 = vadd.f32 %v935, %v1055
      %v1084 = vadd.f32 %v936, %v1060
      %v1085 = vadd.f32 %v937, %v1063
      %v1086 = vadd.f32 %v938, %v1068
      %v1087 = vadd.f32 %v939, %v1071
      %v1088 = vadd.f32 %v940, %v1076
      %v1089 = vadd.f32 %v941, %v1079
      %v1090 = vrot.slane %v305, 2
      %v1091 = vrot.slane %v306, 2
      %v1092 = vsel %vm625, %v1090, %v1091
      %v1094 = vpack.c.bf16 %v634, %v631
      %v1095 = vpack.c.bf16 %v640, %v637
      %v1096 = vpack.c.bf16 %v646, %v643
      %v1097 = vpack.c.bf16 %v1092, %v649
      %s1098 = scalar_lea.vmem %s247, 320
      %v1099 = vld [vmem:[%s1098] sm:$0xf]
      %v1100 = vld [vmem:[%s1098 + $0x4] sm:$0xf]
      %v1101 = vld [vmem:[%s1098 + $0x8] sm:$0xf]
      %v1102 = vld [vmem:[%s1098 + $0xc] sm:$0xf]
      %v1103 = vld [vmem:[%s1098 + $0x10] sm:$0xf]
      %v1104 = vld [vmem:[%s1098 + $0x14] sm:$0xf]
      %v1105 = vld [vmem:[%s1098 + $0x18] sm:$0xf]
      %v1106 = vld [vmem:[%s1098 + $0x1c] sm:$0xf]
      %v1107 = vld [vmem:[%s1098 + $0x20] sm:$0xf]
      %v1108 = vld [vmem:[%s1098 + $0x24] sm:$0xf]
      %v1109 = vld [vmem:[%s1098 + $0x28] sm:$0xf]
      %v1110 = vld [vmem:[%s1098 + $0x2c] sm:$0xf]
      %v1111 = vld [vmem:[%s1098 + $0x30] sm:$0xf]
      %v1112 = vld [vmem:[%s1098 + $0x34] sm:$0xf]
      %v1113 = vld [vmem:[%s1098 + $0x38] sm:$0xf]
      %v1114 = vld [vmem:[%s1098 + $0x3c] sm:$0xf]
      %v1131 = vunpack.c.l.b16 %v1099
      %v1132 = vunpack.c.l.b16 %v1100
      %v1133 = vunpack.c.l.b16 %v1101
      %v1134 = vunpack.c.l.b16 %v1102
      %v1135 = vunpack.c.l.b16 %v1103
      %v1136 = vunpack.c.l.b16 %v1104
      %v1137 = vunpack.c.l.b16 %v1105
      %v1138 = vunpack.c.l.b16 %v1106
      %v1139 = vunpack.c.l.b16 %v1107
      %v1140 = vunpack.c.l.b16 %v1108
      %v1141 = vunpack.c.l.b16 %v1109
      %v1142 = vunpack.c.l.b16 %v1110
      %v1143 = vunpack.c.l.b16 %v1111
      %v1144 = vunpack.c.l.b16 %v1112
      %v1145 = vunpack.c.l.b16 %v1113
      %v1146 = vunpack.c.l.b16 %v1114
      %v1147 = vpack.c.b16 %v1132, %v1131
      %v1148 = vpack.c.b16 %v1134, %v1133
      %v1149 = vpack.c.b16 %v1136, %v1135
      %v1150 = vpack.c.b16 %v1138, %v1137
      %v1151 = vpack.c.b16 %v1140, %v1139
      %v1152 = vpack.c.b16 %v1142, %v1141
      %v1153 = vpack.c.b16 %v1144, %v1143
      %v1154 = vpack.c.b16 %v1146, %v1145
      %1163 = vmatprep.subr.bf16.mxu0 0
      %1164 = vmatpush1.bf16.msra.mxu0 %v1147
      %1165 = vmatprep.subr.bf16.mxu0 0
      %1166 = vmatpush1.bf16.msra.mxu0 %v1148
      %1167 = vmatprep.subr.bf16.mxu0 0
      %1168 = vmatpush1.bf16.msra.mxu0 %v1149
      %1169 = vmatprep.subr.bf16.mxu0 0
      %1170 = vmatpush1.bf16.msra.mxu0 %v1150
      %1171 = vmatprep.subr.bf16.mxu0 0
      %1172 = vmatpush1.bf16.msra.mxu0 %v1151
      %1173 = vmatprep.subr.bf16.mxu0 0
      %1174 = vmatpush1.bf16.msra.mxu0 %v1152
      %1175 = vmatprep.subr.bf16.mxu0 0
      %1176 = vmatpush1.bf16.msra.mxu0 %v1153
      %1177 = vmatprep.subr.bf16.mxu0 0
      %1178 = vmatpush1.bf16.msra.mxu0 %v1154
      %1179 = vmatprep.subr.bf16.mxu0 0
      %1180 = vmatpush1.bf16.msra.mxu0 0
      %1181 = vmatprep.subr.bf16.mxu0 0
      %1182 = vmatpush1.bf16.msra.mxu0 0
      %1183 = vmatprep.subr.bf16.mxu0 0
      %1184 = vmatpush1.bf16.msra.mxu0 0
      %1185 = vmatprep.subr.bf16.mxu0 0
      %1186 = vmatpush1.bf16.msra.mxu0 0
      %1187 = vmatprep.subr.bf16.mxu0 0
      %1188 = vmatpush1.bf16.msra.mxu0 0
      %1189 = vmatprep.subr.bf16.mxu0 0
      %1190 = vmatpush1.bf16.msra.mxu0 0
      %1191 = vmatprep.subr.bf16.mxu0 0
      %1192 = vmatpush1.bf16.msra.mxu0 0
      %1193 = vmatprep.subr.bf16.mxu0 0
      %1194 = vmatpush1.bf16.msra.mxu0 0
      %1195 = vmatprep.mubr.bf16.mxu0 0
      %1196 = vmatmul.mubr.bf16.gmra.mrb[0].mxu0 %v1094
      %v1197 = vpop.f32.mrb[0].mxu0
      %v1198 = vadd.f32 0.0, %v1197
      %v1199 = vpop.f32.mrb[0].mxu0
      %v1200 = vpop.f32.mrb[0].mxu0
      %v1201 = vadd.f32 0.0, %v1200
      %v1202 = vpop.f32.mrb[0].mxu0
      %1203 = vmatprep.mubr.bf16.mxu0 0
      %1204 = vmatmul.mubr.bf16.gmra.mrb[0].mxu0 %v1095
      %v1205 = vpop.f32.mrb[0].mxu0
      %v1206 = vadd.f32 0.0, %v1205
      %v1207 = vpop.f32.mrb[0].mxu0
      %v1208 = vpop.f32.mrb[0].mxu0
      %v1209 = vadd.f32 0.0, %v1208
      %v1210 = vpop.f32.mrb[0].mxu0
      %1211 = vmatprep.mubr.bf16.mxu0 0
      %1212 = vmatmul.mubr.bf16.gmra.mrb[0].mxu0 %v1096
      %v1213 = vpop.f32.mrb[0].mxu0
      %v1214 = vadd.f32 0.0, %v1213
      %v1215 = vpop.f32.mrb[0].mxu0
      %v1216 = vpop.f32.mrb[0].mxu0
      %v1217 = vadd.f32 0.0, %v1216
      %v1218 = vpop.f32.mrb[0].mxu0
      %1219 = vmatprep.mubr.bf16.mxu0 0
      %1220 = vmatmul.mubr.bf16.gmra.mrb[0].mxu0 %v1097
      %v1221 = vpop.f32.mrb[0].mxu0
      %v1222 = vadd.f32 0.0, %v1221
      %v1223 = vpop.f32.mrb[0].mxu0
      %v1224 = vpop.f32.mrb[0].mxu0
      %v1225 = vadd.f32 0.0, %v1224
      %v1226 = vpop.f32.mrb[0].mxu0
      %1227 = vdwg.mxu0
      %v1228 = vadd.f32 %v1082, %v1198
      %v1229 = vadd.f32 %v1083, %v1201
      %v1230 = vadd.f32 %v1084, %v1206
      %v1231 = vadd.f32 %v1085, %v1209
      %v1232 = vadd.f32 %v1086, %v1214
      %v1233 = vadd.f32 %v1087, %v1217
      %v1234 = vadd.f32 %v1088, %v1222
      %v1235 = vadd.f32 %v1089, %v1225
      %v1236 = vpack.c.bf16 %v307, %v305
      %s1237 = scalar_lea.vmem %s247, 384
      %v1238 = vld [vmem:[%s1237] sm:$0xf]
      %v1239 = vld [vmem:[%s1237 + $0x4] sm:$0xf]
      %v1240 = vld [vmem:[%s1237 + $0x8] sm:$0xf]
      %v1241 = vld [vmem:[%s1237 + $0xc] sm:$0xf]
      %v1242 = vld [vmem:[%s1237 + $0x10] sm:$0xf]
      %v1243 = vld [vmem:[%s1237 + $0x14] sm:$0xf]
      %v1244 = vld [vmem:[%s1237 + $0x18] sm:$0xf]
      %v1245 = vld [vmem:[%s1237 + $0x1c] sm:$0xf]
      %v1246 = vld [vmem:[%s1237 + $0x20] sm:$0xf]
      %v1247 = vld [vmem:[%s1237 + $0x24] sm:$0xf]
      %v1248 = vld [vmem:[%s1237 + $0x28] sm:$0xf]
      %v1249 = vld [vmem:[%s1237 + $0x2c] sm:$0xf]
      %v1250 = vld [vmem:[%s1237 + $0x30] sm:$0xf]
      %v1251 = vld [vmem:[%s1237 + $0x34] sm:$0xf]
      %v1252 = vld [vmem:[%s1237 + $0x38] sm:$0xf]
      %v1253 = vld [vmem:[%s1237 + $0x3c] sm:$0xf]
      %v1270 = vunpack.c.l.b16 %v1238
      %v1271 = vunpack.c.l.b16 %v1239
      %v1272 = vunpack.c.l.b16 %v1240
      %v1273 = vunpack.c.l.b16 %v1241
      %v1274 = vunpack.c.l.b16 %v1242
      %v1275 = vunpack.c.l.b16 %v1243
      %v1276 = vunpack.c.l.b16 %v1244
      %v1277 = vunpack.c.l.b16 %v1245
      %v1278 = vunpack.c.l.b16 %v1246
      %v1279 = vunpack.c.l.b16 %v1247
      %v1280 = vunpack.c.l.b16 %v1248
      %v1281 = vunpack.c.l.b16 %v1249
      %v1282 = vunpack.c.l.b16 %v1250
      %v1283 = vunpack.c.l.b16 %v1251
      %v1284 = vunpack.c.l.b16 %v1252
      %v1285 = vunpack.c.l.b16 %v1253
      %v1286 = vpack.c.b16 %v1271, %v1270
      %v1287 = vpack.c.b16 %v1273, %v1272
      %v1288 = vpack.c.b16 %v1275, %v1274
      %v1289 = vpack.c.b16 %v1277, %v1276
      %v1290 = vpack.c.b16 %v1279, %v1278
      %v1291 = vpack.c.b16 %v1281, %v1280
      %v1292 = vpack.c.b16 %v1283, %v1282
      %v1293 = vpack.c.b16 %v1285, %v1284
      %1302 = vmatprep.subr.bf16.mxu0 0
      %1303 = vmatpush1.bf16.msra.mxu0 %v1286
      %1304 = vmatprep.subr.bf16.mxu0 0
      %1305 = vmatpush1.bf16.msra.mxu0 %v1287
      %1306 = vmatprep.subr.bf16.mxu0 0
      %1307 = vmatpush1.bf16.msra.mxu0 %v1288
      %1308 = vmatprep.subr.bf16.mxu0 0
      %1309 = vmatpush1.bf16.msra.mxu0 %v1289
      %1310 = vmatprep.subr.bf16.mxu0 0
      %1311 = vmatpush1.bf16.msra.mxu0 %v1290
      %1312 = vmatprep.subr.bf16.mxu0 0
      %1313 = vmatpush1.bf16.msra.mxu0 %v1291
      %1314 = vmatprep.subr.bf16.mxu0 0
      %1315 = vmatpush1.bf16.msra.mxu0 %v1292
      %1316 = vmatprep.subr.bf16.mxu0 0
      %1317 = vmatpush1.bf16.msra.mxu0 %v1293
      %1318 = vmatprep.subr.bf16.mxu0 0
      %1319 = vmatpush1.bf16.msra.mxu0 0
      %1320 = vmatprep.subr.bf16.mxu0 0
      %1321 = vmatpush1.bf16.msra.mxu0 0
      %1322 = vmatprep.subr.bf16.mxu0 0
      %1323 = vmatpush1.bf16.msra.mxu0 0
      %1324 = vmatprep.subr.bf16.mxu0 0
      %1325 = vmatpush1.bf16.msra.mxu0 0
      %1326 = vmatprep.subr.bf16.mxu0 0
      %1327 = vmatpush1.bf16.msra.mxu0 0
      %1328 = vmatprep.subr.bf16.mxu0 0
      %1329 = vmatpush1.bf16.msra.mxu0 0
      %1330 = vmatprep.subr.bf16.mxu0 0
      %1331 = vmatpush1.bf16.msra.mxu0 0
      %1332 = vmatprep.subr.bf16.mxu0 0
      %1333 = vmatpush1.bf16.msra.mxu0 0
      %1334 = vmatprep.mubr.bf16.mxu0 0
      %1335 = vmatmul.mubr.bf16.gmra.mrb[0].mxu0 %v310
      %v1336 = vpop.f32.mrb[0].mxu0
      %v1337 = vadd.f32 0.0, %v1336
      %v1338 = vpop.f32.mrb[0].mxu0
      %v1339 = vpop.f32.mrb[0].mxu0
      %v1340 = vadd.f32 0.0, %v1339
      %v1341 = vpop.f32.mrb[0].mxu0
      %1342 = vmatprep.mubr.bf16.mxu0 0
      %1343 = vmatmul.mubr.bf16.gmra.mrb[0].mxu0 %v311
      %v1344 = vpop.f32.mrb[0].mxu0
      %v1345 = vadd.f32 0.0, %v1344
      %v1346 = vpop.f32.mrb[0].mxu0
      %v1347 = vpop.f32.mrb[0].mxu0
      %v1348 = vadd.f32 0.0, %v1347
      %v1349 = vpop.f32.mrb[0].mxu0
      %1350 = vmatprep.mubr.bf16.mxu0 0
      %1351 = vmatmul.mubr.bf16.gmra.mrb[0].mxu0 %v312
      %v1352 = vpop.f32.mrb[0].mxu0
      %v1353 = vadd.f32 0.0, %v1352
      %v1354 = vpop.f32.mrb[0].mxu0
      %v1355 = vpop.f32.mrb[0].mxu0
      %v1356 = vadd.f32 0.0, %v1355
      %v1357 = vpop.f32.mrb[0].mxu0
      %1358 = vmatprep.mubr.bf16.mxu0 0
      %1359 = vmatmul.mubr.bf16.gmra.mrb[0].mxu0 %v1236
      %v1360 = vpop.f32.mrb[0].mxu0
      %v1361 = vadd.f32 0.0, %v1360
      %v1362 = vpop.f32.mrb[0].mxu0
      %v1363 = vpop.f32.mrb[0].mxu0
      %v1364 = vadd.f32 0.0, %v1363
      %v1365 = vpop.f32.mrb[0].mxu0
      %1366 = vdwg.mxu0
      %v1367 = vadd.f32 %v1228, %v1337
      %v1368 = vadd.f32 %v1229, %v1340
      %v1369 = vadd.f32 %v1230, %v1345
      %v1370 = vadd.f32 %v1231, %v1348
      %v1371 = vadd.f32 %v1232, %v1353
      %v1372 = vadd.f32 %v1233, %v1356
      %v1373 = vadd.f32 %v1234, %v1361
      %v1374 = vadd.f32 %v1235, %v1364
      %v1377 = vrot.slane %v307, 1
      %v1378 = vrot.slane %v308, 1
      %v1379 = vsel %vm345, %v1377, %v1378
      %v1381 = vpack.c.bf16 %v1379, %v946
      %s1382 = scalar_lea.vmem %s247, 448
      %v1383 = vld [vmem:[%s1382] sm:$0xf]
      %v1384 = vld [vmem:[%s1382 + $0x4] sm:$0xf]
      %v1385 = vld [vmem:[%s1382 + $0x8] sm:$0xf]
      %v1386 = vld [vmem:[%s1382 + $0xc] sm:$0xf]
      %v1387 = vld [vmem:[%s1382 + $0x10] sm:$0xf]
      %v1388 = vld [vmem:[%s1382 + $0x14] sm:$0xf]
      %v1389 = vld [vmem:[%s1382 + $0x18] sm:$0xf]
      %v1390 = vld [vmem:[%s1382 + $0x1c] sm:$0xf]
      %v1391 = vld [vmem:[%s1382 + $0x20] sm:$0xf]
      %v1392 = vld [vmem:[%s1382 + $0x24] sm:$0xf]
      %v1393 = vld [vmem:[%s1382 + $0x28] sm:$0xf]
      %v1394 = vld [vmem:[%s1382 + $0x2c] sm:$0xf]
      %v1395 = vld [vmem:[%s1382 + $0x30] sm:$0xf]
      %v1396 = vld [vmem:[%s1382 + $0x34] sm:$0xf]
      %v1397 = vld [vmem:[%s1382 + $0x38] sm:$0xf]
      %v1398 = vld [vmem:[%s1382 + $0x3c] sm:$0xf]
      %v1415 = vunpack.c.l.b16 %v1383
      %v1416 = vunpack.c.l.b16 %v1384
      %v1417 = vunpack.c.l.b16 %v1385
      %v1418 = vunpack.c.l.b16 %v1386
      %v1419 = vunpack.c.l.b16 %v1387
      %v1420 = vunpack.c.l.b16 %v1388
      %v1421 = vunpack.c.l.b16 %v1389
      %v1422 = vunpack.c.l.b16 %v1390
      %v1423 = vunpack.c.l.b16 %v1391
      %v1424 = vunpack.c.l.b16 %v1392
      %v1425 = vunpack.c.l.b16 %v1393
      %v1426 = vunpack.c.l.b16 %v1394
      %v1427 = vunpack.c.l.b16 %v1395
      %v1428 = vunpack.c.l.b16 %v1396
      %v1429 = vunpack.c.l.b16 %v1397
      %v1430 = vunpack.c.l.b16 %v1398
      %v1431 = vpack.c.b16 %v1416, %v1415
      %v1432 = vpack.c.b16 %v1418, %v1417
      %v1433 = vpack.c.b16 %v1420, %v1419
      %v1434 = vpack.c.b16 %v1422, %v1421
      %v1435 = vpack.c.b16 %v1424, %v1423
      %v1436 = vpack.c.b16 %v1426, %v1425
      %v1437 = vpack.c.b16 %v1428, %v1427
      %v1438 = vpack.c.b16 %v1430, %v1429
      %1447 = vmatprep.subr.bf16.mxu0 0
      %1448 = vmatpush1.bf16.msra.mxu0 %v1431
      %1449 = vmatprep.subr.bf16.mxu0 0
      %1450 = vmatpush1.bf16.msra.mxu0 %v1432
      %1451 = vmatprep.subr.bf16.mxu0 0
      %1452 = vmatpush1.bf16.msra.mxu0 %v1433
      %1453 = vmatprep.subr.bf16.mxu0 0
      %1454 = vmatpush1.bf16.msra.mxu0 %v1434
      %1455 = vmatprep.subr.bf16.mxu0 0
      %1456 = vmatpush1.bf16.msra.mxu0 %v1435
      %1457 = vmatprep.subr.bf16.mxu0 0
      %1458 = vmatpush1.bf16.msra.mxu0 %v1436
      %1459 = vmatprep.subr.bf16.mxu0 0
      %1460 = vmatpush1.bf16.msra.mxu0 %v1437
      %1461 = vmatprep.subr.bf16.mxu0 0
      %1462 = vmatpush1.bf16.msra.mxu0 %v1438
      %1463 = vmatprep.subr.bf16.mxu0 0
      %1464 = vmatpush1.bf16.msra.mxu0 0
      %1465 = vmatprep.subr.bf16.mxu0 0
      %1466 = vmatpush1.bf16.msra.mxu0 0
      %1467 = vmatprep.subr.bf16.mxu0 0
      %1468 = vmatpush1.bf16.msra.mxu0 0
      %1469 = vmatprep.subr.bf16.mxu0 0
      %1470 = vmatpush1.bf16.msra.mxu0 0
      %1471 = vmatprep.subr.bf16.mxu0 0
      %1472 = vmatpush1.bf16.msra.mxu0 0
      %1473 = vmatprep.subr.bf16.mxu0 0
      %1474 = vmatpush1.bf16.msra.mxu0 0
      %1475 = vmatprep.subr.bf16.mxu0 0
      %1476 = vmatpush1.bf16.msra.mxu0 0
      %1477 = vmatprep.subr.bf16.mxu0 0
      %1478 = vmatpush1.bf16.msra.mxu0 0
      %1479 = vmatprep.mubr.bf16.mxu0 0
      %1480 = vmatmul.mubr.bf16.gmra.mrb[0].mxu0 %v379
      %v1481 = vpop.f32.mrb[0].mxu0
      %v1482 = vadd.f32 0.0, %v1481
      %v1483 = vpop.f32.mrb[0].mxu0
      %v1484 = vpop.f32.mrb[0].mxu0
      %v1485 = vadd.f32 0.0, %v1484
      %v1486 = vpop.f32.mrb[0].mxu0
      %1487 = vmatprep.mubr.bf16.mxu0 0
      %1488 = vmatmul.mubr.bf16.gmra.mrb[0].mxu0 %v380
      %v1489 = vpop.f32.mrb[0].mxu0
      %v1490 = vadd.f32 0.0, %v1489
      %v1491 = vpop.f32.mrb[0].mxu0
      %v1492 = vpop.f32.mrb[0].mxu0
      %v1493 = vadd.f32 0.0, %v1492
      %v1494 = vpop.f32.mrb[0].mxu0
      %1495 = vmatprep.mubr.bf16.mxu0 0
      %1496 = vmatmul.mubr.bf16.gmra.mrb[0].mxu0 %v381
      %v1497 = vpop.f32.mrb[0].mxu0
      %v1498 = vadd.f32 0.0, %v1497
      %v1499 = vpop.f32.mrb[0].mxu0
      %v1500 = vpop.f32.mrb[0].mxu0
      %v1501 = vadd.f32 0.0, %v1500
      %v1502 = vpop.f32.mrb[0].mxu0
      %1503 = vmatprep.mubr.bf16.mxu0 0
      %1504 = vmatmul.mubr.bf16.gmra.mrb[0].mxu0 %v1381
      %v1505 = vpop.f32.mrb[0].mxu0
      %v1506 = vadd.f32 0.0, %v1505
      %v1507 = vpop.f32.mrb[0].mxu0
      %v1508 = vpop.f32.mrb[0].mxu0
      %v1509 = vadd.f32 0.0, %v1508
      %v1510 = vpop.f32.mrb[0].mxu0
      %1511 = vdwg.mxu0
      %v1512 = vadd.f32 %v1367, %v1482
      %v1513 = vadd.f32 %v1368, %v1485
      %v1514 = vadd.f32 %v1369, %v1490
      %v1515 = vadd.f32 %v1370, %v1493
      %v1516 = vadd.f32 %v1371, %v1498
      %v1517 = vadd.f32 %v1372, %v1501
      %v1518 = vadd.f32 %v1373, %v1506
      %v1519 = vadd.f32 %v1374, %v1509
      %v1520 = vrot.slane %v307, 2
      %v1521 = vrot.slane %v308, 2
      %v1522 = vsel %vm625, %v1520, %v1521
      %v1524 = vpack.c.bf16 %v1522, %v1092
      %s1525 = scalar_lea.vmem %s247, 512
      %v1526 = vld [vmem:[%s1525] sm:$0xf]
      %v1527 = vld [vmem:[%s1525 + $0x4] sm:$0xf]
      %v1528 = vld [vmem:[%s1525 + $0x8] sm:$0xf]
      %v1529 = vld [vmem:[%s1525 + $0xc] sm:$0xf]
      %v1530 = vld [vmem:[%s1525 + $0x10] sm:$0xf]
      %v1531 = vld [vmem:[%s1525 + $0x14] sm:$0xf]
      %v1532 = vld [vmem:[%s1525 + $0x18] sm:$0xf]
      %v1533 = vld [vmem:[%s1525 + $0x1c] sm:$0xf]
      %v1534 = vld [vmem:[%s1525 + $0x20] sm:$0xf]
      %v1535 = vld [vmem:[%s1525 + $0x24] sm:$0xf]
      %v1536 = vld [vmem:[%s1525 + $0x28] sm:$0xf]
      %v1537 = vld [vmem:[%s1525 + $0x2c] sm:$0xf]
      %v1538 = vld [vmem:[%s1525 + $0x30] sm:$0xf]
      %v1539 = vld [vmem:[%s1525 + $0x34] sm:$0xf]
      %v1540 = vld [vmem:[%s1525 + $0x38] sm:$0xf]
      %v1541 = vld [vmem:[%s1525 + $0x3c] sm:$0xf]
      %v1558 = vunpack.c.l.b16 %v1526
      %v1559 = vunpack.c.l.b16 %v1527
      %v1560 = vunpack.c.l.b16 %v1528
      %v1561 = vunpack.c.l.b16 %v1529
      %v1562 = vunpack.c.l.b16 %v1530
      %v1563 = vunpack.c.l.b16 %v1531
      %v1564 = vunpack.c.l.b16 %v1532
      %v1565 = vunpack.c.l.b16 %v1533
      %v1566 = vunpack.c.l.b16 %v1534
      %v1567 = vunpack.c.l.b16 %v1535
      %v1568 = vunpack.c.l.b16 %v1536
      %v1569 = vunpack.c.l.b16 %v1537
      %v1570 = vunpack.c.l.b16 %v1538
      %v1571 = vunpack.c.l.b16 %v1539
      %v1572 = vunpack.c.l.b16 %v1540
      %v1573 = vunpack.c.l.b16 %v1541
      %v1574 = vpack.c.b16 %v1559, %v1558
      %v1575 = vpack.c.b16 %v1561, %v1560
      %v1576 = vpack.c.b16 %v1563, %v1562
      %v1577 = vpack.c.b16 %v1565, %v1564
      %v1578 = vpack.c.b16 %v1567, %v1566
      %v1579 = vpack.c.b16 %v1569, %v1568
      %v1580 = vpack.c.b16 %v1571, %v1570
      %v1581 = vpack.c.b16 %v1573, %v1572
      %1590 = vmatprep.subr.bf16.mxu0 0
      %1591 = vmatpush1.bf16.msra.mxu0 %v1574
      %1592 = vmatprep.subr.bf16.mxu0 0
      %1593 = vmatpush1.bf16.msra.mxu0 %v1575
      %1594 = vmatprep.subr.bf16.mxu0 0
      %1595 = vmatpush1.bf16.msra.mxu0 %v1576
      %1596 = vmatprep.subr.bf16.mxu0 0
      %1597 = vmatpush1.bf16.msra.mxu0 %v1577
      %1598 = vmatprep.subr.bf16.mxu0 0
      %1599 = vmatpush1.bf16.msra.mxu0 %v1578
      %1600 = vmatprep.subr.bf16.mxu0 0
      %1601 = vmatpush1.bf16.msra.mxu0 %v1579
      %1602 = vmatprep.subr.bf16.mxu0 0
      %1603 = vmatpush1.bf16.msra.mxu0 %v1580
      %1604 = vmatprep.subr.bf16.mxu0 0
      %1605 = vmatpush1.bf16.msra.mxu0 %v1581
      %1606 = vmatprep.subr.bf16.mxu0 0
      %1607 = vmatpush1.bf16.msra.mxu0 0
      %1608 = vmatprep.subr.bf16.mxu0 0
      %1609 = vmatpush1.bf16.msra.mxu0 0
      %1610 = vmatprep.subr.bf16.mxu0 0
      %1611 = vmatpush1.bf16.msra.mxu0 0
      %1612 = vmatprep.subr.bf16.mxu0 0
      %1613 = vmatpush1.bf16.msra.mxu0 0
      %1614 = vmatprep.subr.bf16.mxu0 0
      %1615 = vmatpush1.bf16.msra.mxu0 0
      %1616 = vmatprep.subr.bf16.mxu0 0
      %1617 = vmatpush1.bf16.msra.mxu0 0
      %1618 = vmatprep.subr.bf16.mxu0 0
      %1619 = vmatpush1.bf16.msra.mxu0 0
      %1620 = vmatprep.subr.bf16.mxu0 0
      %1621 = vmatpush1.bf16.msra.mxu0 0
      %1622 = vmatprep.mubr.bf16.mxu0 0
      %1623 = vmatmul.mubr.bf16.gmra.mrb[0].mxu0 %v659
      %v1624 = vpop.f32.mrb[0].mxu0
      %v1625 = vadd.f32 0.0, %v1624
      %v1626 = vpop.f32.mrb[0].mxu0
      %v1627 = vpop.f32.mrb[0].mxu0
      %v1628 = vadd.f32 0.0, %v1627
      %v1629 = vpop.f32.mrb[0].mxu0
      %1630 = vmatprep.mubr.bf16.mxu0 0
      %1631 = vmatmul.mubr.bf16.gmra.mrb[0].mxu0 %v660
      %v1632 = vpop.f32.mrb[0].mxu0
      %v1633 = vadd.f32 0.0, %v1632
      %v1634 = vpop.f32.mrb[0].mxu0
      %v1635 = vpop.f32.mrb[0].mxu0
      %v1636 = vadd.f32 0.0, %v1635
      %v1637 = vpop.f32.mrb[0].mxu0
      %1638 = vmatprep.mubr.bf16.mxu0 0
      %1639 = vmatmul.mubr.bf16.gmra.mrb[0].mxu0 %v661
      %v1640 = vpop.f32.mrb[0].mxu0
      %v1641 = vadd.f32 0.0, %v1640
      %v1642 = vpop.f32.mrb[0].mxu0
      %v1643 = vpop.f32.mrb[0].mxu0
      %v1644 = vadd.f32 0.0, %v1643
      %v1645 = vpop.f32.mrb[0].mxu0
      %1646 = vmatprep.mubr.bf16.mxu0 0
      %1647 = vmatmul.mubr.bf16.gmra.mrb[0].mxu0 %v1524
      %v1648 = vpop.f32.mrb[0].mxu0
      %v1649 = vadd.f32 0.0, %v1648
      %v1650 = vpop.f32.mrb[0].mxu0
      %v1651 = vpop.f32.mrb[0].mxu0
      %v1652 = vadd.f32 0.0, %v1651
      %v1653 = vpop.f32.mrb[0].mxu0
      %1654 = vdwg.mxu0
      %v1655 = vadd.f32 %v1512, %v1625
      %v1656 = vadd.f32 %v1513, %v1628
      %v1657 = vadd.f32 %v1514, %v1633
      %v1658 = vadd.f32 %v1515, %v1636
      %v1659 = vadd.f32 %v1516, %v1641
      %v1660 = vadd.f32 %v1517, %v1644
      %v1661 = vadd.f32 %v1518, %v1649
      %v1662 = vadd.f32 %v1519, %v1652
      %1663 = vst [vmem:[%s255] sm:$0xff] %v1655
      %1664 = vst [vmem:[%s255 + $0x8] sm:$0xff] %v1656
      %1665 = vst [vmem:[%s255 + $0x10] sm:$0xff] %v1657
      %1666 = vst [vmem:[%s255 + $0x18] sm:$0xff] %v1658
      %1667 = vst [vmem:[%s255 + $0x20] sm:$0xff] %v1659
      %1668 = vst [vmem:[%s255 + $0x28] sm:$0xff] %v1660
      %1669 = vst [vmem:[%s255 + $0x30] sm:$0xff] %v1661
      %1670 = vst [vmem:[%s255 + $0x38] sm:$0xff] %v1662
      %v1671 = vadd.f32 %v1655, %v1656
      %v1672 = vadd.f32 %v1671, %v1657
      %v1673 = vadd.f32 %v1672, %v1658
      %v1674 = vadd.f32 %v1673, %v1659
      %v1675 = vadd.f32 %v1674, %v1660
      %v1676 = vadd.f32 %v1675, %v1661
      %v1677 = vadd.f32 %v1676, %v1662
      %v1678 = vrot.slane %v1677, 4
      %v1679 = vadd.f32 %v1677, %v1678
      %v1680 = vrot.slane %v1679, 2
      %v1681 = vadd.f32 %v1679, %v1680
      %v1682 = vrot.slane %v1681, 1
      %v1683 = vadd.f32 %v1681, %v1682
      %1684 = vst [vmem:[%s261] sm:$0x1] %v1683
      %v1685 = vmul.f32 %v1655, %v1655
      %v1686 = vmul.f32 %v1656, %v1656
      %v1687 = vmul.f32 %v1657, %v1657
      %v1688 = vmul.f32 %v1658, %v1658
      %v1689 = vmul.f32 %v1659, %v1659
      %v1690 = vmul.f32 %v1660, %v1660
      %v1691 = vmul.f32 %v1661, %v1661
      %v1692 = vmul.f32 %v1662, %v1662
      %v1693 = vadd.f32 %v1685, %v1686
      %v1694 = vadd.f32 %v1693, %v1687
      %v1695 = vadd.f32 %v1694, %v1688
      %v1696 = vadd.f32 %v1695, %v1689
      %v1697 = vadd.f32 %v1696, %v1690
      %v1698 = vadd.f32 %v1697, %v1691
      %v1699 = vadd.f32 %v1698, %v1692
      %v1700 = vrot.slane %v1699, 4
      %v1701 = vadd.f32 %v1699, %v1700
      %v1702 = vrot.slane %v1701, 2
      %v1703 = vadd.f32 %v1701, %v1702
      %v1704 = vrot.slane %v1703, 1
      %v1705 = vadd.f32 %v1703, %v1704
      %1706 = vst [vmem:[%s267] sm:$0x1] %v1705
      %p1707 = scmp.lt.s32.totalorder %s20, 1
      %s1708 = scalar_select %p1707, %s20, 1
      %p1709 = scmp.lt.s32.totalorder %s21, 0
      %s1710 = scalar_select %p1709, %s21, 0
      %s1711 = smul.addr %s1708, 8
      %s1712 = sadd.s32 %s1710, %s1711
      %s1713 = smul.addr %s1712, 8
      %s1714 = scalar_lea.vmem %s2, %s1713
      %p1715 = scmp.lt.s32.totalorder %s20, 1
      %s1716 = scalar_select %p1715, %s20, 1
      %p1717 = scmp.lt.s32.totalorder %s21, 0
      %s1718 = scalar_select %p1717, %s21, 0
      %s1719 = sadd.s32 %s1718, %s1716
      %s1720 = scalar_lea.vmem %s3, %s1719
      %p1721 = scmp.lt.s32.totalorder %s20, 1
      %s1722 = scalar_select %p1721, %s20, 1
      %p1723 = scmp.lt.s32.totalorder %s21, 0
      %s1724 = scalar_select %p1723, %s21, 0
      %s1725 = sadd.s32 %s1724, %s1722
      %s1726 = scalar_lea.vmem %s4, %s1725
      // Predicated region
      $region29: #{basic_block_forward.7} parent=27 // pred_check
        %p1727 = pneg %p100
      $region30: #{basic_block_forward.7} parent=27 // pred_check_branch
        %1729 = sbr.rel (%p1727) target = $region32
      $region31: #{basic_block_forward.7} parent=27 // pred_region
        _
      $region32: #{basic_block_forward.7} parent=27 // pred_fallthru
        _
      // Predicated region
      $region33: #{basic_block_forward.7} parent=27 // pred_check
        %p1730 = pneg %p128
      $region34: #{basic_block_forward.7} parent=27 // pred_check_branch
        %1732 = sbr.rel (%p1730) target = $region36
      $region35: #{basic_block_forward.7} parent=27 // pred_region
        _
      $region36: #{basic_block_forward.7} parent=27 // pred_fallthru
        _
      // Predicated region
      $region37: #{basic_block_forward.7} parent=27 // pred_check
        %p1733 = pneg %p156
      $region38: #{basic_block_forward.7} parent=27 // pred_check_branch
        %1735 = sbr.rel (%p1733) target = $region40
      $region39: #{basic_block_forward.7} parent=27 // pred_region
        _
      $region40: #{basic_block_forward.7} parent=27 // pred_fallthru
        _
    $region28: #{basic_block_forward.7} parent=5 // pred_fallthru
      _
    %p1736 = scmp.le.s32.totalorder 2, %s11
    // Predicated region
    $region41: #{basic_block_forward.7} parent=5 // pred_check
      %p1737 = pneg %p1736
    $region42: #{basic_block_forward.7} parent=5 // pred_check_branch
      %1739 = sbr.rel (%p1737) target = $region44
    $region43: #{basic_block_forward.7} parent=5 // pred_region
      %s1740 = ssub.s32 %s11, 2
      // Predicated region
      $region45: #{basic_block_forward.7} parent=43 // pred_check
        %p1741 = pneg %p106
      $region46: #{basic_block_forward.7} parent=43 // pred_check_branch
        %1743 = sbr.rel (%p1741) target = $region48
      $region47: #{basic_block_forward.7} parent=43 // pred_region
        %p1744 = scmp.lt.s32.totalorder %s22, 1
        %s1745 = scalar_select %p1744, %s22, 1
        %p1746 = scmp.lt.s32.totalorder %s23, 0
        %s1747 = scalar_select %p1746, %s23, 0
        %s1748 = smul.addr %s1745, 8
        %s1749 = sadd.s32 %s1747, %s1748
        %s1750 = smul.addr %s1749, 8
        %s1751 = scalar_lea.vmem %s2, %s1750
      $region48: #{basic_block_forward.7} parent=43 // pred_fallthru
        _
      // Predicated region
      $region49: #{basic_block_forward.7} parent=43 // pred_check
        %p1752 = pneg %p134
      $region50: #{basic_block_forward.7} parent=43 // pred_check_branch
        %1754 = sbr.rel (%p1752) target = $region52
      $region51: #{basic_block_forward.7} parent=43 // pred_region
        %p1755 = scmp.lt.s32.totalorder %s22, 1
        %s1756 = scalar_select %p1755, %s22, 1
        %p1757 = scmp.lt.s32.totalorder %s23, 0
        %s1758 = scalar_select %p1757, %s23, 0
        %s1759 = sadd.s32 %s1758, %s1756
        %s1760 = scalar_lea.vmem %s3, %s1759
      $region52: #{basic_block_forward.7} parent=43 // pred_fallthru
        _
      // Predicated region
      $region53: #{basic_block_forward.7} parent=43 // pred_check
        %p1761 = pneg %p162
      $region54: #{basic_block_forward.7} parent=43 // pred_check_branch
        %1763 = sbr.rel (%p1761) target = $region56
      $region55: #{basic_block_forward.7} parent=43 // pred_region
        %p1764 = scmp.lt.s32.totalorder %s22, 1
        %s1765 = scalar_select %p1764, %s22, 1
        %p1766 = scmp.lt.s32.totalorder %s23, 0
        %s1767 = scalar_select %p1766, %s23, 0
        %s1768 = sadd.s32 %s1767, %s1765
        %s1769 = scalar_lea.vmem %s4, %s1768
      $region56: #{basic_block_forward.7} parent=43 // pred_fallthru
        _
    $region44: #{basic_block_forward.7} parent=5 // pred_fallthru
      _
  $region6: #{basic_block_forward.7} parent=0 // loop_footer
    %s15 = sadd.s32 1, %s11
  $region7: #{basic_block_forward.7} parent=0 // loop_footer_branch
    %10 = sbr.rel target = $region3
  $region8: #{basic_block_forward.7} parent=0 // loop_exit
    _

</llo_original>
